<compile_context>
chip_gen: v6e
topology: v6e:2x2x1
jax: 0.10.0
libtpu: 0.0.40
codegen_flags: <defaults>
</compile_context>

<pallas_src>
import functools

import jax
import jax.numpy as jnp
import numpy as np
from jax.experimental import pallas as pl
from jax.experimental.pallas import tpu as pltpu


# ----------------------------------------------------------------------------
# Pallas kernel: one block of X windows (TM = X*N token rows) per grid step.
# ----------------------------------------------------------------------------
def _window_attention_kernel(x_ref, bias_ref, wqkv_ref, bqkv_ref,
                             wproj_ref, bproj_ref, o_ref,
                             *, num_heads, head_dim, tokens,
                             compute_dtype, approx_softmax):
    TM, C = x_ref.shape                       # TM = X * N token rows
    N = tokens
    X = TM // N                               # windows in this block
    hd = head_dim

    x2 = x_ref[...]                                            # (TM, C) compute dtype

    # QKV projection on the MXU, f32 accumulation, f32 bias add.
    # (scale is already folded into the Q columns of wqkv/bqkv.)
    qkv = jnp.dot(x2, wqkv_ref[...], preferred_element_type=jnp.float32)
    qkv = qkv + bqkv_ref[...]                                  # (TM, 3C) f32

    head_outs = []
    for h in range(num_heads):                                 # static, small loop
        q = qkv[:, h * hd:(h + 1) * hd].astype(compute_dtype).reshape(X, N, hd)
        k = qkv[:, C + h * hd:C + (h + 1) * hd].astype(compute_dtype).reshape(X, N, hd)
        v = qkv[:, 2 * C + h * hd:2 * C + (h + 1) * hd].astype(compute_dtype).reshape(X, N, hd)

        # Batched over all X windows; contracts on the last dim (no explicit k.T).
        s = jnp.einsum("xnd,xmd->xnm", q, k,
                       preferred_element_type=jnp.float32)     # (X, N, N) f32
        # Pre-combined (rel-pos bias + shift mask), already tiled to X windows.
        s = s + bias_ref[h]                                    # (X, N, N) + (X, N, N)

        # softmax over last dim (f32)
        s = s - jnp.max(s, axis=-1, keepdims=True)
        p = jnp.exp(s)
        denom = jnp.sum(p, axis=-1, keepdims=True)
        if approx_softmax:
            p = p * pl.reciprocal(denom, approx=True)          # EUP slot (free-ish)
        else:
            p = p / denom

        ctx = jnp.einsum("xnm,xmd->xnd", p.astype(compute_dtype), v,
                         preferred_element_type=jnp.float32)   # (X, N, hd) f32
        head_outs.append(ctx)

    ctx = jnp.concatenate(head_outs, axis=-1)                  # (X, N, C)
    ctx = ctx.reshape(TM, C).astype(compute_dtype)

    # Single (TM,C)@(C,C) proj keeps the MXU contraction depth at C
    # (better than nH small K=hd matmuls).
    out = jnp.dot(ctx, wproj_ref[...], preferred_element_type=jnp.float32)
    out = out + bproj_ref[...]                                 # (TM, C) f32
    o_ref[...] = out.astype(o_ref.dtype)


# ----------------------------------------------------------------------------
# Plain-JAX glue: relative position index (same construction as the module).
# ----------------------------------------------------------------------------
def make_relative_position_index(window_size):
    wh, ww = window_size
    coords_h = np.arange(wh)
    coords_w = np.arange(ww)
    coords = np.stack(np.meshgrid(coords_h, coords_w, indexing="ij"))     # (2, Wh, Ww)
    coords_flatten = coords.reshape(2, -1)                                # (2, N)
    relative_coords = coords_flatten[:, :, None] - coords_flatten[:, None, :]
    relative_coords = relative_coords.transpose(1, 2, 0)                  # (N, N, 2)
    relative_coords[:, :, 0] += wh - 1
    relative_coords[:, :, 1] += ww - 1
    relative_coords[:, :, 0] *= 2 * ww - 1
    relative_position_index = relative_coords.sum(-1)                     # (N, N)
    return jnp.asarray(relative_position_index, dtype=jnp.int32)


def _choose_group_block(num_groups, rows_per_group, target_rows=1024):
    """Largest divisor BB of num_groups with BB*rows_per_group <= target_rows,
    preferring >= 2 grid steps so both v7x TensorCores get work."""
    best = 1
    for bb in range(1, num_groups + 1):
        if num_groups % bb == 0 and bb * rows_per_group <= target_rows:
            best = bb
    if best == num_groups and num_groups >= 2:
        for bb in range(num_groups - 1, 0, -1):
            if num_groups % bb == 0:
                best = bb
                break
    return best


# ----------------------------------------------------------------------------
# Wrapper: builds the small fused bias tensor and launches the Pallas kernel.
# ----------------------------------------------------------------------------
def window_attention(x, params, window_size, num_heads, mask=None, qk_scale=None,
                     compute_dtype=jnp.bfloat16, approx_softmax=True,
                     target_rows=1024):
    B_, N, C = x.shape
    out_dtype = x.dtype
    head_dim = C // num_heads
    scale = float(qk_scale) if qk_scale is not None else float(head_dim ** (-0.5))

    # relative position bias: (nH, N, N), f32
    rel_index = make_relative_position_index(window_size)                 # (N, N)
    relb = params["rpb_table"][rel_index.reshape(-1)].reshape(N, N, num_heads)
    relb = jnp.transpose(relb, (2, 0, 1)).astype(jnp.float32)             # (nH, N, N)

    if mask is not None:
        W = int(mask.shape[0])
        mask_arr = mask.astype(jnp.float32)                               # (nW, N, N)
    else:
        W = 1
        mask_arr = jnp.zeros((1, N, N), jnp.float32)
    assert B_ % W == 0, "number of windows must divide B_"
    G = B_ // W                                                           # window groups

    BB = _choose_group_block(G, W * N, target_rows)                       # groups per block
    X = BB * W                                                            # windows per block
    TM = X * N                                                            # token rows per block
    grid = (G // BB,)

    # Fused (rel-pos bias + shift mask), pre-tiled to the block's X windows:
    # bias[h, x] = relb[h] + mask[x % W].  Tiny (<= few MB), constant index map
    # so it stays VMEM-resident across grid steps; each head does ONE 3-D add.
    bias = relb[:, None, :, :] + mask_arr[None, :, :, :]                  # (nH, W, N, N)
    bias = jnp.tile(bias, (1, BB, 1, 1))                                  # (nH, X, N, N)

    # Fold the qk scale into the Q columns of the QKV projection (weights only):
    # (x @ Wq + bq) * s == x @ (Wq*s) + (bq*s).  Removes all in-kernel scaling.
    col_scale = jnp.concatenate(
        [jnp.full((C,), scale, jnp.float32), jnp.ones((2 * C,), jnp.float32)])
    wqkv = (params["w_qkv_t"].astype(jnp.float32) * col_scale[None, :]).astype(compute_dtype)
    bqkv = (params["b_qkv"].astype(jnp.float32) * col_scale).reshape(1, 3 * C)
    wproj = params["w_proj_t"].astype(compute_dtype)                      # (C, C)
    bproj = params["b_proj"].reshape(1, C).astype(jnp.float32)

    # matmul operands in compute dtype; biases / softmax math stay f32 in-kernel
    x2d = x.reshape(B_ * N, C).astype(compute_dtype)

    kernel = functools.partial(
        _window_attention_kernel,
        num_heads=num_heads, head_dim=head_dim, tokens=N,
        compute_dtype=compute_dtype, approx_softmax=approx_softmax,
    )

    itemsize = jnp.dtype(compute_dtype).itemsize
    flops = int(B_) * (2 * N * C * 3 * C + 4 * num_heads * N * N * head_dim
                       + 2 * N * C * C)
    transcendentals = int(B_) * num_heads * N * N
    bytes_accessed = int(
        B_ * N * C * itemsize                           # x
        + B_ * N * C * jnp.dtype(out_dtype).itemsize    # out
        + (wqkv.size + wproj.size) * itemsize           # weights
        + (bqkv.size + bproj.size + bias.size) * 4)     # f32 biases

    out2d = pl.pallas_call(
        kernel,
        out_shape=jax.ShapeDtypeStruct((B_ * N, C), out_dtype),
        grid_spec=pltpu.PrefetchScalarGridSpec(
            num_scalar_prefetch=0,
            grid=grid,
            in_specs=[
                pl.BlockSpec((TM, C), lambda i: (i, 0)),                  # x rows
                pl.BlockSpec((num_heads, X, N, N), lambda i: (0, 0, 0, 0)),  # fused bias
                pl.BlockSpec((C, 3 * C), lambda i: (0, 0)),               # W_qkv^T (q-scaled)
                pl.BlockSpec((1, 3 * C), lambda i: (0, 0)),               # b_qkv  (q-scaled)
                pl.BlockSpec((C, C), lambda i: (0, 0)),                   # W_proj^T
                pl.BlockSpec((1, C), lambda i: (0, 0)),                   # b_proj
            ],
            out_specs=pl.BlockSpec((TM, C), lambda i: (i, 0)),
        ),
        compiler_params=pltpu.CompilerParams(
            dimension_semantics=("parallel",),
            vmem_limit_bytes=32 * 1024 * 1024,
        ),
        cost_estimate=pl.CostEstimate(
            flops=flops, transcendentals=transcendentals,
            bytes_accessed=bytes_accessed),
    )(x2d, bias, wqkv, bqkv, wproj, bproj)

    return out2d.reshape(B_, N, C)


# ----------------------------------------------------------------------------
# Pure-JAX reference (mirrors the PyTorch forward exactly) for verification.
# ----------------------------------------------------------------------------
def window_attention_ref(x, params, window_size, num_heads, mask=None, qk_scale=None):
    B_, N, C = x.shape
    head_dim = C // num_heads
    scale = qk_scale if qk_scale is not None else head_dim ** (-0.5)

    qkv = x @ params["w_qkv_t"] + params["b_qkv"]                         # (B_, N, 3C)
    qkv = qkv.reshape(B_, N, 3, num_heads, head_dim).transpose(2, 0, 3, 1, 4)
    q, k, v = qkv[0], qkv[1], qkv[2]                                      # (B_, nH, N, hd)
    q = q * scale
    attn = jnp.einsum("bhnd,bhmd->bhnm", q, k)

    rel_index = make_relative_position_index(window_size)
    rel_bias = params["rpb_table"][rel_index.reshape(-1)].reshape(N, N, num_heads)
    rel_bias = jnp.transpose(rel_bias, (2, 0, 1))
    attn = attn + rel_bias[None]

    if mask is not None:
        nW = mask.shape[0]
        attn = attn.reshape(B_ // nW, nW, num_heads, N, N) + mask[None, :, None]
        attn = attn.reshape(-1, num_heads, N, N)
    attn = jax.nn.softmax(attn, axis=-1)

    out = jnp.einsum("bhnm,bhmd->bhnd", attn, v)
    out = out.transpose(0, 2, 1, 3).reshape(B_, N, C)
    out = out @ params["w_proj_t"] + params["b_proj"]
    return out


# ----------------------------------------------------------------------------
# Deterministic parameter init (synthetic; shapes match the module's __init__).
# ----------------------------------------------------------------------------
def init_params(key, dim, window_size, num_heads):
    wh, ww = window_size
    k1, k2, k3, k4, k5 = jax.random.split(key, 5)
    n_rel = (2 * wh - 1) * (2 * ww - 1)
    params = {
        # trunc_normal_(std=0.02) approximated with normal*0.02 (deterministic)
        "rpb_table": 0.02 * jax.random.normal(k1, (n_rel, num_heads), jnp.float32),
        # stored pre-transposed: (in_features, out_features)
        "w_qkv_t": 0.05 * jax.random.normal(k2, (dim, 3 * dim), jnp.float32),
        "b_qkv": 0.05 * jax.random.normal(k3, (3 * dim,), jnp.float32),
        "w_proj_t": 0.05 * jax.random.normal(k4, (dim, dim), jnp.float32),
        "b_proj": 0.05 * jax.random.normal(k5, (dim,), jnp.float32),
    }
    return params


if __name__ == "__main__":
    dim = 32
    num_heads = 4
    window_size = (4, 4)
    N = window_size[0] * window_size[1]   # 16 tokens per window
    nW = 4                                # windows per image
    batch = 2
    B_ = batch * nW                       # 8 windows total

    key = jax.random.PRNGKey(0)
    kx, km, kp = jax.random.split(key, 3)

    x = jax.random.normal(kx, (B_, N, dim), jnp.float32)
    params = init_params(kp, dim, window_size, num_heads)

    # Shifted-window style 0 / -100 mask, shape (nW, N, N)
    mask_bits = jax.random.bernoulli(km, 0.2, (nW, N, N))
    mask = jnp.where(mask_bits, -100.0, 0.0).astype(jnp.float32)

    # References (mirror the PyTorch forward)
    ref_masked = window_attention_ref(x, params, window_size, num_heads, mask=mask)
    ref_nomask = window_attention_ref(x, params, window_size, num_heads, mask=None)

    # Exact f32 path (tight check, exact softmax division)
    out_f32_masked = window_attention(x, params, window_size, num_heads, mask=mask,
                                      compute_dtype=jnp.float32, approx_softmax=False)
    out_f32_nomask = window_attention(x, params, window_size, num_heads, mask=None,
                                      compute_dtype=jnp.float32, approx_softmax=False)
    # Fast bf16 path (loose check): bf16 MXU operands, f32 accumulation/softmax,
    # EUP approximate reciprocal for the softmax normalization.
    out_bf16_masked = window_attention(x, params, window_size, num_heads, mask=mask,
                                       compute_dtype=jnp.bfloat16, approx_softmax=True)
    out_bf16_nomask = window_attention(x, params, window_size, num_heads, mask=None,
                                       compute_dtype=jnp.bfloat16, approx_softmax=True)
    jax.block_until_ready((out_f32_masked, out_f32_nomask,
                           out_bf16_masked, out_bf16_nomask))

    np.testing.assert_allclose(np.asarray(out_f32_masked), np.asarray(ref_masked),
                               rtol=1e-4, atol=1e-4)
    np.testing.assert_allclose(np.asarray(out_f32_nomask), np.asarray(ref_nomask),
                               rtol=1e-4, atol=1e-4)
    np.testing.assert_allclose(np.asarray(out_bf16_masked), np.asarray(ref_masked),
                               rtol=3e-2, atol=3e-2)
    np.testing.assert_allclose(np.asarray(out_bf16_nomask), np.asarray(ref_nomask),
                               rtol=3e-2, atol=3e-2)

    print("KERNEL_OK")
</pallas_src>

<mosaic_0001>
module attributes {stable_mosaic.version = 11 : i64} {
  func.func @_window_attention_kernel(%arg0: i32, %arg1: memref<64x32xf32, #tpu.memory_space<vmem>>, %arg2: memref<4x4x16x16xf32, #tpu.memory_space<vmem>>, %arg3: memref<32x96xf32, #tpu.memory_space<vmem>>, %arg4: memref<1x96xf32, #tpu.memory_space<vmem>>, %arg5: memref<32x32xf32, #tpu.memory_space<vmem>>, %arg6: memref<1x32xf32, #tpu.memory_space<vmem>>, %arg7: memref<64x32xf32, #tpu.memory_space<vmem>>) attributes {dimension_semantics = [#tpu.dimension_semantics<parallel>], iteration_bounds = array<i64: 2>, scalar_prefetch = 0 : i64, scratch_operands = 0 : i64, tpu.core_type = #tpu.core_type<tc>, window_params = [{transform_indices = @transform_0, window_bounds = array<i64: 64, 32>}, {pipeline_mode = #tpu.pipeline_mode<synchronous>, transform_indices = @transform_1, window_bounds = array<i64: 4, 4, 16, 16>}, {pipeline_mode = #tpu.pipeline_mode<synchronous>, transform_indices = @transform_2, window_bounds = array<i64: 32, 96>}, {pipeline_mode = #tpu.pipeline_mode<synchronous>, transform_indices = @transform_3, window_bounds = array<i64: 1, 96>}, {pipeline_mode = #tpu.pipeline_mode<synchronous>, transform_indices = @transform_4, window_bounds = array<i64: 32, 32>}, {pipeline_mode = #tpu.pipeline_mode<synchronous>, transform_indices = @transform_5, window_bounds = array<i64: 1, 32>}, {transform_indices = @transform_6, window_bounds = array<i64: 64, 32>}]} {
    %c0 = arith.constant 0 : index
    %c0_0 = arith.constant 0 : index
    %0 = vector.load %arg1[%c0, %c0_0] : memref<64x32xf32, #tpu.memory_space<vmem>>, vector<64x32xf32>
    %c0_1 = arith.constant 0 : index
    %c0_2 = arith.constant 0 : index
    %1 = vector.load %arg3[%c0_1, %c0_2] : memref<32x96xf32, #tpu.memory_space<vmem>>, vector<32x96xf32>
    %cst = arith.constant dense<0.000000e+00> : vector<64x96xf32>
    %2 = tpu.matmul %0, %1, %cst {dimension_numbers = #tpu.dot_dimension_numbers<[1], [0], [0], [1], [0, 0, 1, 1], [], []>} : vector<64x32xf32>, vector<32x96xf32>, vector<64x96xf32> -> vector<64x96xf32>
    %c0_3 = arith.constant 0 : index
    %c0_4 = arith.constant 0 : index
    %3 = vector.load %arg4[%c0_3, %c0_4] : memref<1x96xf32, #tpu.memory_space<vmem>>, vector<1x96xf32>
    %4 = vector.broadcast %3 : vector<1x96xf32> to vector<64x96xf32>
    %5 = arith.addf %2, %4 : vector<64x96xf32>
    %6 = vector.extract_strided_slice %5 {offsets = [0, 0], sizes = [64, 8], strides = [1, 1]} : vector<64x96xf32> to vector<64x8xf32>
    %7 = vector.shape_cast %6 : vector<64x8xf32> to vector<4x16x8xf32>
    %8 = vector.extract_strided_slice %5 {offsets = [0, 32], sizes = [64, 8], strides = [1, 1]} : vector<64x96xf32> to vector<64x8xf32>
    %9 = vector.shape_cast %8 : vector<64x8xf32> to vector<4x16x8xf32>
    %10 = vector.extract_strided_slice %5 {offsets = [0, 64], sizes = [64, 8], strides = [1, 1]} : vector<64x96xf32> to vector<64x8xf32>
    %11 = vector.shape_cast %10 : vector<64x8xf32> to vector<4x16x8xf32>
    "tpu.trace_start"() <{level = 10 : i32, message = "xnd,xmd->xnm"}> : () -> ()
    %cst_5 = arith.constant dense<0.000000e+00> : vector<4x16x16xf32>
    %12 = tpu.matmul %7, %9, %cst_5 {dimension_numbers = #tpu.dot_dimension_numbers<[2], [2], [1], [1], [0, 0, 0, 1, 1, 1], [0], [0]>} : vector<4x16x8xf32>, vector<4x16x8xf32>, vector<4x16x16xf32> -> vector<4x16x16xf32>
    "tpu.trace_stop"() : () -> ()
    %c0_6 = arith.constant 0 : index
    %c0_7 = arith.constant 0 : index
    %c0_8 = arith.constant 0 : index
    %c0_9 = arith.constant 0 : index
    %13 = vector.load %arg2[%c0_6, %c0_7, %c0_8, %c0_9] : memref<4x4x16x16xf32, #tpu.memory_space<vmem>>, vector<1x4x16x16xf32>
    %14 = vector.shape_cast %13 : vector<1x4x16x16xf32> to vector<4x16x16xf32>
    %15 = arith.addf %12, %14 : vector<4x16x16xf32>
    %cst_10 = arith.constant dense<0xFF800000> : vector<4x16xf32>
    %16 = vector.multi_reduction <maximumf>, %15, %cst_10 [2] : vector<4x16x16xf32> to vector<4x16xf32>
    %17 = vector.shape_cast %16 : vector<4x16xf32> to vector<4x16x1xf32>
    %18 = vector.broadcast %17 : vector<4x16x1xf32> to vector<4x16x16xf32>
    %19 = arith.subf %15, %18 : vector<4x16x16xf32>
    %20 = math.exp %19 : vector<4x16x16xf32>
    %cst_11 = arith.constant dense<0.000000e+00> : vector<4x16xf32>
    %21 = vector.multi_reduction <add>, %20, %cst_11 [2] : vector<4x16x16xf32> to vector<4x16xf32>
    %22 = vector.shape_cast %21 : vector<4x16xf32> to vector<4x16x1xf32>
    %23 = vector.broadcast %22 : vector<4x16x1xf32> to vector<4x16x16xf32>
    %24 = arith.divf %20, %23 : vector<4x16x16xf32>
    "tpu.trace_start"() <{level = 10 : i32, message = "xnm,xmd->xnd"}> : () -> ()
    %cst_12 = arith.constant dense<0.000000e+00> : vector<4x16x8xf32>
    %25 = tpu.matmul %24, %11, %cst_12 {dimension_numbers = #tpu.dot_dimension_numbers<[2], [1], [1], [2], [0, 0, 0, 1, 1, 2], [0], [0]>} : vector<4x16x16xf32>, vector<4x16x8xf32>, vector<4x16x8xf32> -> vector<4x16x8xf32>
    "tpu.trace_stop"() : () -> ()
    %26 = vector.extract_strided_slice %5 {offsets = [0, 8], sizes = [64, 8], strides = [1, 1]} : vector<64x96xf32> to vector<64x8xf32>
    %27 = vector.shape_cast %26 : vector<64x8xf32> to vector<4x16x8xf32>
    %28 = vector.extract_strided_slice %5 {offsets = [0, 40], sizes = [64, 8], strides = [1, 1]} : vector<64x96xf32> to vector<64x8xf32>
    %29 = vector.shape_cast %28 : vector<64x8xf32> to vector<4x16x8xf32>
    %30 = vector.extract_strided_slice %5 {offsets = [0, 72], sizes = [64, 8], strides = [1, 1]} : vector<64x96xf32> to vector<64x8xf32>
    %31 = vector.shape_cast %30 : vector<64x8xf32> to vector<4x16x8xf32>
    "tpu.trace_start"() <{level = 10 : i32, message = "xnd,xmd->xnm"}> : () -> ()
    %cst_13 = arith.constant dense<0.000000e+00> : vector<4x16x16xf32>
    %32 = tpu.matmul %27, %29, %cst_13 {dimension_numbers = #tpu.dot_dimension_numbers<[2], [2], [1], [1], [0, 0, 0, 1, 1, 1], [0], [0]>} : vector<4x16x8xf32>, vector<4x16x8xf32>, vector<4x16x16xf32> -> vector<4x16x16xf32>
    "tpu.trace_stop"() : () -> ()
    %c1 = arith.constant 1 : index
    %c0_14 = arith.constant 0 : index
    %c0_15 = arith.constant 0 : index
    %c0_16 = arith.constant 0 : index
    %33 = vector.load %arg2[%c1, %c0_14, %c0_15, %c0_16] : memref<4x4x16x16xf32, #tpu.memory_space<vmem>>, vector<1x4x16x16xf32>
    %34 = vector.shape_cast %33 : vector<1x4x16x16xf32> to vector<4x16x16xf32>
    %35 = arith.addf %32, %34 : vector<4x16x16xf32>
    %cst_17 = arith.constant dense<0xFF800000> : vector<4x16xf32>
    %36 = vector.multi_reduction <maximumf>, %35, %cst_17 [2] : vector<4x16x16xf32> to vector<4x16xf32>
    %37 = vector.shape_cast %36 : vector<4x16xf32> to vector<4x16x1xf32>
    %38 = vector.broadcast %37 : vector<4x16x1xf32> to vector<4x16x16xf32>
    %39 = arith.subf %35, %38 : vector<4x16x16xf32>
    %40 = math.exp %39 : vector<4x16x16xf32>
    %cst_18 = arith.constant dense<0.000000e+00> : vector<4x16xf32>
    %41 = vector.multi_reduction <add>, %40, %cst_18 [2] : vector<4x16x16xf32> to vector<4x16xf32>
    %42 = vector.shape_cast %41 : vector<4x16xf32> to vector<4x16x1xf32>
    %43 = vector.broadcast %42 : vector<4x16x1xf32> to vector<4x16x16xf32>
    %44 = arith.divf %40, %43 : vector<4x16x16xf32>
    "tpu.trace_start"() <{level = 10 : i32, message = "xnm,xmd->xnd"}> : () -> ()
    %cst_19 = arith.constant dense<0.000000e+00> : vector<4x16x8xf32>
    %45 = tpu.matmul %44, %31, %cst_19 {dimension_numbers = #tpu.dot_dimension_numbers<[2], [1], [1], [2], [0, 0, 0, 1, 1, 2], [0], [0]>} : vector<4x16x16xf32>, vector<4x16x8xf32>, vector<4x16x8xf32> -> vector<4x16x8xf32>
    "tpu.trace_stop"() : () -> ()
    %46 = vector.extract_strided_slice %5 {offsets = [0, 16], sizes = [64, 8], strides = [1, 1]} : vector<64x96xf32> to vector<64x8xf32>
    %47 = vector.shape_cast %46 : vector<64x8xf32> to vector<4x16x8xf32>
    %48 = vector.extract_strided_slice %5 {offsets = [0, 48], sizes = [64, 8], strides = [1, 1]} : vector<64x96xf32> to vector<64x8xf32>
    %49 = vector.shape_cast %48 : vector<64x8xf32> to vector<4x16x8xf32>
    %50 = vector.extract_strided_slice %5 {offsets = [0, 80], sizes = [64, 8], strides = [1, 1]} : vector<64x96xf32> to vector<64x8xf32>
    %51 = vector.shape_cast %50 : vector<64x8xf32> to vector<4x16x8xf32>
    "tpu.trace_start"() <{level = 10 : i32, message = "xnd,xmd->xnm"}> : () -> ()
    %cst_20 = arith.constant dense<0.000000e+00> : vector<4x16x16xf32>
    %52 = tpu.matmul %47, %49, %cst_20 {dimension_numbers = #tpu.dot_dimension_numbers<[2], [2], [1], [1], [0, 0, 0, 1, 1, 1], [0], [0]>} : vector<4x16x8xf32>, vector<4x16x8xf32>, vector<4x16x16xf32> -> vector<4x16x16xf32>
    "tpu.trace_stop"() : () -> ()
    %c2 = arith.constant 2 : index
    %c0_21 = arith.constant 0 : index
    %c0_22 = arith.constant 0 : index
    %c0_23 = arith.constant 0 : index
    %53 = vector.load %arg2[%c2, %c0_21, %c0_22, %c0_23] : memref<4x4x16x16xf32, #tpu.memory_space<vmem>>, vector<1x4x16x16xf32>
    %54 = vector.shape_cast %53 : vector<1x4x16x16xf32> to vector<4x16x16xf32>
    %55 = arith.addf %52, %54 : vector<4x16x16xf32>
    %cst_24 = arith.constant dense<0xFF800000> : vector<4x16xf32>
    %56 = vector.multi_reduction <maximumf>, %55, %cst_24 [2] : vector<4x16x16xf32> to vector<4x16xf32>
    %57 = vector.shape_cast %56 : vector<4x16xf32> to vector<4x16x1xf32>
    %58 = vector.broadcast %57 : vector<4x16x1xf32> to vector<4x16x16xf32>
    %59 = arith.subf %55, %58 : vector<4x16x16xf32>
    %60 = math.exp %59 : vector<4x16x16xf32>
    %cst_25 = arith.constant dense<0.000000e+00> : vector<4x16xf32>
    %61 = vector.multi_reduction <add>, %60, %cst_25 [2] : vector<4x16x16xf32> to vector<4x16xf32>
    %62 = vector.shape_cast %61 : vector<4x16xf32> to vector<4x16x1xf32>
    %63 = vector.broadcast %62 : vector<4x16x1xf32> to vector<4x16x16xf32>
    %64 = arith.divf %60, %63 : vector<4x16x16xf32>
    "tpu.trace_start"() <{level = 10 : i32, message = "xnm,xmd->xnd"}> : () -> ()
    %cst_26 = arith.constant dense<0.000000e+00> : vector<4x16x8xf32>
    %65 = tpu.matmul %64, %51, %cst_26 {dimension_numbers = #tpu.dot_dimension_numbers<[2], [1], [1], [2], [0, 0, 0, 1, 1, 2], [0], [0]>} : vector<4x16x16xf32>, vector<4x16x8xf32>, vector<4x16x8xf32> -> vector<4x16x8xf32>
    "tpu.trace_stop"() : () -> ()
    %66 = vector.extract_strided_slice %5 {offsets = [0, 24], sizes = [64, 8], strides = [1, 1]} : vector<64x96xf32> to vector<64x8xf32>
    %67 = vector.shape_cast %66 : vector<64x8xf32> to vector<4x16x8xf32>
    %68 = vector.extract_strided_slice %5 {offsets = [0, 56], sizes = [64, 8], strides = [1, 1]} : vector<64x96xf32> to vector<64x8xf32>
    %69 = vector.shape_cast %68 : vector<64x8xf32> to vector<4x16x8xf32>
    %70 = vector.extract_strided_slice %5 {offsets = [0, 88], sizes = [64, 8], strides = [1, 1]} : vector<64x96xf32> to vector<64x8xf32>
    %71 = vector.shape_cast %70 : vector<64x8xf32> to vector<4x16x8xf32>
    "tpu.trace_start"() <{level = 10 : i32, message = "xnd,xmd->xnm"}> : () -> ()
    %cst_27 = arith.constant dense<0.000000e+00> : vector<4x16x16xf32>
    %72 = tpu.matmul %67, %69, %cst_27 {dimension_numbers = #tpu.dot_dimension_numbers<[2], [2], [1], [1], [0, 0, 0, 1, 1, 1], [0], [0]>} : vector<4x16x8xf32>, vector<4x16x8xf32>, vector<4x16x16xf32> -> vector<4x16x16xf32>
    "tpu.trace_stop"() : () -> ()
    %c3 = arith.constant 3 : index
    %c0_28 = arith.constant 0 : index
    %c0_29 = arith.constant 0 : index
    %c0_30 = arith.constant 0 : index
    %73 = vector.load %arg2[%c3, %c0_28, %c0_29, %c0_30] : memref<4x4x16x16xf32, #tpu.memory_space<vmem>>, vector<1x4x16x16xf32>
    %74 = vector.shape_cast %73 : vector<1x4x16x16xf32> to vector<4x16x16xf32>
    %75 = arith.addf %72, %74 : vector<4x16x16xf32>
    %cst_31 = arith.constant dense<0xFF800000> : vector<4x16xf32>
    %76 = vector.multi_reduction <maximumf>, %75, %cst_31 [2] : vector<4x16x16xf32> to vector<4x16xf32>
    %77 = vector.shape_cast %76 : vector<4x16xf32> to vector<4x16x1xf32>
    %78 = vector.broadcast %77 : vector<4x16x1xf32> to vector<4x16x16xf32>
    %79 = arith.subf %75, %78 : vector<4x16x16xf32>
    %80 = math.exp %79 : vector<4x16x16xf32>
    %cst_32 = arith.constant dense<0.000000e+00> : vector<4x16xf32>
    %81 = vector.multi_reduction <add>, %80, %cst_32 [2] : vector<4x16x16xf32> to vector<4x16xf32>
    %82 = vector.shape_cast %81 : vector<4x16xf32> to vector<4x16x1xf32>
    %83 = vector.broadcast %82 : vector<4x16x1xf32> to vector<4x16x16xf32>
    %84 = arith.divf %80, %83 : vector<4x16x16xf32>
    "tpu.trace_start"() <{level = 10 : i32, message = "xnm,xmd->xnd"}> : () -> ()
    %cst_33 = arith.constant dense<0.000000e+00> : vector<4x16x8xf32>
    %85 = tpu.matmul %84, %71, %cst_33 {dimension_numbers = #tpu.dot_dimension_numbers<[2], [1], [1], [2], [0, 0, 0, 1, 1, 2], [0], [0]>} : vector<4x16x16xf32>, vector<4x16x8xf32>, vector<4x16x8xf32> -> vector<4x16x8xf32>
    "tpu.trace_stop"() : () -> ()
    %86 = tpu.concatenate %25, %45, %65, %85 in 2 : vector<4x16x8xf32>, vector<4x16x8xf32>, vector<4x16x8xf32>, vector<4x16x8xf32> -> vector<4x16x32xf32>
    %87 = vector.shape_cast %86 : vector<4x16x32xf32> to vector<64x32xf32>
    %c0_34 = arith.constant 0 : index
    %c0_35 = arith.constant 0 : index
    %88 = vector.load %arg5[%c0_34, %c0_35] : memref<32x32xf32, #tpu.memory_space<vmem>>, vector<32x32xf32>
    %cst_36 = arith.constant dense<0.000000e+00> : vector<64x32xf32>
    %89 = tpu.matmul %87, %88, %cst_36 {dimension_numbers = #tpu.dot_dimension_numbers<[1], [0], [0], [1], [0, 0, 1, 1], [], []>} : vector<64x32xf32>, vector<32x32xf32>, vector<64x32xf32> -> vector<64x32xf32>
    %c0_37 = arith.constant 0 : index
    %c0_38 = arith.constant 0 : index
    %90 = vector.load %arg6[%c0_37, %c0_38] : memref<1x32xf32, #tpu.memory_space<vmem>>, vector<1x32xf32>
    %91 = vector.broadcast %90 : vector<1x32xf32> to vector<64x32xf32>
    %92 = arith.addf %89, %91 : vector<64x32xf32>
    %c0_39 = arith.constant 0 : index
    %c0_40 = arith.constant 0 : index
    %93 = vector.load %arg7[%c0_39, %c0_40] : memref<64x32xf32, #tpu.memory_space<vmem>>, vector<64x32xf32>
    tpu.vector_store %arg7[%c0_39, %c0_40], %92 {strides = array<i32>} : memref<64x32xf32, #tpu.memory_space<vmem>>, vector<64x32xf32>,
    return
  }
  func.func @transform_0(%arg0: i32) -> (i32, i32) {
    %c0_i32 = arith.constant 0 : i32
    %c0_i32_0 = arith.constant 0 : i32
    return %arg0, %c0_i32 : i32, i32
  }
  func.func @transform_1(%arg0: i32) -> (i32, i32, i32, i32) {
    %c0_i32 = arith.constant 0 : i32
    %c0_i32_0 = arith.constant 0 : i32
    %c0_i32_1 = arith.constant 0 : i32
    %c0_i32_2 = arith.constant 0 : i32
    %c0_i32_3 = arith.constant 0 : i32
    return %c0_i32, %c0_i32_0, %c0_i32_1, %c0_i32_2 : i32, i32, i32, i32
  }
  func.func @transform_2(%arg0: i32) -> (i32, i32) {
    %c0_i32 = arith.constant 0 : i32
    %c0_i32_0 = arith.constant 0 : i32
    %c0_i32_1 = arith.constant 0 : i32
    return %c0_i32, %c0_i32_0 : i32, i32
  }
  func.func @transform_3(%arg0: i32) -> (i32, i32) {
    %c0_i32 = arith.constant 0 : i32
    %c0_i32_0 = arith.constant 0 : i32
    %c0_i32_1 = arith.constant 0 : i32
    return %c0_i32, %c0_i32_0 : i32, i32
  }
  func.func @transform_4(%arg0: i32) -> (i32, i32) {
    %c0_i32 = arith.constant 0 : i32
    %c0_i32_0 = arith.constant 0 : i32
    %c0_i32_1 = arith.constant 0 : i32
    return %c0_i32, %c0_i32_0 : i32, i32
  }
  func.func @transform_5(%arg0: i32) -> (i32, i32) {
    %c0_i32 = arith.constant 0 : i32
    %c0_i32_0 = arith.constant 0 : i32
    %c0_i32_1 = arith.constant 0 : i32
    return %c0_i32, %c0_i32_0 : i32, i32
  }
  func.func @transform_6(%arg0: i32) -> (i32, i32) {
    %c0_i32 = arith.constant 0 : i32
    %c0_i32_0 = arith.constant 0 : i32
    return %arg0, %c0_i32 : i32, i32
  }
}

</mosaic_0001>

<llo_original>
// kernel: tpu_custom_call.1
$region0: #{tpu_custom_call.1}
  #allocation0 [shape = 'u32[]', space=smem, size = 0x4, offset = 0x4, fixed_abs, tag = 'smem constant byte address 0x4 - core index']
  #allocation1 [shape = 'u32[144,128]{1,0:T(1,128)}', space=vmem, size = 0x12000, scoped, tag = 'internal scratch']
  %s0 = inlined_call_operand.vmem [shape: f32[128,32], index: 0, kind: input, shape index: {}]
  %s1 = inlined_call_operand.hbm [shape: f32[4,4,16,16], index: 1, kind: input, shape index: {}]
  %s2 = inlined_call_operand.vmem [shape: f32[32,96], index: 2, kind: input, shape index: {}]
  %s3 = inlined_call_operand.vmem [shape: f32[1,96], index: 3, kind: input, shape index: {}]
  %s4 = inlined_call_operand.vmem [shape: f32[32,32], index: 4, kind: input, shape index: {}]
  %s5 = inlined_call_operand.vmem [shape: f32[1,32], index: 5, kind: input, shape index: {}]
  %s6 = inlined_call_operand.vmem [shape: f32[128,32], index: 6, kind: output, shape index: {}]
  %s7 = sld [smem:[#allocation0]]
  $region61: #{tpu_custom_call.1} parent=0
    _
  %s9 = ssub.s32 1, %s7
  %s10 = scalar_select 0, %s9, %s7
  $region1: #{tpu_custom_call.1} parent=0
    #allocation2 [shape = 'u8[131072]{0}', space=vmem, size = 0x20000, scoped, tag = 'input window, operand 1, single buffered']
    #allocation3 [shape = 's32[2]{0}', space=sflag, size = 0x8, scoped, tag = 'scoped memory for tpu_custom_call.1']
    %11 = vsyncpa [#allocation3], 0
    loop: start=0, step=1, limit=4
    $region2: #{tpu_custom_call.1} parent=1 // loop_pre_header
      _
    $region3: #{tpu_custom_call.1} parent=1 // loop_header
      %s13 = sphi 0, %s17
      %p14 = scmp.ge.s32.totalorder %s13, 4
      %s23 = sphi 0, %s25
      %s26 = sphi 0, %s23
      %s27 = sphi 0, %s26
      %s43 = sphi 0, %s27
      %s47 = sphi 0, %s47
      %s49 = sphi 0, %s47
      %s50 = sphi 0, %s49
      %s64 = sphi 0, %s50
      %s68 = sphi 0, %s68
      %s70 = sphi 0, %s68
      %s71 = sphi 0, %s70
      %s85 = sphi 0, %s71
      %s89 = sphi 0, %s89
      %s91 = sphi 0, %s89
      %s92 = sphi 0, %s91
      %s106 = sphi 0, %s92
      %s110 = sphi 0, %s110
      %s112 = sphi 0, %s110
      %s113 = sphi 0, %s112
      %s127 = sphi 0, %s113
      %s131 = sphi 0, %s131
      %s133 = sphi 0, %s131
      %s134 = sphi 0, %s133
      %s148 = sphi 0, %s134
      %s154 = sphi 0, %s156
      %s157 = sphi 0, %s154
      %s158 = sphi 0, %s157
      %s174 = sphi 0, %s158
    $region4: #{tpu_custom_call.1} parent=1 // loop_header_branch
      %16 = sbr.rel (%p14) target = $region8
    $region5: #{tpu_custom_call.1} parent=1 // loop_body
      %s18 = ssub.s32 %s13, 1
      %s19 = ssub.s32 %s13, 2
      %s20 = sadd.s32 %s13, 1
      %s21 = ssub.s32 %s13, %s20
      %p22 = scmp.eq.s32.totalorder %s21, 0
      %s24 = sadd.s32 %s23, 1
      %s25 = scalar_select %p22, %s23, %s24
      %p28 = pneg %p22
      %p29 = scmp.eq.s32.totalorder %s13, 1
      %p30 = por %p28, %p29
      %p31 = scmp.ne.s32.totalorder %s23, %s26
      %p32 = scmp.eq.s32.totalorder %s13, 0
      %p33 = por %p31, %p32
      %p34 = scmp.ne.s32.totalorder %s23, %s26
      %p35 = scmp.eq.s32.totalorder %s18, 1
      %p36 = por %p34, %p35
      %p37 = scmp.ne.s32.totalorder %s26, %s27
      %p38 = scmp.eq.s32.totalorder %s18, 0
      %p39 = por %p37, %p38
      %p40 = scmp.ne.s32.totalorder %s26, %s27
      %p41 = scmp.eq.s32.totalorder %s19, 1
      %p42 = por %p40, %p41
      %p44 = scmp.ne.s32.totalorder %s27, %s43
      %p45 = scmp.eq.s32.totalorder %s19, 0
      %p46 = por %p44, %p45
      %s48 = sadd.s32 %s47, 1
      %p51 = scmp.eq.s32.totalorder %s13, 1
      %p52 = scmp.ne.s32.totalorder %s47, %s49
      %p53 = scmp.eq.s32.totalorder %s13, 0
      %p54 = por %p52, %p53
      %p55 = scmp.ne.s32.totalorder %s47, %s49
      %p56 = scmp.eq.s32.totalorder %s18, 1
      %p57 = por %p55, %p56
      %p58 = scmp.ne.s32.totalorder %s49, %s50
      %p59 = scmp.eq.s32.totalorder %s18, 0
      %p60 = por %p58, %p59
      %p61 = scmp.ne.s32.totalorder %s49, %s50
      %p62 = scmp.eq.s32.totalorder %s19, 1
      %p63 = por %p61, %p62
      %p65 = scmp.ne.s32.totalorder %s50, %s64
      %p66 = scmp.eq.s32.totalorder %s19, 0
      %p67 = por %p65, %p66
      %s69 = sadd.s32 %s68, 1
      %p72 = scmp.eq.s32.totalorder %s13, 1
      %p73 = scmp.ne.s32.totalorder %s68, %s70
      %p74 = scmp.eq.s32.totalorder %s13, 0
      %p75 = por %p73, %p74
      %p76 = scmp.ne.s32.totalorder %s68, %s70
      %p77 = scmp.eq.s32.totalorder %s18, 1
      %p78 = por %p76, %p77
      %p79 = scmp.ne.s32.totalorder %s70, %s71
      %p80 = scmp.eq.s32.totalorder %s18, 0
      %p81 = por %p79, %p80
      %p82 = scmp.ne.s32.totalorder %s70, %s71
      %p83 = scmp.eq.s32.totalorder %s19, 1
      %p84 = por %p82, %p83
      %p86 = scmp.ne.s32.totalorder %s71, %s85
      %p87 = scmp.eq.s32.totalorder %s19, 0
      %p88 = por %p86, %p87
      %s90 = sadd.s32 %s89, 1
      %p93 = scmp.eq.s32.totalorder %s13, 1
      %p94 = scmp.ne.s32.totalorder %s89, %s91
      %p95 = scmp.eq.s32.totalorder %s13, 0
      %p96 = por %p94, %p95
      %p97 = scmp.ne.s32.totalorder %s89, %s91
      %p98 = scmp.eq.s32.totalorder %s18, 1
      %p99 = por %p97, %p98
      %p100 = scmp.ne.s32.totalorder %s91, %s92
      %p101 = scmp.eq.s32.totalorder %s18, 0
      %p102 = por %p100, %p101
      %p103 = scmp.ne.s32.totalorder %s91, %s92
      %p104 = scmp.eq.s32.totalorder %s19, 1
      %p105 = por %p103, %p104
      %p107 = scmp.ne.s32.totalorder %s92, %s106
      %p108 = scmp.eq.s32.totalorder %s19, 0
      %p109 = por %p107, %p108
      %s111 = sadd.s32 %s110, 1
      %p114 = scmp.eq.s32.totalorder %s13, 1
      %p115 = scmp.ne.s32.totalorder %s110, %s112
      %p116 = scmp.eq.s32.totalorder %s13, 0
      %p117 = por %p115, %p116
      %p118 = scmp.ne.s32.totalorder %s110, %s112
      %p119 = scmp.eq.s32.totalorder %s18, 1
      %p120 = por %p118, %p119
      %p121 = scmp.ne.s32.totalorder %s112, %s113
      %p122 = scmp.eq.s32.totalorder %s18, 0
      %p123 = por %p121, %p122
      %p124 = scmp.ne.s32.totalorder %s112, %s113
      %p125 = scmp.eq.s32.totalorder %s19, 1
      %p126 = por %p124, %p125
      %p128 = scmp.ne.s32.totalorder %s113, %s127
      %p129 = scmp.eq.s32.totalorder %s19, 0
      %p130 = por %p128, %p129
      %s132 = sadd.s32 %s131, 1
      %p135 = scmp.eq.s32.totalorder %s13, 1
      %p136 = scmp.ne.s32.totalorder %s131, %s133
      %p137 = scmp.eq.s32.totalorder %s13, 0
      %p138 = por %p136, %p137
      %p139 = scmp.ne.s32.totalorder %s131, %s133
      %p140 = scmp.eq.s32.totalorder %s18, 1
      %p141 = por %p139, %p140
      %p142 = scmp.ne.s32.totalorder %s133, %s134
      %p143 = scmp.eq.s32.totalorder %s18, 0
      %p144 = por %p142, %p143
      %p145 = scmp.ne.s32.totalorder %s133, %s134
      %p146 = scmp.eq.s32.totalorder %s19, 1
      %p147 = por %p145, %p146
      %p149 = scmp.ne.s32.totalorder %s134, %s148
      %p150 = scmp.eq.s32.totalorder %s19, 0
      %p151 = por %p149, %p150
      %s152 = ssub.s32 %s13, %s20
      %p153 = scmp.eq.s32.totalorder %s152, 0
      %s155 = sadd.s32 %s154, 1
      %s156 = scalar_select %p153, %s154, %s155
      %p159 = pneg %p153
      %p160 = scmp.eq.s32.totalorder %s13, 1
      %p161 = por %p159, %p160
      %p162 = scmp.ne.s32.totalorder %s154, %s157
      %p163 = scmp.eq.s32.totalorder %s13, 0
      %p164 = por %p162, %p163
      %p165 = scmp.ne.s32.totalorder %s154, %s157
      %p166 = scmp.eq.s32.totalorder %s18, 1
      %p167 = por %p165, %p166
      %p168 = scmp.ne.s32.totalorder %s157, %s158
      %p169 = scmp.eq.s32.totalorder %s18, 0
      %p170 = por %p168, %p169
      %p171 = scmp.ne.s32.totalorder %s157, %s158
      %p172 = scmp.eq.s32.totalorder %s19, 1
      %p173 = por %p171, %p172
      %p175 = scmp.ne.s32.totalorder %s158, %s174
      %p176 = scmp.eq.s32.totalorder %s19, 0
      %p177 = por %p175, %p176
      %p178 = scmp.le.s32.totalorder 1, %s13
      %p179 = scmp.lt.s32.totalorder %s13, 3
      %p180 = pnand %p178, %p179
      %p181 = pneg %p180
      // Predicated region
      $region9: #{tpu_custom_call.1} parent=5 // pred_check
        _
      $region10: #{tpu_custom_call.1} parent=5 // pred_check_branch
        %183 = sbr.rel (%p180) target = $region12
      $region11: #{tpu_custom_call.1} parent=5 // pred_region
        %s184 = ssub.s32 %s13, 1
        // Predicated region
        $region13: #{tpu_custom_call.1} parent=11 // pred_check
          %p185 = pneg %p60
        $region14: #{tpu_custom_call.1} parent=11 // pred_check_branch
          %187 = sbr.rel (%p185) target = $region16
        $region15: #{tpu_custom_call.1} parent=11 // pred_region
          %s189 = ssub.s32 4096, 4096
          %190 = vsyncadd [#allocation3], %s189
          %s191 = sshll.u32 [#allocation2], 4
          %s192 = int_to_ptr.vmem [resolvable:$true] %s191
          %197 = dma.hbm_to_vmem [thread:$0]  %s1, 4096, %s192, [#allocation3], 128, 128, 8
        $region16: #{tpu_custom_call.1} parent=11 // pred_fallthru
          _
        // Predicated region
        $region17: #{tpu_custom_call.1} parent=11 // pred_check
          %p198 = pneg %p81
        $region18: #{tpu_custom_call.1} parent=11 // pred_check_branch
          %200 = sbr.rel (%p198) target = $region20
        $region19: #{tpu_custom_call.1} parent=11 // pred_region
          _
        $region20: #{tpu_custom_call.1} parent=11 // pred_fallthru
          _
        // Predicated region
        $region21: #{tpu_custom_call.1} parent=11 // pred_check
          %p201 = pneg %p102
        $region22: #{tpu_custom_call.1} parent=11 // pred_check_branch
          %203 = sbr.rel (%p201) target = $region24
        $region23: #{tpu_custom_call.1} parent=11 // pred_region
          _
        $region24: #{tpu_custom_call.1} parent=11 // pred_fallthru
          _
        // Predicated region
        $region25: #{tpu_custom_call.1} parent=11 // pred_check
          %p204 = pneg %p123
        $region26: #{tpu_custom_call.1} parent=11 // pred_check_branch
          %206 = sbr.rel (%p204) target = $region28
        $region27: #{tpu_custom_call.1} parent=11 // pred_region
          _
        $region28: #{tpu_custom_call.1} parent=11 // pred_fallthru
          _
        // Predicated region
        $region29: #{tpu_custom_call.1} parent=11 // pred_check
          %p207 = pneg %p144
        $region30: #{tpu_custom_call.1} parent=11 // pred_check_branch
          %209 = sbr.rel (%p207) target = $region32
        $region31: #{tpu_custom_call.1} parent=11 // pred_region
          _
        $region32: #{tpu_custom_call.1} parent=11 // pred_fallthru
          _
      $region12: #{tpu_custom_call.1} parent=5 // pred_fallthru
        _
      %p210 = scmp.lt.s32.totalorder %s13, 2
      // Predicated region
      $region33: #{tpu_custom_call.1} parent=5 // pred_check
        %p211 = pneg %p210
      $region34: #{tpu_custom_call.1} parent=5 // pred_check_branch
        %213 = sbr.rel (%p211) target = $region36
      $region35: #{tpu_custom_call.1} parent=5 // pred_region
        // Predicated region
        $region37: #{tpu_custom_call.1} parent=35 // pred_check
          %p214 = pneg %p33
        $region38: #{tpu_custom_call.1} parent=35 // pred_check_branch
          %216 = sbr.rel (%p214) target = $region40
        $region39: #{tpu_custom_call.1} parent=35 // pred_region
          %s217 = smul.u32 8, %s13
          %p218 = scmp.lt.s32.totalorder %s217, 15
          %s219 = scalar_select %p218, %s217, 15
          %s220 = smul.addr %s219, 8
          %s221 = scalar_lea.vmem %s0, %s220
          %s222 = smul.u32 8, %s13
        $region40: #{tpu_custom_call.1} parent=35 // pred_fallthru
          _
      $region36: #{tpu_custom_call.1} parent=5 // pred_fallthru
        _
      %p223 = scmp.le.s32.totalorder 1, %s13
      %p224 = scmp.lt.s32.totalorder %s13, 3
      %p225 = pnand %p223, %p224
      %p226 = pneg %p225
      // Predicated region
      $region41: #{tpu_custom_call.1} parent=5 // pred_check
        _
      $region42: #{tpu_custom_call.1} parent=5 // pred_check_branch
        %228 = sbr.rel (%p225) target = $region44
      $region43: #{tpu_custom_call.1} parent=5 // pred_region
        %s229 = ssub.s32 %s13, 1
        // Predicated region
        $region45: #{tpu_custom_call.1} parent=43 // pred_check
          %p230 = pneg %p60
        $region46: #{tpu_custom_call.1} parent=43 // pred_check_branch
          %232 = sbr.rel (%p230) target = $region48
        $region47: #{tpu_custom_call.1} parent=43 // pred_region
          %233 = dma.done [#allocation3], 4096
        $region48: #{tpu_custom_call.1} parent=43 // pred_fallthru
          _
        %s234 = smul.u32 8, %s18
        %p235 = scmp.lt.s32.totalorder %s234, 15
        %s236 = scalar_select %p235, %s234, 15
        %s237 = smul.addr %s236, 8
        %s238 = scalar_lea.vmem %s0, %s237
        %p239 = pneg %p39
        %p240 = pneg %p36
        %p241 = pneg %p60
        %p242 = pneg %p57
        %p243 = pneg %p81
        %p244 = pneg %p78
        %p245 = pneg %p102
        %p246 = pneg %p99
        %p247 = pneg %p123
        %p248 = pneg %p120
        %p249 = pneg %p144
        %p250 = pneg %p141
        %p251 = pneg %p170
        %p252 = pneg %p167
        %s253 = smul.u32 8, %s18
        %p254 = scmp.lt.s32.totalorder %s253, 15
        %s255 = scalar_select %p254, %s253, 15
        %s256 = smul.addr %s255, 8
        %s257 = scalar_lea.vmem %s6, %s256
        %s258 = smul.u32 8, %s18
        %p259 = scmp.lt.s32.totalorder %s258, 15
        %s260 = scalar_select %p259, %s258, 15
        %s261 = smul.addr %s260, 8
        %s262 = scalar_lea.vmem %s0, %s261
        %s263 = smul.u32 8, %s18
        %s264 = smul.u32 8, %s18
        %p265 = scmp.lt.s32.totalorder %s264, 15
        %s266 = scalar_select %p265, %s264, 15
        %s267 = smul.addr %s266, 8
        %s268 = scalar_lea.vmem %s6, %s267
        %s269 = smul.u32 8, %s18
        %v270 = vld [vmem:[%s262] sm:$0xff]
        %v271 = vld [vmem:[%s262 + $0x8] sm:$0xff]
        %v272 = vld [vmem:[%s262 + $0x10] sm:$0xff]
        %v273 = vld [vmem:[%s262 + $0x18] sm:$0xff]
        %v274 = vld [vmem:[%s262 + $0x20] sm:$0xff]
        %v275 = vld [vmem:[%s262 + $0x28] sm:$0xff]
        %v276 = vld [vmem:[%s262 + $0x30] sm:$0xff]
        %v277 = vld [vmem:[%s262 + $0x38] sm:$0xff]
        %v278 = vld [vmem:[%s2] sm:$0xff]
        %v279 = vld [vmem:[%s2 + $0x8] sm:$0xff]
        %v280 = vld [vmem:[%s2 + $0x10] sm:$0xff]
        %v281 = vld [vmem:[%s2 + $0x18] sm:$0xff]
        %v282 = vld [vmem:[%s3] sm:$0x1]
        %v284 = vlaneseq
        %v285 = vshrl.u32 %v284, 7
        %v286 = vsub.s32 0, %v285
        %v287 = vrot.slane %v282, %v286
        %vm289 = vcmask 261120
        %v291 = vsel %vm289, %v270, 0
        %v294 = vsel %vm289, %v271, 0
        %v297 = vsel %vm289, %v272, 0
        %v300 = vsel %vm289, %v273, 0
        %v303 = vsel %vm289, %v274, 0
        %v306 = vsel %vm289, %v275, 0
        %v309 = vsel %vm289, %v276, 0
        %v312 = vsel %vm289, %v277, 0
        %314 = vmatprep.subr.mxu0 0.0
        %315 = vmatpush1.msra.mxu0 0.0
        %316 = vmatprep.subr.mxu0 0.0
        %317 = vmatpush1.msra.mxu0 0.0
        %318 = vmatprep.subr.mxu0 0.0
        %319 = vmatpush1.msra.mxu0 0.0
        %320 = vmatprep.subr.mxu0 0.0
        %321 = vmatpush1.msra.mxu0 0.0
        %322 = vmatprep.subr.mxu0 0.0
        %323 = vmatpush1.msra.mxu0 0.0
        %324 = vmatprep.subr.mxu0 0.0
        %325 = vmatpush1.msra.mxu0 0.0
        %326 = vmatprep.subr.mxu0 0.0
        %327 = vmatpush1.msra.mxu0 0.0
        %328 = vmatprep.subr.mxu0 0.0
        %329 = vmatpush1.msra.mxu0 0.0
        %330 = vmatprep.subr.mxu0 0.0
        %331 = vmatpush1.msra.mxu0 0.0
        %332 = vmatprep.subr.mxu0 0.0
        %333 = vmatpush1.msra.mxu0 0.0
        %334 = vmatprep.subr.mxu0 0.0
        %335 = vmatpush1.msra.mxu0 0.0
        %336 = vmatprep.subr.mxu0 0.0
        %337 = vmatpush1.msra.mxu0 0.0
        %338 = vmatprep.subr.mxu0 0.0
        %339 = vmatpush1.msra.mxu0 %v281
        %340 = vmatprep.subr.mxu0 0.0
        %341 = vmatpush1.msra.mxu0 %v280
        %342 = vmatprep.subr.mxu0 0.0
        %343 = vmatpush1.msra.mxu0 %v279
        %344 = vmatprep.subr.mxu0 0.0
        %345 = vmatpush1.msra.mxu0 %v278
        %346 = vmatprep.subr.mxu0 0.0
        %347 = vmatpush2.msra.mxu0 0.0
        %348 = vmatprep.subr.mxu0 0.0
        %349 = vmatpush2.msra.mxu0 0.0
        %350 = vmatprep.subr.mxu0 0.0
        %351 = vmatpush2.msra.mxu0 0.0
        %352 = vmatprep.subr.mxu0 0.0
        %353 = vmatpush2.msra.mxu0 0.0
        %354 = vmatprep.subr.mxu0 0.0
        %355 = vmatpush2.msra.mxu0 0.0
        %356 = vmatprep.subr.mxu0 0.0
        %357 = vmatpush2.msra.mxu0 0.0
        %358 = vmatprep.subr.mxu0 0.0
        %359 = vmatpush2.msra.mxu0 0.0
        %360 = vmatprep.subr.mxu0 0.0
        %361 = vmatpush2.msra.mxu0 0.0
        %362 = vmatprep.subr.mxu0 0.0
        %363 = vmatpush2.msra.mxu0 0.0
        %364 = vmatprep.subr.mxu0 0.0
        %365 = vmatpush2.msra.mxu0 0.0
        %366 = vmatprep.subr.mxu0 0.0
        %367 = vmatpush2.msra.mxu0 0.0
        %368 = vmatprep.subr.mxu0 0.0
        %369 = vmatpush2.msra.mxu0 0.0
        %370 = vmatprep.subr.mxu0 0.0
        %371 = vmatpush2.msra.mxu0 0.0
        %372 = vmatprep.subr.mxu0 0.0
        %373 = vmatpush2.msra.mxu0 0.0
        %374 = vmatprep.subr.mxu0 0.0
        %375 = vmatpush2.msra.mxu0 0.0
        %376 = vmatprep.subr.mxu0 0.0
        %377 = vmatpush2.msra.mxu0 0.0
        %378 = vmatprep.mubr.f32.mxu0 0.0
        %379 = vmatmul.mubr.f32.gmra.mxu0 %v291
        %v380 = vpop.f32.mrf.mxu0
        %v381 = vadd.f32 %v287, %v380
        %v382 = vpop.f32.mrf.mxu0
        %383 = vmatprep.mubr.f32.mxu0 0.0
        %384 = vmatmul.mubr.f32.gmra.mxu0 %v294
        %v385 = vpop.f32.mrf.mxu0
        %v386 = vadd.f32 %v287, %v385
        %v387 = vpop.f32.mrf.mxu0
        %388 = vmatprep.mubr.f32.mxu0 0.0
        %389 = vmatmul.mubr.f32.gmra.mxu0 %v297
        %v390 = vpop.f32.mrf.mxu0
        %v391 = vadd.f32 %v287, %v390
        %v392 = vpop.f32.mrf.mxu0
        %393 = vmatprep.mubr.f32.mxu0 0.0
        %394 = vmatmul.mubr.f32.gmra.mxu0 %v300
        %v395 = vpop.f32.mrf.mxu0
        %v396 = vadd.f32 %v287, %v395
        %v397 = vpop.f32.mrf.mxu0
        %398 = vmatprep.mubr.f32.mxu0 0.0
        %399 = vmatmul.mubr.f32.gmra.mxu0 %v303
        %v400 = vpop.f32.mrf.mxu0
        %v401 = vadd.f32 %v287, %v400
        %v402 = vpop.f32.mrf.mxu0
        %403 = vmatprep.mubr.f32.mxu0 0.0
        %404 = vmatmul.mubr.f32.gmra.mxu0 %v306
        %v405 = vpop.f32.mrf.mxu0
        %v406 = vadd.f32 %v287, %v405
        %v407 = vpop.f32.mrf.mxu0
        %408 = vmatprep.mubr.f32.mxu0 0.0
        %409 = vmatmul.mubr.f32.gmra.mxu0 %v309
        %v410 = vpop.f32.mrf.mxu0
        %v411 = vadd.f32 %v287, %v410
        %v412 = vpop.f32.mrf.mxu0
        %413 = vmatprep.mubr.f32.mxu0 0.0
        %414 = vmatmul.mubr.f32.gmra.mxu0 %v312
        %v415 = vpop.f32.mrf.mxu0
        %v416 = vadd.f32 %v287, %v415
        %v417 = vpop.f32.mrf.mxu0
        %418 = vdwg.mxu0
        %v419 = vld [vmem:[#allocation2] sm:$0xff]
        %v420 = vld [vmem:[#allocation2 + $0x8] sm:$0xff]
        %v421 = vld [vmem:[#allocation2 + $0x10] sm:$0xff]
        %v422 = vld [vmem:[#allocation2 + $0x18] sm:$0xff]
        %v423 = vld [vmem:[#allocation2 + $0x20] sm:$0xff]
        %v424 = vld [vmem:[#allocation2 + $0x28] sm:$0xff]
        %v425 = vld [vmem:[#allocation2 + $0x30] sm:$0xff]
        %v426 = vld [vmem:[#allocation2 + $0x38] sm:$0xff]
        %429 = vrot.lane.b32.xlu0 %v381, 96
        %v430 = vpop.permute.xlu0 %429
        %431 = vrot.lane.b32.xlu0 %v386, 96
        %v432 = vpop.permute.xlu0 %431
        %vm433 = vcmask 64512
        %v434 = vsel %vm433, %v381, 0
        %v436 = vsel %vm433, %v386, 0
        %v438 = vsel %vm433, %v430, 0
        %v440 = vsel %vm433, %v432, 0
        %442 = vmatprep.subr.mxu0 0.0
        %443 = vmatpush1.xpose.msra.mxu0 0.0
        %444 = vmatprep.subr.mxu0 0.0
        %445 = vmatpush1.xpose.msra.mxu0 0.0
        %446 = vmatprep.subr.mxu0 0.0
        %447 = vmatpush1.xpose.msra.mxu0 0.0
        %448 = vmatprep.subr.mxu0 0.0
        %449 = vmatpush1.xpose.msra.mxu0 0.0
        %450 = vmatprep.subr.mxu0 0.0
        %451 = vmatpush1.xpose.msra.mxu0 0.0
        %452 = vmatprep.subr.mxu0 0.0
        %453 = vmatpush1.xpose.msra.mxu0 0.0
        %454 = vmatprep.subr.mxu0 0.0
        %455 = vmatpush1.xpose.msra.mxu0 0.0
        %456 = vmatprep.subr.mxu0 0.0
        %457 = vmatpush1.xpose.msra.mxu0 0.0
        %458 = vmatprep.subr.mxu0 0.0
        %459 = vmatpush1.xpose.msra.mxu0 0.0
        %460 = vmatprep.subr.mxu0 0.0
        %461 = vmatpush1.xpose.msra.mxu0 0.0
        %462 = vmatprep.subr.mxu0 0.0
        %463 = vmatpush1.xpose.msra.mxu0 0.0
        %464 = vmatprep.subr.mxu0 0.0
        %465 = vmatpush1.xpose.msra.mxu0 0.0
        %466 = vmatprep.subr.mxu0 0.0
        %467 = vmatpush1.xpose.msra.mxu0 0.0
        %468 = vmatprep.subr.mxu0 0.0
        %469 = vmatpush1.xpose.msra.mxu0 0.0
        %470 = vmatprep.subr.mxu0 0.0
        %471 = vmatpush1.xpose.msra.mxu0 %v440
        %472 = vmatprep.subr.mxu0 0.0
        %473 = vmatpush1.xpose.msra.mxu0 %v438
        %474 = vmatprep.subr.mxu0 0.0
        %475 = vmatpush2.xpose.msra.mxu0 0.0
        %476 = vmatprep.subr.mxu0 0.0
        %477 = vmatpush2.xpose.msra.mxu0 0.0
        %478 = vmatprep.subr.mxu0 0.0
        %479 = vmatpush2.xpose.msra.mxu0 0.0
        %480 = vmatprep.subr.mxu0 0.0
        %481 = vmatpush2.xpose.msra.mxu0 0.0
        %482 = vmatprep.subr.mxu0 0.0
        %483 = vmatpush2.xpose.msra.mxu0 0.0
        %484 = vmatprep.subr.mxu0 0.0
        %485 = vmatpush2.xpose.msra.mxu0 0.0
        %486 = vmatprep.subr.mxu0 0.0
        %487 = vmatpush2.xpose.msra.mxu0 0.0
        %488 = vmatprep.subr.mxu0 0.0
        %489 = vmatpush2.xpose.msra.mxu0 0.0
        %490 = vmatprep.subr.mxu0 0.0
        %491 = vmatpush2.xpose.msra.mxu0 0.0
        %492 = vmatprep.subr.mxu0 0.0
        %493 = vmatpush2.xpose.msra.mxu0 0.0
        %494 = vmatprep.subr.mxu0 0.0
        %495 = vmatpush2.xpose.msra.mxu0 0.0
        %496 = vmatprep.subr.mxu0 0.0
        %497 = vmatpush2.xpose.msra.mxu0 0.0
        %498 = vmatprep.subr.mxu0 0.0
        %499 = vmatpush2.xpose.msra.mxu0 0.0
        %500 = vmatprep.subr.mxu0 0.0
        %501 = vmatpush2.xpose.msra.mxu0 0.0
        %502 = vmatprep.subr.mxu0 0.0
        %503 = vmatpush2.xpose.msra.mxu0 0.0
        %504 = vmatprep.subr.mxu0 0.0
        %505 = vmatpush2.xpose.msra.mxu0 0.0
        %506 = vmatprep.mubr.f32.mxu0 0.0
        %507 = vmatmul.mubr.f32.gmra.mxu0 %v434
        %v508 = vpop.f32.mrf.mxu0
        %v509 = vadd.f32 %v419, %v508
        %v510 = vpop.f32.mrf.mxu0
        %511 = vmatprep.mubr.f32.mxu0 0.0
        %512 = vmatmul.mubr.f32.gmra.mxu0 %v436
        %v513 = vpop.f32.mrf.mxu0
        %v514 = vadd.f32 %v420, %v513
        %v515 = vpop.f32.mrf.mxu0
        %516 = vdwg.mxu0
        %519 = vrot.lane.b32.xlu0 %v391, 96
        %v520 = vpop.permute.xlu0 %519
        %521 = vrot.lane.b32.xlu0 %v396, 96
        %v522 = vpop.permute.xlu0 %521
        %v523 = vsel %vm433, %v391, 0
        %v525 = vsel %vm433, %v396, 0
        %v527 = vsel %vm433, %v520, 0
        %v529 = vsel %vm433, %v522, 0
        %531 = vmatprep.subr.mxu0 0.0
        %532 = vmatpush1.xpose.msra.mxu0 0.0
        %533 = vmatprep.subr.mxu0 0.0
        %534 = vmatpush1.xpose.msra.mxu0 0.0
        %535 = vmatprep.subr.mxu0 0.0
        %536 = vmatpush1.xpose.msra.mxu0 0.0
        %537 = vmatprep.subr.mxu0 0.0
        %538 = vmatpush1.xpose.msra.mxu0 0.0
        %539 = vmatprep.subr.mxu0 0.0
        %540 = vmatpush1.xpose.msra.mxu0 0.0
        %541 = vmatprep.subr.mxu0 0.0
        %542 = vmatpush1.xpose.msra.mxu0 0.0
        %543 = vmatprep.subr.mxu0 0.0
        %544 = vmatpush1.xpose.msra.mxu0 0.0
        %545 = vmatprep.subr.mxu0 0.0
        %546 = vmatpush1.xpose.msra.mxu0 0.0
        %547 = vmatprep.subr.mxu0 0.0
        %548 = vmatpush1.xpose.msra.mxu0 0.0
        %549 = vmatprep.subr.mxu0 0.0
        %550 = vmatpush1.xpose.msra.mxu0 0.0
        %551 = vmatprep.subr.mxu0 0.0
        %552 = vmatpush1.xpose.msra.mxu0 0.0
        %553 = vmatprep.subr.mxu0 0.0
        %554 = vmatpush1.xpose.msra.mxu0 0.0
        %555 = vmatprep.subr.mxu0 0.0
        %556 = vmatpush1.xpose.msra.mxu0 0.0
        %557 = vmatprep.subr.mxu0 0.0
        %558 = vmatpush1.xpose.msra.mxu0 0.0
        %559 = vmatprep.subr.mxu0 0.0
        %560 = vmatpush1.xpose.msra.mxu0 %v529
        %561 = vmatprep.subr.mxu0 0.0
        %562 = vmatpush1.xpose.msra.mxu0 %v527
        %563 = vmatprep.subr.mxu0 0.0
        %564 = vmatpush2.xpose.msra.mxu0 0.0
        %565 = vmatprep.subr.mxu0 0.0
        %566 = vmatpush2.xpose.msra.mxu0 0.0
        %567 = vmatprep.subr.mxu0 0.0
        %568 = vmatpush2.xpose.msra.mxu0 0.0
        %569 = vmatprep.subr.mxu0 0.0
        %570 = vmatpush2.xpose.msra.mxu0 0.0
        %571 = vmatprep.subr.mxu0 0.0
        %572 = vmatpush2.xpose.msra.mxu0 0.0
        %573 = vmatprep.subr.mxu0 0.0
        %574 = vmatpush2.xpose.msra.mxu0 0.0
        %575 = vmatprep.subr.mxu0 0.0
        %576 = vmatpush2.xpose.msra.mxu0 0.0
        %577 = vmatprep.subr.mxu0 0.0
        %578 = vmatpush2.xpose.msra.mxu0 0.0
        %579 = vmatprep.subr.mxu0 0.0
        %580 = vmatpush2.xpose.msra.mxu0 0.0
        %581 = vmatprep.subr.mxu0 0.0
        %582 = vmatpush2.xpose.msra.mxu0 0.0
        %583 = vmatprep.subr.mxu0 0.0
        %584 = vmatpush2.xpose.msra.mxu0 0.0
        %585 = vmatprep.subr.mxu0 0.0
        %586 = vmatpush2.xpose.msra.mxu0 0.0
        %587 = vmatprep.subr.mxu0 0.0
        %588 = vmatpush2.xpose.msra.mxu0 0.0
        %589 = vmatprep.subr.mxu0 0.0
        %590 = vmatpush2.xpose.msra.mxu0 0.0
        %591 = vmatprep.subr.mxu0 0.0
        %592 = vmatpush2.xpose.msra.mxu0 0.0
        %593 = vmatprep.subr.mxu0 0.0
        %594 = vmatpush2.xpose.msra.mxu0 0.0
        %595 = vmatprep.mubr.f32.mxu0 0.0
        %596 = vmatmul.mubr.f32.gmra.mxu0 %v523
        %v597 = vpop.f32.mrf.mxu0
        %v598 = vadd.f32 %v421, %v597
        %v599 = vpop.f32.mrf.mxu0
        %600 = vmatprep.mubr.f32.mxu0 0.0
        %601 = vmatmul.mubr.f32.gmra.mxu0 %v525
        %v602 = vpop.f32.mrf.mxu0
        %v603 = vadd.f32 %v422, %v602
        %v604 = vpop.f32.mrf.mxu0
        %605 = vdwg.mxu0
        %608 = vrot.lane.b32.xlu0 %v401, 96
        %v609 = vpop.permute.xlu0 %608
        %610 = vrot.lane.b32.xlu0 %v406, 96
        %v611 = vpop.permute.xlu0 %610
        %v612 = vsel %vm433, %v401, 0
        %v614 = vsel %vm433, %v406, 0
        %v616 = vsel %vm433, %v609, 0
        %v618 = vsel %vm433, %v611, 0
        %620 = vmatprep.subr.mxu0 0.0
        %621 = vmatpush1.xpose.msra.mxu0 0.0
        %622 = vmatprep.subr.mxu0 0.0
        %623 = vmatpush1.xpose.msra.mxu0 0.0
        %624 = vmatprep.subr.mxu0 0.0
        %625 = vmatpush1.xpose.msra.mxu0 0.0
        %626 = vmatprep.subr.mxu0 0.0
        %627 = vmatpush1.xpose.msra.mxu0 0.0
        %628 = vmatprep.subr.mxu0 0.0
        %629 = vmatpush1.xpose.msra.mxu0 0.0
        %630 = vmatprep.subr.mxu0 0.0
        %631 = vmatpush1.xpose.msra.mxu0 0.0
        %632 = vmatprep.subr.mxu0 0.0
        %633 = vmatpush1.xpose.msra.mxu0 0.0
        %634 = vmatprep.subr.mxu0 0.0
        %635 = vmatpush1.xpose.msra.mxu0 0.0
        %636 = vmatprep.subr.mxu0 0.0
        %637 = vmatpush1.xpose.msra.mxu0 0.0
        %638 = vmatprep.subr.mxu0 0.0
        %639 = vmatpush1.xpose.msra.mxu0 0.0
        %640 = vmatprep.subr.mxu0 0.0
        %641 = vmatpush1.xpose.msra.mxu0 0.0
        %642 = vmatprep.subr.mxu0 0.0
        %643 = vmatpush1.xpose.msra.mxu0 0.0
        %644 = vmatprep.subr.mxu0 0.0
        %645 = vmatpush1.xpose.msra.mxu0 0.0
        %646 = vmatprep.subr.mxu0 0.0
        %647 = vmatpush1.xpose.msra.mxu0 0.0
        %648 = vmatprep.subr.mxu0 0.0
        %649 = vmatpush1.xpose.msra.mxu0 %v618
        %650 = vmatprep.subr.mxu0 0.0
        %651 = vmatpush1.xpose.msra.mxu0 %v616
        %652 = vmatprep.subr.mxu0 0.0
        %653 = vmatpush2.xpose.msra.mxu0 0.0
        %654 = vmatprep.subr.mxu0 0.0
        %655 = vmatpush2.xpose.msra.mxu0 0.0
        %656 = vmatprep.subr.mxu0 0.0
        %657 = vmatpush2.xpose.msra.mxu0 0.0
        %658 = vmatprep.subr.mxu0 0.0
        %659 = vmatpush2.xpose.msra.mxu0 0.0
        %660 = vmatprep.subr.mxu0 0.0
        %661 = vmatpush2.xpose.msra.mxu0 0.0
        %662 = vmatprep.subr.mxu0 0.0
        %663 = vmatpush2.xpose.msra.mxu0 0.0
        %664 = vmatprep.subr.mxu0 0.0
        %665 = vmatpush2.xpose.msra.mxu0 0.0
        %666 = vmatprep.subr.mxu0 0.0
        %667 = vmatpush2.xpose.msra.mxu0 0.0
        %668 = vmatprep.subr.mxu0 0.0
        %669 = vmatpush2.xpose.msra.mxu0 0.0
        %670 = vmatprep.subr.mxu0 0.0
        %671 = vmatpush2.xpose.msra.mxu0 0.0
        %672 = vmatprep.subr.mxu0 0.0
        %673 = vmatpush2.xpose.msra.mxu0 0.0
        %674 = vmatprep.subr.mxu0 0.0
        %675 = vmatpush2.xpose.msra.mxu0 0.0
        %676 = vmatprep.subr.mxu0 0.0
        %677 = vmatpush2.xpose.msra.mxu0 0.0
        %678 = vmatprep.subr.mxu0 0.0
        %679 = vmatpush2.xpose.msra.mxu0 0.0
        %680 = vmatprep.subr.mxu0 0.0
        %681 = vmatpush2.xpose.msra.mxu0 0.0
        %682 = vmatprep.subr.mxu0 0.0
        %683 = vmatpush2.xpose.msra.mxu0 0.0
        %684 = vmatprep.mubr.f32.mxu0 0.0
        %685 = vmatmul.mubr.f32.gmra.mxu0 %v612
        %v686 = vpop.f32.mrf.mxu0
        %v687 = vadd.f32 %v423, %v686
        %v688 = vpop.f32.mrf.mxu0
        %689 = vmatprep.mubr.f32.mxu0 0.0
        %690 = vmatmul.mubr.f32.gmra.mxu0 %v614
        %v691 = vpop.f32.mrf.mxu0
        %v692 = vadd.f32 %v424, %v691
        %v693 = vpop.f32.mrf.mxu0
        %694 = vdwg.mxu0
        %697 = vrot.lane.b32.xlu0 %v411, 96
        %v698 = vpop.permute.xlu0 %697
        %699 = vrot.lane.b32.xlu0 %v416, 96
        %v700 = vpop.permute.xlu0 %699
        %v701 = vsel %vm433, %v411, 0
        %v703 = vsel %vm433, %v416, 0
        %v705 = vsel %vm433, %v698, 0
        %v707 = vsel %vm433, %v700, 0
        %709 = vmatprep.subr.mxu0 0.0
        %710 = vmatpush1.xpose.msra.mxu0 0.0
        %711 = vmatprep.subr.mxu0 0.0
        %712 = vmatpush1.xpose.msra.mxu0 0.0
        %713 = vmatprep.subr.mxu0 0.0
        %714 = vmatpush1.xpose.msra.mxu0 0.0
        %715 = vmatprep.subr.mxu0 0.0
        %716 = vmatpush1.xpose.msra.mxu0 0.0
        %717 = vmatprep.subr.mxu0 0.0
        %718 = vmatpush1.xpose.msra.mxu0 0.0
        %719 = vmatprep.subr.mxu0 0.0
        %720 = vmatpush1.xpose.msra.mxu0 0.0
        %721 = vmatprep.subr.mxu0 0.0
        %722 = vmatpush1.xpose.msra.mxu0 0.0
        %723 = vmatprep.subr.mxu0 0.0
        %724 = vmatpush1.xpose.msra.mxu0 0.0
        %725 = vmatprep.subr.mxu0 0.0
        %726 = vmatpush1.xpose.msra.mxu0 0.0
        %727 = vmatprep.subr.mxu0 0.0
        %728 = vmatpush1.xpose.msra.mxu0 0.0
        %729 = vmatprep.subr.mxu0 0.0
        %730 = vmatpush1.xpose.msra.mxu0 0.0
        %731 = vmatprep.subr.mxu0 0.0
        %732 = vmatpush1.xpose.msra.mxu0 0.0
        %733 = vmatprep.subr.mxu0 0.0
        %734 = vmatpush1.xpose.msra.mxu0 0.0
        %735 = vmatprep.subr.mxu0 0.0
        %736 = vmatpush1.xpose.msra.mxu0 0.0
        %737 = vmatprep.subr.mxu0 0.0
        %738 = vmatpush1.xpose.msra.mxu0 %v707
        %739 = vmatprep.subr.mxu0 0.0
        %740 = vmatpush1.xpose.msra.mxu0 %v705
        %741 = vmatprep.subr.mxu0 0.0
        %742 = vmatpush2.xpose.msra.mxu0 0.0
        %743 = vmatprep.subr.mxu0 0.0
        %744 = vmatpush2.xpose.msra.mxu0 0.0
        %745 = vmatprep.subr.mxu0 0.0
        %746 = vmatpush2.xpose.msra.mxu0 0.0
        %747 = vmatprep.subr.mxu0 0.0
        %748 = vmatpush2.xpose.msra.mxu0 0.0
        %749 = vmatprep.subr.mxu0 0.0
        %750 = vmatpush2.xpose.msra.mxu0 0.0
        %751 = vmatprep.subr.mxu0 0.0
        %752 = vmatpush2.xpose.msra.mxu0 0.0
        %753 = vmatprep.subr.mxu0 0.0
        %754 = vmatpush2.xpose.msra.mxu0 0.0
        %755 = vmatprep.subr.mxu0 0.0
        %756 = vmatpush2.xpose.msra.mxu0 0.0
        %757 = vmatprep.subr.mxu0 0.0
        %758 = vmatpush2.xpose.msra.mxu0 0.0
        %759 = vmatprep.subr.mxu0 0.0
        %760 = vmatpush2.xpose.msra.mxu0 0.0
        %761 = vmatprep.subr.mxu0 0.0
        %762 = vmatpush2.xpose.msra.mxu0 0.0
        %763 = vmatprep.subr.mxu0 0.0
        %764 = vmatpush2.xpose.msra.mxu0 0.0
        %765 = vmatprep.subr.mxu0 0.0
        %766 = vmatpush2.xpose.msra.mxu0 0.0
        %767 = vmatprep.subr.mxu0 0.0
        %768 = vmatpush2.xpose.msra.mxu0 0.0
        %769 = vmatprep.subr.mxu0 0.0
        %770 = vmatpush2.xpose.msra.mxu0 0.0
        %771 = vmatprep.subr.mxu0 0.0
        %772 = vmatpush2.xpose.msra.mxu0 0.0
        %773 = vmatprep.mubr.f32.mxu0 0.0
        %774 = vmatmul.mubr.f32.gmra.mxu0 %v701
        %v775 = vpop.f32.mrf.mxu0
        %v776 = vadd.f32 %v425, %v775
        %v777 = vpop.f32.mrf.mxu0
        %778 = vmatprep.mubr.f32.mxu0 0.0
        %779 = vmatmul.mubr.f32.gmra.mxu0 %v703
        %v780 = vpop.f32.mrf.mxu0
        %v781 = vadd.f32 %v426, %v780
        %v782 = vpop.f32.mrf.mxu0
        %783 = vdwg.mxu0
        %vm784 = vcmask 130048
        %v785 = vsel %vm784, %v509, -inf
        %786 = vmax.xlane.f32.xlu0 %v785
        %v787 = vpop.xlane.xlu0 %786
        %v788 = vsel %vm784, %v514, -inf
        %789 = vmax.xlane.f32.xlu0 %v788
        %v790 = vpop.xlane.xlu0 %789
        %v791 = vsel %vm784, %v598, -inf
        %792 = vmax.xlane.f32.xlu0 %v791
        %v793 = vpop.xlane.xlu0 %792
        %v794 = vsel %vm784, %v603, -inf
        %795 = vmax.xlane.f32.xlu0 %v794
        %v796 = vpop.xlane.xlu0 %795
        %v797 = vsel %vm784, %v687, -inf
        %798 = vmax.xlane.f32.xlu0 %v797
        %v799 = vpop.xlane.xlu0 %798
        %v800 = vsel %vm784, %v692, -inf
        %801 = vmax.xlane.f32.xlu0 %v800
        %v802 = vpop.xlane.xlu0 %801
        %v803 = vsel %vm784, %v776, -inf
        %804 = vmax.xlane.f32.xlu0 %v803
        %v805 = vpop.xlane.xlu0 %804
        %v806 = vsel %vm784, %v781, -inf
        %807 = vmax.xlane.f32.xlu0 %v806
        %v808 = vpop.xlane.xlu0 %807
        %v809 = vsub.f32 %v509, %v787
        %v810 = vsub.f32 %v514, %v790
        %v811 = vsub.f32 %v598, %v793
        %v812 = vsub.f32 %v603, %v796
        %v813 = vsub.f32 %v687, %v799
        %v814 = vsub.f32 %v692, %v802
        %v815 = vsub.f32 %v776, %v805
        %v816 = vsub.f32 %v781, %v808
        %v817 = vmul.f32 %v809, 1.442695
        %v818 = vpow.pop %v817
        %v819 = vmul.f32 %v810, 1.442695
        %v820 = vpow.pop %v819
        %v821 = vmul.f32 %v811, 1.442695
        %v822 = vpow.pop %v821
        %v823 = vmul.f32 %v812, 1.442695
        %v824 = vpow.pop %v823
        %v825 = vmul.f32 %v813, 1.442695
        %v826 = vpow.pop %v825
        %v827 = vmul.f32 %v814, 1.442695
        %v828 = vpow.pop %v827
        %v829 = vmul.f32 %v815, 1.442695
        %v830 = vpow.pop %v829
        %v831 = vmul.f32 %v816, 1.442695
        %v832 = vpow.pop %v831
        %v833 = vsel %vm784, %v818, 0.0
        %834 = vadd.xlane.f32.xlu0 %v833
        %v835 = vpop.xlane.xlu0 %834
        %v836 = vsel %vm784, %v820, 0.0
        %837 = vadd.xlane.f32.xlu0 %v836
        %v838 = vpop.xlane.xlu0 %837
        %v839 = vsel %vm784, %v822, 0.0
        %840 = vadd.xlane.f32.xlu0 %v839
        %v841 = vpop.xlane.xlu0 %840
        %v842 = vsel %vm784, %v824, 0.0
        %843 = vadd.xlane.f32.xlu0 %v842
        %v844 = vpop.xlane.xlu0 %843
        %v845 = vsel %vm784, %v826, 0.0
        %846 = vadd.xlane.f32.xlu0 %v845
        %v847 = vpop.xlane.xlu0 %846
        %v848 = vsel %vm784, %v828, 0.0
        %849 = vadd.xlane.f32.xlu0 %v848
        %v850 = vpop.xlane.xlu0 %849
        %v851 = vsel %vm784, %v830, 0.0
        %852 = vadd.xlane.f32.xlu0 %v851
        %v853 = vpop.xlane.xlu0 %852
        %v854 = vsel %vm784, %v832, 0.0
        %855 = vadd.xlane.f32.xlu0 %v854
        %v856 = vpop.xlane.xlu0 %855
        %v857 = vrcp.pop %v835
        %v858 = vmul.f32 %v818, %v857
        %v859 = vrcp.pop %v838
        %v860 = vmul.f32 %v820, %v859
        %v861 = vrcp.pop %v841
        %v862 = vmul.f32 %v822, %v861
        %v863 = vrcp.pop %v844
        %v864 = vmul.f32 %v824, %v863
        %v865 = vrcp.pop %v847
        %v866 = vmul.f32 %v826, %v865
        %v867 = vrcp.pop %v850
        %v868 = vmul.f32 %v828, %v867
        %v869 = vrcp.pop %v853
        %v870 = vmul.f32 %v830, %v869
        %v871 = vrcp.pop %v856
        %v872 = vmul.f32 %v832, %v871
        %873 = vrot.lane.b32.xlu0 %v381, 64
        %v874 = vpop.permute.xlu0 %873
        %875 = vrot.lane.b32.xlu0 %v386, 64
        %v876 = vpop.permute.xlu0 %875
        %v880 = vsel %vm784, %v858, 0
        %v883 = vsel %vm784, %v860, 0
        %885 = vmatprep.subr.mxu0 0.0
        %886 = vmatpush1.msra.mxu0 0.0
        %887 = vmatprep.subr.mxu0 0.0
        %888 = vmatpush1.msra.mxu0 0.0
        %889 = vmatprep.subr.mxu0 0.0
        %890 = vmatpush1.msra.mxu0 0.0
        %891 = vmatprep.subr.mxu0 0.0
        %892 = vmatpush1.msra.mxu0 0.0
        %893 = vmatprep.subr.mxu0 0.0
        %894 = vmatpush1.msra.mxu0 0.0
        %895 = vmatprep.subr.mxu0 0.0
        %896 = vmatpush1.msra.mxu0 0.0
        %897 = vmatprep.subr.mxu0 0.0
        %898 = vmatpush1.msra.mxu0 0.0
        %899 = vmatprep.subr.mxu0 0.0
        %900 = vmatpush1.msra.mxu0 0.0
        %901 = vmatprep.subr.mxu0 0.0
        %902 = vmatpush1.msra.mxu0 0.0
        %903 = vmatprep.subr.mxu0 0.0
        %904 = vmatpush1.msra.mxu0 0.0
        %905 = vmatprep.subr.mxu0 0.0
        %906 = vmatpush1.msra.mxu0 0.0
        %907 = vmatprep.subr.mxu0 0.0
        %908 = vmatpush1.msra.mxu0 0.0
        %909 = vmatprep.subr.mxu0 0.0
        %910 = vmatpush1.msra.mxu0 0.0
        %911 = vmatprep.subr.mxu0 0.0
        %912 = vmatpush1.msra.mxu0 0.0
        %913 = vmatprep.subr.mxu0 0.0
        %914 = vmatpush1.msra.mxu0 %v876
        %915 = vmatprep.subr.mxu0 0.0
        %916 = vmatpush1.msra.mxu0 %v874
        %917 = vmatprep.subr.mxu0 0.0
        %918 = vmatpush2.msra.mxu0 0.0
        %919 = vmatprep.subr.mxu0 0.0
        %920 = vmatpush2.msra.mxu0 0.0
        %921 = vmatprep.subr.mxu0 0.0
        %922 = vmatpush2.msra.mxu0 0.0
        %923 = vmatprep.subr.mxu0 0.0
        %924 = vmatpush2.msra.mxu0 0.0
        %925 = vmatprep.subr.mxu0 0.0
        %926 = vmatpush2.msra.mxu0 0.0
        %927 = vmatprep.subr.mxu0 0.0
        %928 = vmatpush2.msra.mxu0 0.0
        %929 = vmatprep.subr.mxu0 0.0
        %930 = vmatpush2.msra.mxu0 0.0
        %931 = vmatprep.subr.mxu0 0.0
        %932 = vmatpush2.msra.mxu0 0.0
        %933 = vmatprep.subr.mxu0 0.0
        %934 = vmatpush2.msra.mxu0 0.0
        %935 = vmatprep.subr.mxu0 0.0
        %936 = vmatpush2.msra.mxu0 0.0
        %937 = vmatprep.subr.mxu0 0.0
        %938 = vmatpush2.msra.mxu0 0.0
        %939 = vmatprep.subr.mxu0 0.0
        %940 = vmatpush2.msra.mxu0 0.0
        %941 = vmatprep.subr.mxu0 0.0
        %942 = vmatpush2.msra.mxu0 0.0
        %943 = vmatprep.subr.mxu0 0.0
        %944 = vmatpush2.msra.mxu0 0.0
        %945 = vmatprep.subr.mxu0 0.0
        %946 = vmatpush2.msra.mxu0 0.0
        %947 = vmatprep.subr.mxu0 0.0
        %948 = vmatpush2.msra.mxu0 0.0
        %949 = vmatprep.mubr.f32.mxu0 0.0
        %950 = vmatmul.mubr.f32.gmra.mxu0 %v880
        %v951 = vpop.f32.mrf.mxu0
        %v952 = vadd.f32 0.0, %v951
        %v953 = vpop.f32.mrf.mxu0
        %954 = vmatprep.mubr.f32.mxu0 0.0
        %955 = vmatmul.mubr.f32.gmra.mxu0 %v883
        %v956 = vpop.f32.mrf.mxu0
        %v957 = vadd.f32 0.0, %v956
        %v958 = vpop.f32.mrf.mxu0
        %959 = vdwg.mxu0
        %960 = vrot.lane.b32.xlu0 %v391, 64
        %v961 = vpop.permute.xlu0 %960
        %962 = vrot.lane.b32.xlu0 %v396, 64
        %v963 = vpop.permute.xlu0 %962
        %v967 = vsel %vm784, %v862, 0
        %v970 = vsel %vm784, %v864, 0
        %972 = vmatprep.subr.mxu0 0.0
        %973 = vmatpush1.msra.mxu0 0.0
        %974 = vmatprep.subr.mxu0 0.0
        %975 = vmatpush1.msra.mxu0 0.0
        %976 = vmatprep.subr.mxu0 0.0
        %977 = vmatpush1.msra.mxu0 0.0
        %978 = vmatprep.subr.mxu0 0.0
        %979 = vmatpush1.msra.mxu0 0.0
        %980 = vmatprep.subr.mxu0 0.0
        %981 = vmatpush1.msra.mxu0 0.0
        %982 = vmatprep.subr.mxu0 0.0
        %983 = vmatpush1.msra.mxu0 0.0
        %984 = vmatprep.subr.mxu0 0.0
        %985 = vmatpush1.msra.mxu0 0.0
        %986 = vmatprep.subr.mxu0 0.0
        %987 = vmatpush1.msra.mxu0 0.0
        %988 = vmatprep.subr.mxu0 0.0
        %989 = vmatpush1.msra.mxu0 0.0
        %990 = vmatprep.subr.mxu0 0.0
        %991 = vmatpush1.msra.mxu0 0.0
        %992 = vmatprep.subr.mxu0 0.0
        %993 = vmatpush1.msra.mxu0 0.0
        %994 = vmatprep.subr.mxu0 0.0
        %995 = vmatpush1.msra.mxu0 0.0
        %996 = vmatprep.subr.mxu0 0.0
        %997 = vmatpush1.msra.mxu0 0.0
        %998 = vmatprep.subr.mxu0 0.0
        %999 = vmatpush1.msra.mxu0 0.0
        %1000 = vmatprep.subr.mxu0 0.0
        %1001 = vmatpush1.msra.mxu0 %v963
        %1002 = vmatprep.subr.mxu0 0.0
        %1003 = vmatpush1.msra.mxu0 %v961
        %1004 = vmatprep.subr.mxu0 0.0
        %1005 = vmatpush2.msra.mxu0 0.0
        %1006 = vmatprep.subr.mxu0 0.0
        %1007 = vmatpush2.msra.mxu0 0.0
        %1008 = vmatprep.subr.mxu0 0.0
        %1009 = vmatpush2.msra.mxu0 0.0
        %1010 = vmatprep.subr.mxu0 0.0
        %1011 = vmatpush2.msra.mxu0 0.0
        %1012 = vmatprep.subr.mxu0 0.0
        %1013 = vmatpush2.msra.mxu0 0.0
        %1014 = vmatprep.subr.mxu0 0.0
        %1015 = vmatpush2.msra.mxu0 0.0
        %1016 = vmatprep.subr.mxu0 0.0
        %1017 = vmatpush2.msra.mxu0 0.0
        %1018 = vmatprep.subr.mxu0 0.0
        %1019 = vmatpush2.msra.mxu0 0.0
        %1020 = vmatprep.subr.mxu0 0.0
        %1021 = vmatpush2.msra.mxu0 0.0
        %1022 = vmatprep.subr.mxu0 0.0
        %1023 = vmatpush2.msra.mxu0 0.0
        %1024 = vmatprep.subr.mxu0 0.0
        %1025 = vmatpush2.msra.mxu0 0.0
        %1026 = vmatprep.subr.mxu0 0.0
        %1027 = vmatpush2.msra.mxu0 0.0
        %1028 = vmatprep.subr.mxu0 0.0
        %1029 = vmatpush2.msra.mxu0 0.0
        %1030 = vmatprep.subr.mxu0 0.0
        %1031 = vmatpush2.msra.mxu0 0.0
        %1032 = vmatprep.subr.mxu0 0.0
        %1033 = vmatpush2.msra.mxu0 0.0
        %1034 = vmatprep.subr.mxu0 0.0
        %1035 = vmatpush2.msra.mxu0 0.0
        %1036 = vmatprep.mubr.f32.mxu0 0.0
        %1037 = vmatmul.mubr.f32.gmra.mxu0 %v967
        %v1038 = vpop.f32.mrf.mxu0
        %v1039 = vadd.f32 0.0, %v1038
        %v1040 = vpop.f32.mrf.mxu0
        %1041 = vmatprep.mubr.f32.mxu0 0.0
        %1042 = vmatmul.mubr.f32.gmra.mxu0 %v970
        %v1043 = vpop.f32.mrf.mxu0
        %v1044 = vadd.f32 0.0, %v1043
        %v1045 = vpop.f32.mrf.mxu0
        %1046 = vdwg.mxu0
        %1047 = vrot.lane.b32.xlu0 %v401, 64
        %v1048 = vpop.permute.xlu0 %1047
        %1049 = vrot.lane.b32.xlu0 %v406, 64
        %v1050 = vpop.permute.xlu0 %1049
        %v1054 = vsel %vm784, %v866, 0
        %v1057 = vsel %vm784, %v868, 0
        %1059 = vmatprep.subr.mxu0 0.0
        %1060 = vmatpush1.msra.mxu0 0.0
        %1061 = vmatprep.subr.mxu0 0.0
        %1062 = vmatpush1.msra.mxu0 0.0
        %1063 = vmatprep.subr.mxu0 0.0
        %1064 = vmatpush1.msra.mxu0 0.0
        %1065 = vmatprep.subr.mxu0 0.0
        %1066 = vmatpush1.msra.mxu0 0.0
        %1067 = vmatprep.subr.mxu0 0.0
        %1068 = vmatpush1.msra.mxu0 0.0
        %1069 = vmatprep.subr.mxu0 0.0
        %1070 = vmatpush1.msra.mxu0 0.0
        %1071 = vmatprep.subr.mxu0 0.0
        %1072 = vmatpush1.msra.mxu0 0.0
        %1073 = vmatprep.subr.mxu0 0.0
        %1074 = vmatpush1.msra.mxu0 0.0
        %1075 = vmatprep.subr.mxu0 0.0
        %1076 = vmatpush1.msra.mxu0 0.0
        %1077 = vmatprep.subr.mxu0 0.0
        %1078 = vmatpush1.msra.mxu0 0.0
        %1079 = vmatprep.subr.mxu0 0.0
        %1080 = vmatpush1.msra.mxu0 0.0
        %1081 = vmatprep.subr.mxu0 0.0
        %1082 = vmatpush1.msra.mxu0 0.0
        %1083 = vmatprep.subr.mxu0 0.0
        %1084 = vmatpush1.msra.mxu0 0.0
        %1085 = vmatprep.subr.mxu0 0.0
        %1086 = vmatpush1.msra.mxu0 0.0
        %1087 = vmatprep.subr.mxu0 0.0
        %1088 = vmatpush1.msra.mxu0 %v1050
        %1089 = vmatprep.subr.mxu0 0.0
        %1090 = vmatpush1.msra.mxu0 %v1048
        %1091 = vmatprep.subr.mxu0 0.0
        %1092 = vmatpush2.msra.mxu0 0.0
        %1093 = vmatprep.subr.mxu0 0.0
        %1094 = vmatpush2.msra.mxu0 0.0
        %1095 = vmatprep.subr.mxu0 0.0
        %1096 = vmatpush2.msra.mxu0 0.0
        %1097 = vmatprep.subr.mxu0 0.0
        %1098 = vmatpush2.msra.mxu0 0.0
        %1099 = vmatprep.subr.mxu0 0.0
        %1100 = vmatpush2.msra.mxu0 0.0
        %1101 = vmatprep.subr.mxu0 0.0
        %1102 = vmatpush2.msra.mxu0 0.0
        %1103 = vmatprep.subr.mxu0 0.0
        %1104 = vmatpush2.msra.mxu0 0.0
        %1105 = vmatprep.subr.mxu0 0.0
        %1106 = vmatpush2.msra.mxu0 0.0
        %1107 = vmatprep.subr.mxu0 0.0
        %1108 = vmatpush2.msra.mxu0 0.0
        %1109 = vmatprep.subr.mxu0 0.0
        %1110 = vmatpush2.msra.mxu0 0.0
        %1111 = vmatprep.subr.mxu0 0.0
        %1112 = vmatpush2.msra.mxu0 0.0
        %1113 = vmatprep.subr.mxu0 0.0
        %1114 = vmatpush2.msra.mxu0 0.0
        %1115 = vmatprep.subr.mxu0 0.0
        %1116 = vmatpush2.msra.mxu0 0.0
        %1117 = vmatprep.subr.mxu0 0.0
        %1118 = vmatpush2.msra.mxu0 0.0
        %1119 = vmatprep.subr.mxu0 0.0
        %1120 = vmatpush2.msra.mxu0 0.0
        %1121 = vmatprep.subr.mxu0 0.0
        %1122 = vmatpush2.msra.mxu0 0.0
        %1123 = vmatprep.mubr.f32.mxu0 0.0
        %1124 = vmatmul.mubr.f32.gmra.mxu0 %v1054
        %v1125 = vpop.f32.mrf.mxu0
        %v1126 = vadd.f32 0.0, %v1125
        %v1127 = vpop.f32.mrf.mxu0
        %1128 = vmatprep.mubr.f32.mxu0 0.0
        %1129 = vmatmul.mubr.f32.gmra.mxu0 %v1057
        %v1130 = vpop.f32.mrf.mxu0
        %v1131 = vadd.f32 0.0, %v1130
        %v1132 = vpop.f32.mrf.mxu0
        %1133 = vdwg.mxu0
        %1134 = vrot.lane.b32.xlu0 %v411, 64
        %v1135 = vpop.permute.xlu0 %1134
        %1136 = vrot.lane.b32.xlu0 %v416, 64
        %v1137 = vpop.permute.xlu0 %1136
        %v1141 = vsel %vm784, %v870, 0
        %v1144 = vsel %vm784, %v872, 0
        %1146 = vmatprep.subr.mxu0 0.0
        %1147 = vmatpush1.msra.mxu0 0.0
        %1148 = vmatprep.subr.mxu0 0.0
        %1149 = vmatpush1.msra.mxu0 0.0
        %1150 = vmatprep.subr.mxu0 0.0
        %1151 = vmatpush1.msra.mxu0 0.0
        %1152 = vmatprep.subr.mxu0 0.0
        %1153 = vmatpush1.msra.mxu0 0.0
        %1154 = vmatprep.subr.mxu0 0.0
        %1155 = vmatpush1.msra.mxu0 0.0
        %1156 = vmatprep.subr.mxu0 0.0
        %1157 = vmatpush1.msra.mxu0 0.0
        %1158 = vmatprep.subr.mxu0 0.0
        %1159 = vmatpush1.msra.mxu0 0.0
        %1160 = vmatprep.subr.mxu0 0.0
        %1161 = vmatpush1.msra.mxu0 0.0
        %1162 = vmatprep.subr.mxu0 0.0
        %1163 = vmatpush1.msra.mxu0 0.0
        %1164 = vmatprep.subr.mxu0 0.0
        %1165 = vmatpush1.msra.mxu0 0.0
        %1166 = vmatprep.subr.mxu0 0.0
        %1167 = vmatpush1.msra.mxu0 0.0
        %1168 = vmatprep.subr.mxu0 0.0
        %1169 = vmatpush1.msra.mxu0 0.0
        %1170 = vmatprep.subr.mxu0 0.0
        %1171 = vmatpush1.msra.mxu0 0.0
        %1172 = vmatprep.subr.mxu0 0.0
        %1173 = vmatpush1.msra.mxu0 0.0
        %1174 = vmatprep.subr.mxu0 0.0
        %1175 = vmatpush1.msra.mxu0 %v1137
        %1176 = vmatprep.subr.mxu0 0.0
        %1177 = vmatpush1.msra.mxu0 %v1135
        %1178 = vmatprep.subr.mxu0 0.0
        %1179 = vmatpush2.msra.mxu0 0.0
        %1180 = vmatprep.subr.mxu0 0.0
        %1181 = vmatpush2.msra.mxu0 0.0
        %1182 = vmatprep.subr.mxu0 0.0
        %1183 = vmatpush2.msra.mxu0 0.0
        %1184 = vmatprep.subr.mxu0 0.0
        %1185 = vmatpush2.msra.mxu0 0.0
        %1186 = vmatprep.subr.mxu0 0.0
        %1187 = vmatpush2.msra.mxu0 0.0
        %1188 = vmatprep.subr.mxu0 0.0
        %1189 = vmatpush2.msra.mxu0 0.0
        %1190 = vmatprep.subr.mxu0 0.0
        %1191 = vmatpush2.msra.mxu0 0.0
        %1192 = vmatprep.subr.mxu0 0.0
        %1193 = vmatpush2.msra.mxu0 0.0
        %1194 = vmatprep.subr.mxu0 0.0
        %1195 = vmatpush2.msra.mxu0 0.0
        %1196 = vmatprep.subr.mxu0 0.0
        %1197 = vmatpush2.msra.mxu0 0.0
        %1198 = vmatprep.subr.mxu0 0.0
        %1199 = vmatpush2.msra.mxu0 0.0
        %1200 = vmatprep.subr.mxu0 0.0
        %1201 = vmatpush2.msra.mxu0 0.0
        %1202 = vmatprep.subr.mxu0 0.0
        %1203 = vmatpush2.msra.mxu0 0.0
        %1204 = vmatprep.subr.mxu0 0.0
        %1205 = vmatpush2.msra.mxu0 0.0
        %1206 = vmatprep.subr.mxu0 0.0
        %1207 = vmatpush2.msra.mxu0 0.0
        %1208 = vmatprep.subr.mxu0 0.0
        %1209 = vmatpush2.msra.mxu0 0.0
        %1210 = vmatprep.mubr.f32.mxu0 0.0
        %1211 = vmatmul.mubr.f32.gmra.mxu0 %v1141
        %v1212 = vpop.f32.mrf.mxu0
        %v1213 = vadd.f32 0.0, %v1212
        %v1214 = vpop.f32.mrf.mxu0
        %1215 = vmatprep.mubr.f32.mxu0 0.0
        %1216 = vmatmul.mubr.f32.gmra.mxu0 %v1144
        %v1217 = vpop.f32.mrf.mxu0
        %v1218 = vadd.f32 0.0, %v1217
        %v1219 = vpop.f32.mrf.mxu0
        %1220 = vdwg.mxu0
        %s1221 = scalar_lea.vmem [#allocation2], 64
        %v1222 = vld [vmem:[%s1221] sm:$0xff]
        %v1223 = vld [vmem:[%s1221 + $0x8] sm:$0xff]
        %v1224 = vld [vmem:[%s1221 + $0x10] sm:$0xff]
        %v1225 = vld [vmem:[%s1221 + $0x18] sm:$0xff]
        %v1226 = vld [vmem:[%s1221 + $0x20] sm:$0xff]
        %v1227 = vld [vmem:[%s1221 + $0x28] sm:$0xff]
        %v1228 = vld [vmem:[%s1221 + $0x30] sm:$0xff]
        %v1229 = vld [vmem:[%s1221 + $0x38] sm:$0xff]
        %1230 = vrot.lane.b32.xlu0 %v381, 120
        %v1231 = vpop.permute.xlu0 %1230
        %1232 = vrot.lane.b32.xlu0 %v386, 120
        %v1233 = vpop.permute.xlu0 %1232
        %1234 = vrot.lane.b32.xlu0 %v381, 88
        %v1235 = vpop.permute.xlu0 %1234
        %1236 = vrot.lane.b32.xlu0 %v386, 88
        %v1237 = vpop.permute.xlu0 %1236
        %v1238 = vsel %vm433, %v1231, 0
        %v1240 = vsel %vm433, %v1233, 0
        %v1242 = vsel %vm433, %v1235, 0
        %v1244 = vsel %vm433, %v1237, 0
        %1246 = vmatprep.subr.mxu0 0.0
        %1247 = vmatpush1.xpose.msra.mxu0 0.0
        %1248 = vmatprep.subr.mxu0 0.0
        %1249 = vmatpush1.xpose.msra.mxu0 0.0
        %1250 = vmatprep.subr.mxu0 0.0
        %1251 = vmatpush1.xpose.msra.mxu0 0.0
        %1252 = vmatprep.subr.mxu0 0.0
        %1253 = vmatpush1.xpose.msra.mxu0 0.0
        %1254 = vmatprep.subr.mxu0 0.0
        %1255 = vmatpush1.xpose.msra.mxu0 0.0
        %1256 = vmatprep.subr.mxu0 0.0
        %1257 = vmatpush1.xpose.msra.mxu0 0.0
        %1258 = vmatprep.subr.mxu0 0.0
        %1259 = vmatpush1.xpose.msra.mxu0 0.0
        %1260 = vmatprep.subr.mxu0 0.0
        %1261 = vmatpush1.xpose.msra.mxu0 0.0
        %1262 = vmatprep.subr.mxu0 0.0
        %1263 = vmatpush1.xpose.msra.mxu0 0.0
        %1264 = vmatprep.subr.mxu0 0.0
        %1265 = vmatpush1.xpose.msra.mxu0 0.0
        %1266 = vmatprep.subr.mxu0 0.0
        %1267 = vmatpush1.xpose.msra.mxu0 0.0
        %1268 = vmatprep.subr.mxu0 0.0
        %1269 = vmatpush1.xpose.msra.mxu0 0.0
        %1270 = vmatprep.subr.mxu0 0.0
        %1271 = vmatpush1.xpose.msra.mxu0 0.0
        %1272 = vmatprep.subr.mxu0 0.0
        %1273 = vmatpush1.xpose.msra.mxu0 0.0
        %1274 = vmatprep.subr.mxu0 0.0
        %1275 = vmatpush1.xpose.msra.mxu0 %v1244
        %1276 = vmatprep.subr.mxu0 0.0
        %1277 = vmatpush1.xpose.msra.mxu0 %v1242
        %1278 = vmatprep.subr.mxu0 0.0
        %1279 = vmatpush2.xpose.msra.mxu0 0.0
        %1280 = vmatprep.subr.mxu0 0.0
        %1281 = vmatpush2.xpose.msra.mxu0 0.0
        %1282 = vmatprep.subr.mxu0 0.0
        %1283 = vmatpush2.xpose.msra.mxu0 0.0
        %1284 = vmatprep.subr.mxu0 0.0
        %1285 = vmatpush2.xpose.msra.mxu0 0.0
        %1286 = vmatprep.subr.mxu0 0.0
        %1287 = vmatpush2.xpose.msra.mxu0 0.0
        %1288 = vmatprep.subr.mxu0 0.0
        %1289 = vmatpush2.xpose.msra.mxu0 0.0
        %1290 = vmatprep.subr.mxu0 0.0
        %1291 = vmatpush2.xpose.msra.mxu0 0.0
        %1292 = vmatprep.subr.mxu0 0.0
        %1293 = vmatpush2.xpose.msra.mxu0 0.0
        %1294 = vmatprep.subr.mxu0 0.0
        %1295 = vmatpush2.xpose.msra.mxu0 0.0
        %1296 = vmatprep.subr.mxu0 0.0
        %1297 = vmatpush2.xpose.msra.mxu0 0.0
        %1298 = vmatprep.subr.mxu0 0.0
        %1299 = vmatpush2.xpose.msra.mxu0 0.0
        %1300 = vmatprep.subr.mxu0 0.0
        %1301 = vmatpush2.xpose.msra.mxu0 0.0
        %1302 = vmatprep.subr.mxu0 0.0
        %1303 = vmatpush2.xpose.msra.mxu0 0.0
        %1304 = vmatprep.subr.mxu0 0.0
        %1305 = vmatpush2.xpose.msra.mxu0 0.0
        %1306 = vmatprep.subr.mxu0 0.0
        %1307 = vmatpush2.xpose.msra.mxu0 0.0
        %1308 = vmatprep.subr.mxu0 0.0
        %1309 = vmatpush2.xpose.msra.mxu0 0.0
        %1310 = vmatprep.mubr.f32.mxu0 0.0
        %1311 = vmatmul.mubr.f32.gmra.mxu0 %v1238
        %v1312 = vpop.f32.mrf.mxu0
        %v1313 = vadd.f32 %v1222, %v1312
        %v1314 = vpop.f32.mrf.mxu0
        %1315 = vmatprep.mubr.f32.mxu0 0.0
        %1316 = vmatmul.mubr.f32.gmra.mxu0 %v1240
        %v1317 = vpop.f32.mrf.mxu0
        %v1318 = vadd.f32 %v1223, %v1317
        %v1319 = vpop.f32.mrf.mxu0
        %1320 = vdwg.mxu0
        %1321 = vrot.lane.b32.xlu0 %v391, 120
        %v1322 = vpop.permute.xlu0 %1321
        %1323 = vrot.lane.b32.xlu0 %v396, 120
        %v1324 = vpop.permute.xlu0 %1323
        %1325 = vrot.lane.b32.xlu0 %v391, 88
        %v1326 = vpop.permute.xlu0 %1325
        %1327 = vrot.lane.b32.xlu0 %v396, 88
        %v1328 = vpop.permute.xlu0 %1327
        %v1329 = vsel %vm433, %v1322, 0
        %v1331 = vsel %vm433, %v1324, 0
        %v1333 = vsel %vm433, %v1326, 0
        %v1335 = vsel %vm433, %v1328, 0
        %1337 = vmatprep.subr.mxu0 0.0
        %1338 = vmatpush1.xpose.msra.mxu0 0.0
        %1339 = vmatprep.subr.mxu0 0.0
        %1340 = vmatpush1.xpose.msra.mxu0 0.0
        %1341 = vmatprep.subr.mxu0 0.0
        %1342 = vmatpush1.xpose.msra.mxu0 0.0
        %1343 = vmatprep.subr.mxu0 0.0
        %1344 = vmatpush1.xpose.msra.mxu0 0.0
        %1345 = vmatprep.subr.mxu0 0.0
        %1346 = vmatpush1.xpose.msra.mxu0 0.0
        %1347 = vmatprep.subr.mxu0 0.0
        %1348 = vmatpush1.xpose.msra.mxu0 0.0
        %1349 = vmatprep.subr.mxu0 0.0
        %1350 = vmatpush1.xpose.msra.mxu0 0.0
        %1351 = vmatprep.subr.mxu0 0.0
        %1352 = vmatpush1.xpose.msra.mxu0 0.0
        %1353 = vmatprep.subr.mxu0 0.0
        %1354 = vmatpush1.xpose.msra.mxu0 0.0
        %1355 = vmatprep.subr.mxu0 0.0
        %1356 = vmatpush1.xpose.msra.mxu0 0.0
        %1357 = vmatprep.subr.mxu0 0.0
        %1358 = vmatpush1.xpose.msra.mxu0 0.0
        %1359 = vmatprep.subr.mxu0 0.0
        %1360 = vmatpush1.xpose.msra.mxu0 0.0
        %1361 = vmatprep.subr.mxu0 0.0
        %1362 = vmatpush1.xpose.msra.mxu0 0.0
        %1363 = vmatprep.subr.mxu0 0.0
        %1364 = vmatpush1.xpose.msra.mxu0 0.0
        %1365 = vmatprep.subr.mxu0 0.0
        %1366 = vmatpush1.xpose.msra.mxu0 %v1335
        %1367 = vmatprep.subr.mxu0 0.0
        %1368 = vmatpush1.xpose.msra.mxu0 %v1333
        %1369 = vmatprep.subr.mxu0 0.0
        %1370 = vmatpush2.xpose.msra.mxu0 0.0
        %1371 = vmatprep.subr.mxu0 0.0
        %1372 = vmatpush2.xpose.msra.mxu0 0.0
        %1373 = vmatprep.subr.mxu0 0.0
        %1374 = vmatpush2.xpose.msra.mxu0 0.0
        %1375 = vmatprep.subr.mxu0 0.0
        %1376 = vmatpush2.xpose.msra.mxu0 0.0
        %1377 = vmatprep.subr.mxu0 0.0
        %1378 = vmatpush2.xpose.msra.mxu0 0.0
        %1379 = vmatprep.subr.mxu0 0.0
        %1380 = vmatpush2.xpose.msra.mxu0 0.0
        %1381 = vmatprep.subr.mxu0 0.0
        %1382 = vmatpush2.xpose.msra.mxu0 0.0
        %1383 = vmatprep.subr.mxu0 0.0
        %1384 = vmatpush2.xpose.msra.mxu0 0.0
        %1385 = vmatprep.subr.mxu0 0.0
        %1386 = vmatpush2.xpose.msra.mxu0 0.0
        %1387 = vmatprep.subr.mxu0 0.0
        %1388 = vmatpush2.xpose.msra.mxu0 0.0
        %1389 = vmatprep.subr.mxu0 0.0
        %1390 = vmatpush2.xpose.msra.mxu0 0.0
        %1391 = vmatprep.subr.mxu0 0.0
        %1392 = vmatpush2.xpose.msra.mxu0 0.0
        %1393 = vmatprep.subr.mxu0 0.0
        %1394 = vmatpush2.xpose.msra.mxu0 0.0
        %1395 = vmatprep.subr.mxu0 0.0
        %1396 = vmatpush2.xpose.msra.mxu0 0.0
        %1397 = vmatprep.subr.mxu0 0.0
        %1398 = vmatpush2.xpose.msra.mxu0 0.0
        %1399 = vmatprep.subr.mxu0 0.0
        %1400 = vmatpush2.xpose.msra.mxu0 0.0
        %1401 = vmatprep.mubr.f32.mxu0 0.0
        %1402 = vmatmul.mubr.f32.gmra.mxu0 %v1329
        %v1403 = vpop.f32.mrf.mxu0
        %v1404 = vadd.f32 %v1224, %v1403
        %v1405 = vpop.f32.mrf.mxu0
        %1406 = vmatprep.mubr.f32.mxu0 0.0
        %1407 = vmatmul.mubr.f32.gmra.mxu0 %v1331
        %v1408 = vpop.f32.mrf.mxu0
        %v1409 = vadd.f32 %v1225, %v1408
        %v1410 = vpop.f32.mrf.mxu0
        %1411 = vdwg.mxu0
        %1412 = vrot.lane.b32.xlu0 %v401, 120
        %v1413 = vpop.permute.xlu0 %1412
        %1414 = vrot.lane.b32.xlu0 %v406, 120
        %v1415 = vpop.permute.xlu0 %1414
        %1416 = vrot.lane.b32.xlu0 %v401, 88
        %v1417 = vpop.permute.xlu0 %1416
        %1418 = vrot.lane.b32.xlu0 %v406, 88
        %v1419 = vpop.permute.xlu0 %1418
        %v1420 = vsel %vm433, %v1413, 0
        %v1422 = vsel %vm433, %v1415, 0
        %v1424 = vsel %vm433, %v1417, 0
        %v1426 = vsel %vm433, %v1419, 0
        %1428 = vmatprep.subr.mxu0 0.0
        %1429 = vmatpush1.xpose.msra.mxu0 0.0
        %1430 = vmatprep.subr.mxu0 0.0
        %1431 = vmatpush1.xpose.msra.mxu0 0.0
        %1432 = vmatprep.subr.mxu0 0.0
        %1433 = vmatpush1.xpose.msra.mxu0 0.0
        %1434 = vmatprep.subr.mxu0 0.0
        %1435 = vmatpush1.xpose.msra.mxu0 0.0
        %1436 = vmatprep.subr.mxu0 0.0
        %1437 = vmatpush1.xpose.msra.mxu0 0.0
        %1438 = vmatprep.subr.mxu0 0.0
        %1439 = vmatpush1.xpose.msra.mxu0 0.0
        %1440 = vmatprep.subr.mxu0 0.0
        %1441 = vmatpush1.xpose.msra.mxu0 0.0
        %1442 = vmatprep.subr.mxu0 0.0
        %1443 = vmatpush1.xpose.msra.mxu0 0.0
        %1444 = vmatprep.subr.mxu0 0.0
        %1445 = vmatpush1.xpose.msra.mxu0 0.0
        %1446 = vmatprep.subr.mxu0 0.0
        %1447 = vmatpush1.xpose.msra.mxu0 0.0
        %1448 = vmatprep.subr.mxu0 0.0
        %1449 = vmatpush1.xpose.msra.mxu0 0.0
        %1450 = vmatprep.subr.mxu0 0.0
        %1451 = vmatpush1.xpose.msra.mxu0 0.0
        %1452 = vmatprep.subr.mxu0 0.0
        %1453 = vmatpush1.xpose.msra.mxu0 0.0
        %1454 = vmatprep.subr.mxu0 0.0
        %1455 = vmatpush1.xpose.msra.mxu0 0.0
        %1456 = vmatprep.subr.mxu0 0.0
        %1457 = vmatpush1.xpose.msra.mxu0 %v1426
        %1458 = vmatprep.subr.mxu0 0.0
        %1459 = vmatpush1.xpose.msra.mxu0 %v1424
        %1460 = vmatprep.subr.mxu0 0.0
        %1461 = vmatpush2.xpose.msra.mxu0 0.0
        %1462 = vmatprep.subr.mxu0 0.0
        %1463 = vmatpush2.xpose.msra.mxu0 0.0
        %1464 = vmatprep.subr.mxu0 0.0
        %1465 = vmatpush2.xpose.msra.mxu0 0.0
        %1466 = vmatprep.subr.mxu0 0.0
        %1467 = vmatpush2.xpose.msra.mxu0 0.0
        %1468 = vmatprep.subr.mxu0 0.0
        %1469 = vmatpush2.xpose.msra.mxu0 0.0
        %1470 = vmatprep.subr.mxu0 0.0
        %1471 = vmatpush2.xpose.msra.mxu0 0.0
        %1472 = vmatprep.subr.mxu0 0.0
        %1473 = vmatpush2.xpose.msra.mxu0 0.0
        %1474 = vmatprep.subr.mxu0 0.0
        %1475 = vmatpush2.xpose.msra.mxu0 0.0
        %1476 = vmatprep.subr.mxu0 0.0
        %1477 = vmatpush2.xpose.msra.mxu0 0.0
        %1478 = vmatprep.subr.mxu0 0.0
        %1479 = vmatpush2.xpose.msra.mxu0 0.0
        %1480 = vmatprep.subr.mxu0 0.0
        %1481 = vmatpush2.xpose.msra.mxu0 0.0
        %1482 = vmatprep.subr.mxu0 0.0
        %1483 = vmatpush2.xpose.msra.mxu0 0.0
        %1484 = vmatprep.subr.mxu0 0.0
        %1485 = vmatpush2.xpose.msra.mxu0 0.0
        %1486 = vmatprep.subr.mxu0 0.0
        %1487 = vmatpush2.xpose.msra.mxu0 0.0
        %1488 = vmatprep.subr.mxu0 0.0
        %1489 = vmatpush2.xpose.msra.mxu0 0.0
        %1490 = vmatprep.subr.mxu0 0.0
        %1491 = vmatpush2.xpose.msra.mxu0 0.0
        %1492 = vmatprep.mubr.f32.mxu0 0.0
        %1493 = vmatmul.mubr.f32.gmra.mxu0 %v1420
        %v1494 = vpop.f32.mrf.mxu0
        %v1495 = vadd.f32 %v1226, %v1494
        %v1496 = vpop.f32.mrf.mxu0
        %1497 = vmatprep.mubr.f32.mxu0 0.0
        %1498 = vmatmul.mubr.f32.gmra.mxu0 %v1422
        %v1499 = vpop.f32.mrf.mxu0
        %v1500 = vadd.f32 %v1227, %v1499
        %v1501 = vpop.f32.mrf.mxu0
        %1502 = vdwg.mxu0
        %1503 = vrot.lane.b32.xlu0 %v411, 120
        %v1504 = vpop.permute.xlu0 %1503
        %1505 = vrot.lane.b32.xlu0 %v416, 120
        %v1506 = vpop.permute.xlu0 %1505
        %1507 = vrot.lane.b32.xlu0 %v411, 88
        %v1508 = vpop.permute.xlu0 %1507
        %1509 = vrot.lane.b32.xlu0 %v416, 88
        %v1510 = vpop.permute.xlu0 %1509
        %v1511 = vsel %vm433, %v1504, 0
        %v1513 = vsel %vm433, %v1506, 0
        %v1515 = vsel %vm433, %v1508, 0
        %v1517 = vsel %vm433, %v1510, 0
        %1519 = vmatprep.subr.mxu0 0.0
        %1520 = vmatpush1.xpose.msra.mxu0 0.0
        %1521 = vmatprep.subr.mxu0 0.0
        %1522 = vmatpush1.xpose.msra.mxu0 0.0
        %1523 = vmatprep.subr.mxu0 0.0
        %1524 = vmatpush1.xpose.msra.mxu0 0.0
        %1525 = vmatprep.subr.mxu0 0.0
        %1526 = vmatpush1.xpose.msra.mxu0 0.0
        %1527 = vmatprep.subr.mxu0 0.0
        %1528 = vmatpush1.xpose.msra.mxu0 0.0
        %1529 = vmatprep.subr.mxu0 0.0
        %1530 = vmatpush1.xpose.msra.mxu0 0.0
        %1531 = vmatprep.subr.mxu0 0.0
        %1532 = vmatpush1.xpose.msra.mxu0 0.0
        %1533 = vmatprep.subr.mxu0 0.0
        %1534 = vmatpush1.xpose.msra.mxu0 0.0
        %1535 = vmatprep.subr.mxu0 0.0
        %1536 = vmatpush1.xpose.msra.mxu0 0.0
        %1537 = vmatprep.subr.mxu0 0.0
        %1538 = vmatpush1.xpose.msra.mxu0 0.0
        %1539 = vmatprep.subr.mxu0 0.0
        %1540 = vmatpush1.xpose.msra.mxu0 0.0
        %1541 = vmatprep.subr.mxu0 0.0
        %1542 = vmatpush1.xpose.msra.mxu0 0.0
        %1543 = vmatprep.subr.mxu0 0.0
        %1544 = vmatpush1.xpose.msra.mxu0 0.0
        %1545 = vmatprep.subr.mxu0 0.0
        %1546 = vmatpush1.xpose.msra.mxu0 0.0
        %1547 = vmatprep.subr.mxu0 0.0
        %1548 = vmatpush1.xpose.msra.mxu0 %v1517
        %1549 = vmatprep.subr.mxu0 0.0
        %1550 = vmatpush1.xpose.msra.mxu0 %v1515
        %1551 = vmatprep.subr.mxu0 0.0
        %1552 = vmatpush2.xpose.msra.mxu0 0.0
        %1553 = vmatprep.subr.mxu0 0.0
        %1554 = vmatpush2.xpose.msra.mxu0 0.0
        %1555 = vmatprep.subr.mxu0 0.0
        %1556 = vmatpush2.xpose.msra.mxu0 0.0
        %1557 = vmatprep.subr.mxu0 0.0
        %1558 = vmatpush2.xpose.msra.mxu0 0.0
        %1559 = vmatprep.subr.mxu0 0.0
        %1560 = vmatpush2.xpose.msra.mxu0 0.0
        %1561 = vmatprep.subr.mxu0 0.0
        %1562 = vmatpush2.xpose.msra.mxu0 0.0
        %1563 = vmatprep.subr.mxu0 0.0
        %1564 = vmatpush2.xpose.msra.mxu0 0.0
        %1565 = vmatprep.subr.mxu0 0.0
        %1566 = vmatpush2.xpose.msra.mxu0 0.0
        %1567 = vmatprep.subr.mxu0 0.0
        %1568 = vmatpush2.xpose.msra.mxu0 0.0
        %1569 = vmatprep.subr.mxu0 0.0
        %1570 = vmatpush2.xpose.msra.mxu0 0.0
        %1571 = vmatprep.subr.mxu0 0.0
        %1572 = vmatpush2.xpose.msra.mxu0 0.0
        %1573 = vmatprep.subr.mxu0 0.0
        %1574 = vmatpush2.xpose.msra.mxu0 0.0
        %1575 = vmatprep.subr.mxu0 0.0
        %1576 = vmatpush2.xpose.msra.mxu0 0.0
        %1577 = vmatprep.subr.mxu0 0.0
        %1578 = vmatpush2.xpose.msra.mxu0 0.0
        %1579 = vmatprep.subr.mxu0 0.0
        %1580 = vmatpush2.xpose.msra.mxu0 0.0
        %1581 = vmatprep.subr.mxu0 0.0
        %1582 = vmatpush2.xpose.msra.mxu0 0.0
        %1583 = vmatprep.mubr.f32.mxu0 0.0
        %1584 = vmatmul.mubr.f32.gmra.mxu0 %v1511
        %v1585 = vpop.f32.mrf.mxu0
        %v1586 = vadd.f32 %v1228, %v1585
        %v1587 = vpop.f32.mrf.mxu0
        %1588 = vmatprep.mubr.f32.mxu0 0.0
        %1589 = vmatmul.mubr.f32.gmra.mxu0 %v1513
        %v1590 = vpop.f32.mrf.mxu0
        %v1591 = vadd.f32 %v1229, %v1590
        %v1592 = vpop.f32.mrf.mxu0
        %1593 = vdwg.mxu0
        %v1594 = vsel %vm784, %v1313, -inf
        %1595 = vmax.xlane.f32.xlu0 %v1594
        %v1596 = vpop.xlane.xlu0 %1595
        %v1597 = vsel %vm784, %v1318, -inf
        %1598 = vmax.xlane.f32.xlu0 %v1597
        %v1599 = vpop.xlane.xlu0 %1598
        %v1600 = vsel %vm784, %v1404, -inf
        %1601 = vmax.xlane.f32.xlu0 %v1600
        %v1602 = vpop.xlane.xlu0 %1601
        %v1603 = vsel %vm784, %v1409, -inf
        %1604 = vmax.xlane.f32.xlu0 %v1603
        %v1605 = vpop.xlane.xlu0 %1604
        %v1606 = vsel %vm784, %v1495, -inf
        %1607 = vmax.xlane.f32.xlu0 %v1606
        %v1608 = vpop.xlane.xlu0 %1607
        %v1609 = vsel %vm784, %v1500, -inf
        %1610 = vmax.xlane.f32.xlu0 %v1609
        %v1611 = vpop.xlane.xlu0 %1610
        %v1612 = vsel %vm784, %v1586, -inf
        %1613 = vmax.xlane.f32.xlu0 %v1612
        %v1614 = vpop.xlane.xlu0 %1613
        %v1615 = vsel %vm784, %v1591, -inf
        %1616 = vmax.xlane.f32.xlu0 %v1615
        %v1617 = vpop.xlane.xlu0 %1616
        %v1618 = vsub.f32 %v1313, %v1596
        %v1619 = vsub.f32 %v1318, %v1599
        %v1620 = vsub.f32 %v1404, %v1602
        %v1621 = vsub.f32 %v1409, %v1605
        %v1622 = vsub.f32 %v1495, %v1608
        %v1623 = vsub.f32 %v1500, %v1611
        %v1624 = vsub.f32 %v1586, %v1614
        %v1625 = vsub.f32 %v1591, %v1617
        %v1626 = vmul.f32 %v1618, 1.442695
        %v1627 = vpow.pop %v1626
        %v1628 = vmul.f32 %v1619, 1.442695
        %v1629 = vpow.pop %v1628
        %v1630 = vmul.f32 %v1620, 1.442695
        %v1631 = vpow.pop %v1630
        %v1632 = vmul.f32 %v1621, 1.442695
        %v1633 = vpow.pop %v1632
        %v1634 = vmul.f32 %v1622, 1.442695
        %v1635 = vpow.pop %v1634
        %v1636 = vmul.f32 %v1623, 1.442695
        %v1637 = vpow.pop %v1636
        %v1638 = vmul.f32 %v1624, 1.442695
        %v1639 = vpow.pop %v1638
        %v1640 = vmul.f32 %v1625, 1.442695
        %v1641 = vpow.pop %v1640
        %v1642 = vsel %vm784, %v1627, 0.0
        %1643 = vadd.xlane.f32.xlu0 %v1642
        %v1644 = vpop.xlane.xlu0 %1643
        %v1645 = vsel %vm784, %v1629, 0.0
        %1646 = vadd.xlane.f32.xlu0 %v1645
        %v1647 = vpop.xlane.xlu0 %1646
        %v1648 = vsel %vm784, %v1631, 0.0
        %1649 = vadd.xlane.f32.xlu0 %v1648
        %v1650 = vpop.xlane.xlu0 %1649
        %v1651 = vsel %vm784, %v1633, 0.0
        %1652 = vadd.xlane.f32.xlu0 %v1651
        %v1653 = vpop.xlane.xlu0 %1652
        %v1654 = vsel %vm784, %v1635, 0.0
        %1655 = vadd.xlane.f32.xlu0 %v1654
        %v1656 = vpop.xlane.xlu0 %1655
        %v1657 = vsel %vm784, %v1637, 0.0
        %1658 = vadd.xlane.f32.xlu0 %v1657
        %v1659 = vpop.xlane.xlu0 %1658
        %v1660 = vsel %vm784, %v1639, 0.0
        %1661 = vadd.xlane.f32.xlu0 %v1660
        %v1662 = vpop.xlane.xlu0 %1661
        %v1663 = vsel %vm784, %v1641, 0.0
        %1664 = vadd.xlane.f32.xlu0 %v1663
        %v1665 = vpop.xlane.xlu0 %1664
        %v1666 = vrcp.pop %v1644
        %v1667 = vmul.f32 %v1627, %v1666
        %v1668 = vrcp.pop %v1647
        %v1669 = vmul.f32 %v1629, %v1668
        %v1670 = vrcp.pop %v1650
        %v1671 = vmul.f32 %v1631, %v1670
        %v1672 = vrcp.pop %v1653
        %v1673 = vmul.f32 %v1633, %v1672
        %v1674 = vrcp.pop %v1656
        %v1675 = vmul.f32 %v1635, %v1674
        %v1676 = vrcp.pop %v1659
        %v1677 = vmul.f32 %v1637, %v1676
        %v1678 = vrcp.pop %v1662
        %v1679 = vmul.f32 %v1639, %v1678
        %v1680 = vrcp.pop %v1665
        %v1681 = vmul.f32 %v1641, %v1680
        %1682 = vrot.lane.b32.xlu0 %v381, 56
        %v1683 = vpop.permute.xlu0 %1682
        %1684 = vrot.lane.b32.xlu0 %v386, 56
        %v1685 = vpop.permute.xlu0 %1684
        %v1689 = vsel %vm784, %v1667, 0
        %v1692 = vsel %vm784, %v1669, 0
        %1694 = vmatprep.subr.mxu0 0.0
        %1695 = vmatpush1.msra.mxu0 0.0
        %1696 = vmatprep.subr.mxu0 0.0
        %1697 = vmatpush1.msra.mxu0 0.0
        %1698 = vmatprep.subr.mxu0 0.0
        %1699 = vmatpush1.msra.mxu0 0.0
        %1700 = vmatprep.subr.mxu0 0.0
        %1701 = vmatpush1.msra.mxu0 0.0
        %1702 = vmatprep.subr.mxu0 0.0
        %1703 = vmatpush1.msra.mxu0 0.0
        %1704 = vmatprep.subr.mxu0 0.0
        %1705 = vmatpush1.msra.mxu0 0.0
        %1706 = vmatprep.subr.mxu0 0.0
        %1707 = vmatpush1.msra.mxu0 0.0
        %1708 = vmatprep.subr.mxu0 0.0
        %1709 = vmatpush1.msra.mxu0 0.0
        %1710 = vmatprep.subr.mxu0 0.0
        %1711 = vmatpush1.msra.mxu0 0.0
        %1712 = vmatprep.subr.mxu0 0.0
        %1713 = vmatpush1.msra.mxu0 0.0
        %1714 = vmatprep.subr.mxu0 0.0
        %1715 = vmatpush1.msra.mxu0 0.0
        %1716 = vmatprep.subr.mxu0 0.0
        %1717 = vmatpush1.msra.mxu0 0.0
        %1718 = vmatprep.subr.mxu0 0.0
        %1719 = vmatpush1.msra.mxu0 0.0
        %1720 = vmatprep.subr.mxu0 0.0
        %1721 = vmatpush1.msra.mxu0 0.0
        %1722 = vmatprep.subr.mxu0 0.0
        %1723 = vmatpush1.msra.mxu0 %v1685
        %1724 = vmatprep.subr.mxu0 0.0
        %1725 = vmatpush1.msra.mxu0 %v1683
        %1726 = vmatprep.subr.mxu0 0.0
        %1727 = vmatpush2.msra.mxu0 0.0
        %1728 = vmatprep.subr.mxu0 0.0
        %1729 = vmatpush2.msra.mxu0 0.0
        %1730 = vmatprep.subr.mxu0 0.0
        %1731 = vmatpush2.msra.mxu0 0.0
        %1732 = vmatprep.subr.mxu0 0.0
        %1733 = vmatpush2.msra.mxu0 0.0
        %1734 = vmatprep.subr.mxu0 0.0
        %1735 = vmatpush2.msra.mxu0 0.0
        %1736 = vmatprep.subr.mxu0 0.0
        %1737 = vmatpush2.msra.mxu0 0.0
        %1738 = vmatprep.subr.mxu0 0.0
        %1739 = vmatpush2.msra.mxu0 0.0
        %1740 = vmatprep.subr.mxu0 0.0
        %1741 = vmatpush2.msra.mxu0 0.0
        %1742 = vmatprep.subr.mxu0 0.0
        %1743 = vmatpush2.msra.mxu0 0.0
        %1744 = vmatprep.subr.mxu0 0.0
        %1745 = vmatpush2.msra.mxu0 0.0
        %1746 = vmatprep.subr.mxu0 0.0
        %1747 = vmatpush2.msra.mxu0 0.0
        %1748 = vmatprep.subr.mxu0 0.0
        %1749 = vmatpush2.msra.mxu0 0.0
        %1750 = vmatprep.subr.mxu0 0.0
        %1751 = vmatpush2.msra.mxu0 0.0
        %1752 = vmatprep.subr.mxu0 0.0
        %1753 = vmatpush2.msra.mxu0 0.0
        %1754 = vmatprep.subr.mxu0 0.0
        %1755 = vmatpush2.msra.mxu0 0.0
        %1756 = vmatprep.subr.mxu0 0.0
        %1757 = vmatpush2.msra.mxu0 0.0
        %1758 = vmatprep.mubr.f32.mxu0 0.0
        %1759 = vmatmul.mubr.f32.gmra.mxu0 %v1689
        %v1760 = vpop.f32.mrf.mxu0
        %v1761 = vadd.f32 0.0, %v1760
        %v1762 = vpop.f32.mrf.mxu0
        %1763 = vmatprep.mubr.f32.mxu0 0.0
        %1764 = vmatmul.mubr.f32.gmra.mxu0 %v1692
        %v1765 = vpop.f32.mrf.mxu0
        %v1766 = vadd.f32 0.0, %v1765
        %v1767 = vpop.f32.mrf.mxu0
        %1768 = vdwg.mxu0
        %1769 = vrot.lane.b32.xlu0 %v391, 56
        %v1770 = vpop.permute.xlu0 %1769
        %1771 = vrot.lane.b32.xlu0 %v396, 56
        %v1772 = vpop.permute.xlu0 %1771
        %v1776 = vsel %vm784, %v1671, 0
        %v1779 = vsel %vm784, %v1673, 0
        %1781 = vmatprep.subr.mxu0 0.0
        %1782 = vmatpush1.msra.mxu0 0.0
        %1783 = vmatprep.subr.mxu0 0.0
        %1784 = vmatpush1.msra.mxu0 0.0
        %1785 = vmatprep.subr.mxu0 0.0
        %1786 = vmatpush1.msra.mxu0 0.0
        %1787 = vmatprep.subr.mxu0 0.0
        %1788 = vmatpush1.msra.mxu0 0.0
        %1789 = vmatprep.subr.mxu0 0.0
        %1790 = vmatpush1.msra.mxu0 0.0
        %1791 = vmatprep.subr.mxu0 0.0
        %1792 = vmatpush1.msra.mxu0 0.0
        %1793 = vmatprep.subr.mxu0 0.0
        %1794 = vmatpush1.msra.mxu0 0.0
        %1795 = vmatprep.subr.mxu0 0.0
        %1796 = vmatpush1.msra.mxu0 0.0
        %1797 = vmatprep.subr.mxu0 0.0
        %1798 = vmatpush1.msra.mxu0 0.0
        %1799 = vmatprep.subr.mxu0 0.0
        %1800 = vmatpush1.msra.mxu0 0.0
        %1801 = vmatprep.subr.mxu0 0.0
        %1802 = vmatpush1.msra.mxu0 0.0
        %1803 = vmatprep.subr.mxu0 0.0
        %1804 = vmatpush1.msra.mxu0 0.0
        %1805 = vmatprep.subr.mxu0 0.0
        %1806 = vmatpush1.msra.mxu0 0.0
        %1807 = vmatprep.subr.mxu0 0.0
        %1808 = vmatpush1.msra.mxu0 0.0
        %1809 = vmatprep.subr.mxu0 0.0
        %1810 = vmatpush1.msra.mxu0 %v1772
        %1811 = vmatprep.subr.mxu0 0.0
        %1812 = vmatpush1.msra.mxu0 %v1770
        %1813 = vmatprep.subr.mxu0 0.0
        %1814 = vmatpush2.msra.mxu0 0.0
        %1815 = vmatprep.subr.mxu0 0.0
        %1816 = vmatpush2.msra.mxu0 0.0
        %1817 = vmatprep.subr.mxu0 0.0
        %1818 = vmatpush2.msra.mxu0 0.0
        %1819 = vmatprep.subr.mxu0 0.0
        %1820 = vmatpush2.msra.mxu0 0.0
        %1821 = vmatprep.subr.mxu0 0.0
        %1822 = vmatpush2.msra.mxu0 0.0
        %1823 = vmatprep.subr.mxu0 0.0
        %1824 = vmatpush2.msra.mxu0 0.0
        %1825 = vmatprep.subr.mxu0 0.0
        %1826 = vmatpush2.msra.mxu0 0.0
        %1827 = vmatprep.subr.mxu0 0.0
        %1828 = vmatpush2.msra.mxu0 0.0
        %1829 = vmatprep.subr.mxu0 0.0
        %1830 = vmatpush2.msra.mxu0 0.0
        %1831 = vmatprep.subr.mxu0 0.0
        %1832 = vmatpush2.msra.mxu0 0.0
        %1833 = vmatprep.subr.mxu0 0.0
        %1834 = vmatpush2.msra.mxu0 0.0
        %1835 = vmatprep.subr.mxu0 0.0
        %1836 = vmatpush2.msra.mxu0 0.0
        %1837 = vmatprep.subr.mxu0 0.0
        %1838 = vmatpush2.msra.mxu0 0.0
        %1839 = vmatprep.subr.mxu0 0.0
        %1840 = vmatpush2.msra.mxu0 0.0
        %1841 = vmatprep.subr.mxu0 0.0
        %1842 = vmatpush2.msra.mxu0 0.0
        %1843 = vmatprep.subr.mxu0 0.0
        %1844 = vmatpush2.msra.mxu0 0.0
        %1845 = vmatprep.mubr.f32.mxu0 0.0
        %1846 = vmatmul.mubr.f32.gmra.mxu0 %v1776
        %v1847 = vpop.f32.mrf.mxu0
        %v1848 = vadd.f32 0.0, %v1847
        %v1849 = vpop.f32.mrf.mxu0
        %1850 = vmatprep.mubr.f32.mxu0 0.0
        %1851 = vmatmul.mubr.f32.gmra.mxu0 %v1779
        %v1852 = vpop.f32.mrf.mxu0
        %v1853 = vadd.f32 0.0, %v1852
        %v1854 = vpop.f32.mrf.mxu0
        %1855 = vdwg.mxu0
        %1856 = vrot.lane.b32.xlu0 %v401, 56
        %v1857 = vpop.permute.xlu0 %1856
        %1858 = vrot.lane.b32.xlu0 %v406, 56
        %v1859 = vpop.permute.xlu0 %1858
        %v1863 = vsel %vm784, %v1675, 0
        %v1866 = vsel %vm784, %v1677, 0
        %1868 = vmatprep.subr.mxu0 0.0
        %1869 = vmatpush1.msra.mxu0 0.0
        %1870 = vmatprep.subr.mxu0 0.0
        %1871 = vmatpush1.msra.mxu0 0.0
        %1872 = vmatprep.subr.mxu0 0.0
        %1873 = vmatpush1.msra.mxu0 0.0
        %1874 = vmatprep.subr.mxu0 0.0
        %1875 = vmatpush1.msra.mxu0 0.0
        %1876 = vmatprep.subr.mxu0 0.0
        %1877 = vmatpush1.msra.mxu0 0.0
        %1878 = vmatprep.subr.mxu0 0.0
        %1879 = vmatpush1.msra.mxu0 0.0
        %1880 = vmatprep.subr.mxu0 0.0
        %1881 = vmatpush1.msra.mxu0 0.0
        %1882 = vmatprep.subr.mxu0 0.0
        %1883 = vmatpush1.msra.mxu0 0.0
        %1884 = vmatprep.subr.mxu0 0.0
        %1885 = vmatpush1.msra.mxu0 0.0
        %1886 = vmatprep.subr.mxu0 0.0
        %1887 = vmatpush1.msra.mxu0 0.0
        %1888 = vmatprep.subr.mxu0 0.0
        %1889 = vmatpush1.msra.mxu0 0.0
        %1890 = vmatprep.subr.mxu0 0.0
        %1891 = vmatpush1.msra.mxu0 0.0
        %1892 = vmatprep.subr.mxu0 0.0
        %1893 = vmatpush1.msra.mxu0 0.0
        %1894 = vmatprep.subr.mxu0 0.0
        %1895 = vmatpush1.msra.mxu0 0.0
        %1896 = vmatprep.subr.mxu0 0.0
        %1897 = vmatpush1.msra.mxu0 %v1859
        %1898 = vmatprep.subr.mxu0 0.0
        %1899 = vmatpush1.msra.mxu0 %v1857
        %1900 = vmatprep.subr.mxu0 0.0
        %1901 = vmatpush2.msra.mxu0 0.0
        %1902 = vmatprep.subr.mxu0 0.0
        %1903 = vmatpush2.msra.mxu0 0.0
        %1904 = vmatprep.subr.mxu0 0.0
        %1905 = vmatpush2.msra.mxu0 0.0
        %1906 = vmatprep.subr.mxu0 0.0
        %1907 = vmatpush2.msra.mxu0 0.0
        %1908 = vmatprep.subr.mxu0 0.0
        %1909 = vmatpush2.msra.mxu0 0.0
        %1910 = vmatprep.subr.mxu0 0.0
        %1911 = vmatpush2.msra.mxu0 0.0
        %1912 = vmatprep.subr.mxu0 0.0
        %1913 = vmatpush2.msra.mxu0 0.0
        %1914 = vmatprep.subr.mxu0 0.0
        %1915 = vmatpush2.msra.mxu0 0.0
        %1916 = vmatprep.subr.mxu0 0.0
        %1917 = vmatpush2.msra.mxu0 0.0
        %1918 = vmatprep.subr.mxu0 0.0
        %1919 = vmatpush2.msra.mxu0 0.0
        %1920 = vmatprep.subr.mxu0 0.0
        %1921 = vmatpush2.msra.mxu0 0.0
        %1922 = vmatprep.subr.mxu0 0.0
        %1923 = vmatpush2.msra.mxu0 0.0
        %1924 = vmatprep.subr.mxu0 0.0
        %1925 = vmatpush2.msra.mxu0 0.0
        %1926 = vmatprep.subr.mxu0 0.0
        %1927 = vmatpush2.msra.mxu0 0.0
        %1928 = vmatprep.subr.mxu0 0.0
        %1929 = vmatpush2.msra.mxu0 0.0
        %1930 = vmatprep.subr.mxu0 0.0
        %1931 = vmatpush2.msra.mxu0 0.0
        %1932 = vmatprep.mubr.f32.mxu0 0.0
        %1933 = vmatmul.mubr.f32.gmra.mxu0 %v1863
        %v1934 = vpop.f32.mrf.mxu0
        %v1935 = vadd.f32 0.0, %v1934
        %v1936 = vpop.f32.mrf.mxu0
        %1937 = vmatprep.mubr.f32.mxu0 0.0
        %1938 = vmatmul.mubr.f32.gmra.mxu0 %v1866
        %v1939 = vpop.f32.mrf.mxu0
        %v1940 = vadd.f32 0.0, %v1939
        %v1941 = vpop.f32.mrf.mxu0
        %1942 = vdwg.mxu0
        %1943 = vrot.lane.b32.xlu0 %v411, 56
        %v1944 = vpop.permute.xlu0 %1943
        %1945 = vrot.lane.b32.xlu0 %v416, 56
        %v1946 = vpop.permute.xlu0 %1945
        %v1950 = vsel %vm784, %v1679, 0
        %v1953 = vsel %vm784, %v1681, 0
        %1955 = vmatprep.subr.mxu0 0.0
        %1956 = vmatpush1.msra.mxu0 0.0
        %1957 = vmatprep.subr.mxu0 0.0
        %1958 = vmatpush1.msra.mxu0 0.0
        %1959 = vmatprep.subr.mxu0 0.0
        %1960 = vmatpush1.msra.mxu0 0.0
        %1961 = vmatprep.subr.mxu0 0.0
        %1962 = vmatpush1.msra.mxu0 0.0
        %1963 = vmatprep.subr.mxu0 0.0
        %1964 = vmatpush1.msra.mxu0 0.0
        %1965 = vmatprep.subr.mxu0 0.0
        %1966 = vmatpush1.msra.mxu0 0.0
        %1967 = vmatprep.subr.mxu0 0.0
        %1968 = vmatpush1.msra.mxu0 0.0
        %1969 = vmatprep.subr.mxu0 0.0
        %1970 = vmatpush1.msra.mxu0 0.0
        %1971 = vmatprep.subr.mxu0 0.0
        %1972 = vmatpush1.msra.mxu0 0.0
        %1973 = vmatprep.subr.mxu0 0.0
        %1974 = vmatpush1.msra.mxu0 0.0
        %1975 = vmatprep.subr.mxu0 0.0
        %1976 = vmatpush1.msra.mxu0 0.0
        %1977 = vmatprep.subr.mxu0 0.0
        %1978 = vmatpush1.msra.mxu0 0.0
        %1979 = vmatprep.subr.mxu0 0.0
        %1980 = vmatpush1.msra.mxu0 0.0
        %1981 = vmatprep.subr.mxu0 0.0
        %1982 = vmatpush1.msra.mxu0 0.0
        %1983 = vmatprep.subr.mxu0 0.0
        %1984 = vmatpush1.msra.mxu0 %v1946
        %1985 = vmatprep.subr.mxu0 0.0
        %1986 = vmatpush1.msra.mxu0 %v1944
        %1987 = vmatprep.subr.mxu0 0.0
        %1988 = vmatpush2.msra.mxu0 0.0
        %1989 = vmatprep.subr.mxu0 0.0
        %1990 = vmatpush2.msra.mxu0 0.0
        %1991 = vmatprep.subr.mxu0 0.0
        %1992 = vmatpush2.msra.mxu0 0.0
        %1993 = vmatprep.subr.mxu0 0.0
        %1994 = vmatpush2.msra.mxu0 0.0
        %1995 = vmatprep.subr.mxu0 0.0
        %1996 = vmatpush2.msra.mxu0 0.0
        %1997 = vmatprep.subr.mxu0 0.0
        %1998 = vmatpush2.msra.mxu0 0.0
        %1999 = vmatprep.subr.mxu0 0.0
        %2000 = vmatpush2.msra.mxu0 0.0
        %2001 = vmatprep.subr.mxu0 0.0
        %2002 = vmatpush2.msra.mxu0 0.0
        %2003 = vmatprep.subr.mxu0 0.0
        %2004 = vmatpush2.msra.mxu0 0.0
        %2005 = vmatprep.subr.mxu0 0.0
        %2006 = vmatpush2.msra.mxu0 0.0
        %2007 = vmatprep.subr.mxu0 0.0
        %2008 = vmatpush2.msra.mxu0 0.0
        %2009 = vmatprep.subr.mxu0 0.0
        %2010 = vmatpush2.msra.mxu0 0.0
        %2011 = vmatprep.subr.mxu0 0.0
        %2012 = vmatpush2.msra.mxu0 0.0
        %2013 = vmatprep.subr.mxu0 0.0
        %2014 = vmatpush2.msra.mxu0 0.0
        %2015 = vmatprep.subr.mxu0 0.0
        %2016 = vmatpush2.msra.mxu0 0.0
        %2017 = vmatprep.subr.mxu0 0.0
        %2018 = vmatpush2.msra.mxu0 0.0
        %2019 = vmatprep.mubr.f32.mxu0 0.0
        %2020 = vmatmul.mubr.f32.gmra.mxu0 %v1950
        %v2021 = vpop.f32.mrf.mxu0
        %v2022 = vadd.f32 0.0, %v2021
        %v2023 = vpop.f32.mrf.mxu0
        %2024 = vmatprep.mubr.f32.mxu0 0.0
        %2025 = vmatmul.mubr.f32.gmra.mxu0 %v1953
        %v2026 = vpop.f32.mrf.mxu0
        %v2027 = vadd.f32 0.0, %v2026
        %v2028 = vpop.f32.mrf.mxu0
        %2029 = vdwg.mxu0
        %s2030 = scalar_lea.vmem [#allocation2], 128
        %v2031 = vld [vmem:[%s2030] sm:$0xff]
        %v2032 = vld [vmem:[%s2030 + $0x8] sm:$0xff]
        %v2033 = vld [vmem:[%s2030 + $0x10] sm:$0xff]
        %v2034 = vld [vmem:[%s2030 + $0x18] sm:$0xff]
        %v2035 = vld [vmem:[%s2030 + $0x20] sm:$0xff]
        %v2036 = vld [vmem:[%s2030 + $0x28] sm:$0xff]
        %v2037 = vld [vmem:[%s2030 + $0x30] sm:$0xff]
        %v2038 = vld [vmem:[%s2030 + $0x38] sm:$0xff]
        %2039 = vrot.lane.b32.xlu0 %v381, 112
        %v2040 = vpop.permute.xlu0 %2039
        %2041 = vrot.lane.b32.xlu0 %v386, 112
        %v2042 = vpop.permute.xlu0 %2041
        %2043 = vrot.lane.b32.xlu0 %v381, 80
        %v2044 = vpop.permute.xlu0 %2043
        %2045 = vrot.lane.b32.xlu0 %v386, 80
        %v2046 = vpop.permute.xlu0 %2045
        %v2047 = vsel %vm433, %v2040, 0
        %v2049 = vsel %vm433, %v2042, 0
        %v2051 = vsel %vm433, %v2044, 0
        %v2053 = vsel %vm433, %v2046, 0
        %2055 = vmatprep.subr.mxu0 0.0
        %2056 = vmatpush1.xpose.msra.mxu0 0.0
        %2057 = vmatprep.subr.mxu0 0.0
        %2058 = vmatpush1.xpose.msra.mxu0 0.0
        %2059 = vmatprep.subr.mxu0 0.0
        %2060 = vmatpush1.xpose.msra.mxu0 0.0
        %2061 = vmatprep.subr.mxu0 0.0
        %2062 = vmatpush1.xpose.msra.mxu0 0.0
        %2063 = vmatprep.subr.mxu0 0.0
        %2064 = vmatpush1.xpose.msra.mxu0 0.0
        %2065 = vmatprep.subr.mxu0 0.0
        %2066 = vmatpush1.xpose.msra.mxu0 0.0
        %2067 = vmatprep.subr.mxu0 0.0
        %2068 = vmatpush1.xpose.msra.mxu0 0.0
        %2069 = vmatprep.subr.mxu0 0.0
        %2070 = vmatpush1.xpose.msra.mxu0 0.0
        %2071 = vmatprep.subr.mxu0 0.0
        %2072 = vmatpush1.xpose.msra.mxu0 0.0
        %2073 = vmatprep.subr.mxu0 0.0
        %2074 = vmatpush1.xpose.msra.mxu0 0.0
        %2075 = vmatprep.subr.mxu0 0.0
        %2076 = vmatpush1.xpose.msra.mxu0 0.0
        %2077 = vmatprep.subr.mxu0 0.0
        %2078 = vmatpush1.xpose.msra.mxu0 0.0
        %2079 = vmatprep.subr.mxu0 0.0
        %2080 = vmatpush1.xpose.msra.mxu0 0.0
        %2081 = vmatprep.subr.mxu0 0.0
        %2082 = vmatpush1.xpose.msra.mxu0 0.0
        %2083 = vmatprep.subr.mxu0 0.0
        %2084 = vmatpush1.xpose.msra.mxu0 %v2053
        %2085 = vmatprep.subr.mxu0 0.0
        %2086 = vmatpush1.xpose.msra.mxu0 %v2051
        %2087 = vmatprep.subr.mxu0 0.0
        %2088 = vmatpush2.xpose.msra.mxu0 0.0
        %2089 = vmatprep.subr.mxu0 0.0
        %2090 = vmatpush2.xpose.msra.mxu0 0.0
        %2091 = vmatprep.subr.mxu0 0.0
        %2092 = vmatpush2.xpose.msra.mxu0 0.0
        %2093 = vmatprep.subr.mxu0 0.0
        %2094 = vmatpush2.xpose.msra.mxu0 0.0
        %2095 = vmatprep.subr.mxu0 0.0
        %2096 = vmatpush2.xpose.msra.mxu0 0.0
        %2097 = vmatprep.subr.mxu0 0.0
        %2098 = vmatpush2.xpose.msra.mxu0 0.0
        %2099 = vmatprep.subr.mxu0 0.0
        %2100 = vmatpush2.xpose.msra.mxu0 0.0
        %2101 = vmatprep.subr.mxu0 0.0
        %2102 = vmatpush2.xpose.msra.mxu0 0.0
        %2103 = vmatprep.subr.mxu0 0.0
        %2104 = vmatpush2.xpose.msra.mxu0 0.0
        %2105 = vmatprep.subr.mxu0 0.0
        %2106 = vmatpush2.xpose.msra.mxu0 0.0
        %2107 = vmatprep.subr.mxu0 0.0
        %2108 = vmatpush2.xpose.msra.mxu0 0.0
        %2109 = vmatprep.subr.mxu0 0.0
        %2110 = vmatpush2.xpose.msra.mxu0 0.0
        %2111 = vmatprep.subr.mxu0 0.0
        %2112 = vmatpush2.xpose.msra.mxu0 0.0
        %2113 = vmatprep.subr.mxu0 0.0
        %2114 = vmatpush2.xpose.msra.mxu0 0.0
        %2115 = vmatprep.subr.mxu0 0.0
        %2116 = vmatpush2.xpose.msra.mxu0 0.0
        %2117 = vmatprep.subr.mxu0 0.0
        %2118 = vmatpush2.xpose.msra.mxu0 0.0
        %2119 = vmatprep.mubr.f32.mxu0 0.0
        %2120 = vmatmul.mubr.f32.gmra.mxu0 %v2047
        %v2121 = vpop.f32.mrf.mxu0
        %v2122 = vadd.f32 %v2031, %v2121
        %v2123 = vpop.f32.mrf.mxu0
        %2124 = vmatprep.mubr.f32.mxu0 0.0
        %2125 = vmatmul.mubr.f32.gmra.mxu0 %v2049
        %v2126 = vpop.f32.mrf.mxu0
        %v2127 = vadd.f32 %v2032, %v2126
        %v2128 = vpop.f32.mrf.mxu0
        %2129 = vdwg.mxu0
        %2130 = vrot.lane.b32.xlu0 %v391, 112
        %v2131 = vpop.permute.xlu0 %2130
        %2132 = vrot.lane.b32.xlu0 %v396, 112
        %v2133 = vpop.permute.xlu0 %2132
        %2134 = vrot.lane.b32.xlu0 %v391, 80
        %v2135 = vpop.permute.xlu0 %2134
        %2136 = vrot.lane.b32.xlu0 %v396, 80
        %v2137 = vpop.permute.xlu0 %2136
        %v2138 = vsel %vm433, %v2131, 0
        %v2140 = vsel %vm433, %v2133, 0
        %v2142 = vsel %vm433, %v2135, 0
        %v2144 = vsel %vm433, %v2137, 0
        %2146 = vmatprep.subr.mxu0 0.0
        %2147 = vmatpush1.xpose.msra.mxu0 0.0
        %2148 = vmatprep.subr.mxu0 0.0
        %2149 = vmatpush1.xpose.msra.mxu0 0.0
        %2150 = vmatprep.subr.mxu0 0.0
        %2151 = vmatpush1.xpose.msra.mxu0 0.0
        %2152 = vmatprep.subr.mxu0 0.0
        %2153 = vmatpush1.xpose.msra.mxu0 0.0
        %2154 = vmatprep.subr.mxu0 0.0
        %2155 = vmatpush1.xpose.msra.mxu0 0.0
        %2156 = vmatprep.subr.mxu0 0.0
        %2157 = vmatpush1.xpose.msra.mxu0 0.0
        %2158 = vmatprep.subr.mxu0 0.0
        %2159 = vmatpush1.xpose.msra.mxu0 0.0
        %2160 = vmatprep.subr.mxu0 0.0
        %2161 = vmatpush1.xpose.msra.mxu0 0.0
        %2162 = vmatprep.subr.mxu0 0.0
        %2163 = vmatpush1.xpose.msra.mxu0 0.0
        %2164 = vmatprep.subr.mxu0 0.0
        %2165 = vmatpush1.xpose.msra.mxu0 0.0
        %2166 = vmatprep.subr.mxu0 0.0
        %2167 = vmatpush1.xpose.msra.mxu0 0.0
        %2168 = vmatprep.subr.mxu0 0.0
        %2169 = vmatpush1.xpose.msra.mxu0 0.0
        %2170 = vmatprep.subr.mxu0 0.0
        %2171 = vmatpush1.xpose.msra.mxu0 0.0
        %2172 = vmatprep.subr.mxu0 0.0
        %2173 = vmatpush1.xpose.msra.mxu0 0.0
        %2174 = vmatprep.subr.mxu0 0.0
        %2175 = vmatpush1.xpose.msra.mxu0 %v2144
        %2176 = vmatprep.subr.mxu0 0.0
        %2177 = vmatpush1.xpose.msra.mxu0 %v2142
        %2178 = vmatprep.subr.mxu0 0.0
        %2179 = vmatpush2.xpose.msra.mxu0 0.0
        %2180 = vmatprep.subr.mxu0 0.0
        %2181 = vmatpush2.xpose.msra.mxu0 0.0
        %2182 = vmatprep.subr.mxu0 0.0
        %2183 = vmatpush2.xpose.msra.mxu0 0.0
        %2184 = vmatprep.subr.mxu0 0.0
        %2185 = vmatpush2.xpose.msra.mxu0 0.0
        %2186 = vmatprep.subr.mxu0 0.0
        %2187 = vmatpush2.xpose.msra.mxu0 0.0
        %2188 = vmatprep.subr.mxu0 0.0
        %2189 = vmatpush2.xpose.msra.mxu0 0.0
        %2190 = vmatprep.subr.mxu0 0.0
        %2191 = vmatpush2.xpose.msra.mxu0 0.0
        %2192 = vmatprep.subr.mxu0 0.0
        %2193 = vmatpush2.xpose.msra.mxu0 0.0
        %2194 = vmatprep.subr.mxu0 0.0
        %2195 = vmatpush2.xpose.msra.mxu0 0.0
        %2196 = vmatprep.subr.mxu0 0.0
        %2197 = vmatpush2.xpose.msra.mxu0 0.0
        %2198 = vmatprep.subr.mxu0 0.0
        %2199 = vmatpush2.xpose.msra.mxu0 0.0
        %2200 = vmatprep.subr.mxu0 0.0
        %2201 = vmatpush2.xpose.msra.mxu0 0.0
        %2202 = vmatprep.subr.mxu0 0.0
        %2203 = vmatpush2.xpose.msra.mxu0 0.0
        %2204 = vmatprep.subr.mxu0 0.0
        %2205 = vmatpush2.xpose.msra.mxu0 0.0
        %2206 = vmatprep.subr.mxu0 0.0
        %2207 = vmatpush2.xpose.msra.mxu0 0.0
        %2208 = vmatprep.subr.mxu0 0.0
        %2209 = vmatpush2.xpose.msra.mxu0 0.0
        %2210 = vmatprep.mubr.f32.mxu0 0.0
        %2211 = vmatmul.mubr.f32.gmra.mxu0 %v2138
        %v2212 = vpop.f32.mrf.mxu0
        %v2213 = vadd.f32 %v2033, %v2212
        %v2214 = vpop.f32.mrf.mxu0
        %2215 = vmatprep.mubr.f32.mxu0 0.0
        %2216 = vmatmul.mubr.f32.gmra.mxu0 %v2140
        %v2217 = vpop.f32.mrf.mxu0
        %v2218 = vadd.f32 %v2034, %v2217
        %v2219 = vpop.f32.mrf.mxu0
        %2220 = vdwg.mxu0
        %2221 = vrot.lane.b32.xlu0 %v401, 112
        %v2222 = vpop.permute.xlu0 %2221
        %2223 = vrot.lane.b32.xlu0 %v406, 112
        %v2224 = vpop.permute.xlu0 %2223
        %2225 = vrot.lane.b32.xlu0 %v401, 80
        %v2226 = vpop.permute.xlu0 %2225
        %2227 = vrot.lane.b32.xlu0 %v406, 80
        %v2228 = vpop.permute.xlu0 %2227
        %v2229 = vsel %vm433, %v2222, 0
        %v2231 = vsel %vm433, %v2224, 0
        %v2233 = vsel %vm433, %v2226, 0
        %v2235 = vsel %vm433, %v2228, 0
        %2237 = vmatprep.subr.mxu0 0.0
        %2238 = vmatpush1.xpose.msra.mxu0 0.0
        %2239 = vmatprep.subr.mxu0 0.0
        %2240 = vmatpush1.xpose.msra.mxu0 0.0
        %2241 = vmatprep.subr.mxu0 0.0
        %2242 = vmatpush1.xpose.msra.mxu0 0.0
        %2243 = vmatprep.subr.mxu0 0.0
        %2244 = vmatpush1.xpose.msra.mxu0 0.0
        %2245 = vmatprep.subr.mxu0 0.0
        %2246 = vmatpush1.xpose.msra.mxu0 0.0
        %2247 = vmatprep.subr.mxu0 0.0
        %2248 = vmatpush1.xpose.msra.mxu0 0.0
        %2249 = vmatprep.subr.mxu0 0.0
        %2250 = vmatpush1.xpose.msra.mxu0 0.0
        %2251 = vmatprep.subr.mxu0 0.0
        %2252 = vmatpush1.xpose.msra.mxu0 0.0
        %2253 = vmatprep.subr.mxu0 0.0
        %2254 = vmatpush1.xpose.msra.mxu0 0.0
        %2255 = vmatprep.subr.mxu0 0.0
        %2256 = vmatpush1.xpose.msra.mxu0 0.0
        %2257 = vmatprep.subr.mxu0 0.0
        %2258 = vmatpush1.xpose.msra.mxu0 0.0
        %2259 = vmatprep.subr.mxu0 0.0
        %2260 = vmatpush1.xpose.msra.mxu0 0.0
        %2261 = vmatprep.subr.mxu0 0.0
        %2262 = vmatpush1.xpose.msra.mxu0 0.0
        %2263 = vmatprep.subr.mxu0 0.0
        %2264 = vmatpush1.xpose.msra.mxu0 0.0
        %2265 = vmatprep.subr.mxu0 0.0
        %2266 = vmatpush1.xpose.msra.mxu0 %v2235
        %2267 = vmatprep.subr.mxu0 0.0
        %2268 = vmatpush1.xpose.msra.mxu0 %v2233
        %2269 = vmatprep.subr.mxu0 0.0
        %2270 = vmatpush2.xpose.msra.mxu0 0.0
        %2271 = vmatprep.subr.mxu0 0.0
        %2272 = vmatpush2.xpose.msra.mxu0 0.0
        %2273 = vmatprep.subr.mxu0 0.0
        %2274 = vmatpush2.xpose.msra.mxu0 0.0
        %2275 = vmatprep.subr.mxu0 0.0
        %2276 = vmatpush2.xpose.msra.mxu0 0.0
        %2277 = vmatprep.subr.mxu0 0.0
        %2278 = vmatpush2.xpose.msra.mxu0 0.0
        %2279 = vmatprep.subr.mxu0 0.0
        %2280 = vmatpush2.xpose.msra.mxu0 0.0
        %2281 = vmatprep.subr.mxu0 0.0
        %2282 = vmatpush2.xpose.msra.mxu0 0.0
        %2283 = vmatprep.subr.mxu0 0.0
        %2284 = vmatpush2.xpose.msra.mxu0 0.0
        %2285 = vmatprep.subr.mxu0 0.0
        %2286 = vmatpush2.xpose.msra.mxu0 0.0
        %2287 = vmatprep.subr.mxu0 0.0
        %2288 = vmatpush2.xpose.msra.mxu0 0.0
        %2289 = vmatprep.subr.mxu0 0.0
        %2290 = vmatpush2.xpose.msra.mxu0 0.0
        %2291 = vmatprep.subr.mxu0 0.0
        %2292 = vmatpush2.xpose.msra.mxu0 0.0
        %2293 = vmatprep.subr.mxu0 0.0
        %2294 = vmatpush2.xpose.msra.mxu0 0.0
        %2295 = vmatprep.subr.mxu0 0.0
        %2296 = vmatpush2.xpose.msra.mxu0 0.0
        %2297 = vmatprep.subr.mxu0 0.0
        %2298 = vmatpush2.xpose.msra.mxu0 0.0
        %2299 = vmatprep.subr.mxu0 0.0
        %2300 = vmatpush2.xpose.msra.mxu0 0.0
        %2301 = vmatprep.mubr.f32.mxu0 0.0
        %2302 = vmatmul.mubr.f32.gmra.mxu0 %v2229
        %v2303 = vpop.f32.mrf.mxu0
        %v2304 = vadd.f32 %v2035, %v2303
        %v2305 = vpop.f32.mrf.mxu0
        %2306 = vmatprep.mubr.f32.mxu0 0.0
        %2307 = vmatmul.mubr.f32.gmra.mxu0 %v2231
        %v2308 = vpop.f32.mrf.mxu0
        %v2309 = vadd.f32 %v2036, %v2308
        %v2310 = vpop.f32.mrf.mxu0
        %2311 = vdwg.mxu0
        %2312 = vrot.lane.b32.xlu0 %v411, 112
        %v2313 = vpop.permute.xlu0 %2312
        %2314 = vrot.lane.b32.xlu0 %v416, 112
        %v2315 = vpop.permute.xlu0 %2314
        %2316 = vrot.lane.b32.xlu0 %v411, 80
        %v2317 = vpop.permute.xlu0 %2316
        %2318 = vrot.lane.b32.xlu0 %v416, 80
        %v2319 = vpop.permute.xlu0 %2318
        %v2320 = vsel %vm433, %v2313, 0
        %v2322 = vsel %vm433, %v2315, 0
        %v2324 = vsel %vm433, %v2317, 0
        %v2326 = vsel %vm433, %v2319, 0
        %2328 = vmatprep.subr.mxu0 0.0
        %2329 = vmatpush1.xpose.msra.mxu0 0.0
        %2330 = vmatprep.subr.mxu0 0.0
        %2331 = vmatpush1.xpose.msra.mxu0 0.0
        %2332 = vmatprep.subr.mxu0 0.0
        %2333 = vmatpush1.xpose.msra.mxu0 0.0
        %2334 = vmatprep.subr.mxu0 0.0
        %2335 = vmatpush1.xpose.msra.mxu0 0.0
        %2336 = vmatprep.subr.mxu0 0.0
        %2337 = vmatpush1.xpose.msra.mxu0 0.0
        %2338 = vmatprep.subr.mxu0 0.0
        %2339 = vmatpush1.xpose.msra.mxu0 0.0
        %2340 = vmatprep.subr.mxu0 0.0
        %2341 = vmatpush1.xpose.msra.mxu0 0.0
        %2342 = vmatprep.subr.mxu0 0.0
        %2343 = vmatpush1.xpose.msra.mxu0 0.0
        %2344 = vmatprep.subr.mxu0 0.0
        %2345 = vmatpush1.xpose.msra.mxu0 0.0
        %2346 = vmatprep.subr.mxu0 0.0
        %2347 = vmatpush1.xpose.msra.mxu0 0.0
        %2348 = vmatprep.subr.mxu0 0.0
        %2349 = vmatpush1.xpose.msra.mxu0 0.0
        %2350 = vmatprep.subr.mxu0 0.0
        %2351 = vmatpush1.xpose.msra.mxu0 0.0
        %2352 = vmatprep.subr.mxu0 0.0
        %2353 = vmatpush1.xpose.msra.mxu0 0.0
        %2354 = vmatprep.subr.mxu0 0.0
        %2355 = vmatpush1.xpose.msra.mxu0 0.0
        %2356 = vmatprep.subr.mxu0 0.0
        %2357 = vmatpush1.xpose.msra.mxu0 %v2326
        %2358 = vmatprep.subr.mxu0 0.0
        %2359 = vmatpush1.xpose.msra.mxu0 %v2324
        %2360 = vmatprep.subr.mxu0 0.0
        %2361 = vmatpush2.xpose.msra.mxu0 0.0
        %2362 = vmatprep.subr.mxu0 0.0
        %2363 = vmatpush2.xpose.msra.mxu0 0.0
        %2364 = vmatprep.subr.mxu0 0.0
        %2365 = vmatpush2.xpose.msra.mxu0 0.0
        %2366 = vmatprep.subr.mxu0 0.0
        %2367 = vmatpush2.xpose.msra.mxu0 0.0
        %2368 = vmatprep.subr.mxu0 0.0
        %2369 = vmatpush2.xpose.msra.mxu0 0.0
        %2370 = vmatprep.subr.mxu0 0.0
        %2371 = vmatpush2.xpose.msra.mxu0 0.0
        %2372 = vmatprep.subr.mxu0 0.0
        %2373 = vmatpush2.xpose.msra.mxu0 0.0
        %2374 = vmatprep.subr.mxu0 0.0
        %2375 = vmatpush2.xpose.msra.mxu0 0.0
        %2376 = vmatprep.subr.mxu0 0.0
        %2377 = vmatpush2.xpose.msra.mxu0 0.0
        %2378 = vmatprep.subr.mxu0 0.0
        %2379 = vmatpush2.xpose.msra.mxu0 0.0
        %2380 = vmatprep.subr.mxu0 0.0
        %2381 = vmatpush2.xpose.msra.mxu0 0.0
        %2382 = vmatprep.subr.mxu0 0.0
        %2383 = vmatpush2.xpose.msra.mxu0 0.0
        %2384 = vmatprep.subr.mxu0 0.0
        %2385 = vmatpush2.xpose.msra.mxu0 0.0
        %2386 = vmatprep.subr.mxu0 0.0
        %2387 = vmatpush2.xpose.msra.mxu0 0.0
        %2388 = vmatprep.subr.mxu0 0.0
        %2389 = vmatpush2.xpose.msra.mxu0 0.0
        %2390 = vmatprep.subr.mxu0 0.0
        %2391 = vmatpush2.xpose.msra.mxu0 0.0
        %2392 = vmatprep.mubr.f32.mxu0 0.0
        %2393 = vmatmul.mubr.f32.gmra.mxu0 %v2320
        %v2394 = vpop.f32.mrf.mxu0
        %v2395 = vadd.f32 %v2037, %v2394
        %v2396 = vpop.f32.mrf.mxu0
        %2397 = vmatprep.mubr.f32.mxu0 0.0
        %2398 = vmatmul.mubr.f32.gmra.mxu0 %v2322
        %v2399 = vpop.f32.mrf.mxu0
        %v2400 = vadd.f32 %v2038, %v2399
        %v2401 = vpop.f32.mrf.mxu0
        %2402 = vdwg.mxu0
        %v2403 = vsel %vm784, %v2122, -inf
        %2404 = vmax.xlane.f32.xlu0 %v2403
        %v2405 = vpop.xlane.xlu0 %2404
        %v2406 = vsel %vm784, %v2127, -inf
        %2407 = vmax.xlane.f32.xlu0 %v2406
        %v2408 = vpop.xlane.xlu0 %2407
        %v2409 = vsel %vm784, %v2213, -inf
        %2410 = vmax.xlane.f32.xlu0 %v2409
        %v2411 = vpop.xlane.xlu0 %2410
        %v2412 = vsel %vm784, %v2218, -inf
        %2413 = vmax.xlane.f32.xlu0 %v2412
        %v2414 = vpop.xlane.xlu0 %2413
        %v2415 = vsel %vm784, %v2304, -inf
        %2416 = vmax.xlane.f32.xlu0 %v2415
        %v2417 = vpop.xlane.xlu0 %2416
        %v2418 = vsel %vm784, %v2309, -inf
        %2419 = vmax.xlane.f32.xlu0 %v2418
        %v2420 = vpop.xlane.xlu0 %2419
        %v2421 = vsel %vm784, %v2395, -inf
        %2422 = vmax.xlane.f32.xlu0 %v2421
        %v2423 = vpop.xlane.xlu0 %2422
        %v2424 = vsel %vm784, %v2400, -inf
        %2425 = vmax.xlane.f32.xlu0 %v2424
        %v2426 = vpop.xlane.xlu0 %2425
        %v2427 = vsub.f32 %v2122, %v2405
        %v2428 = vsub.f32 %v2127, %v2408
        %v2429 = vsub.f32 %v2213, %v2411
        %v2430 = vsub.f32 %v2218, %v2414
        %v2431 = vsub.f32 %v2304, %v2417
        %v2432 = vsub.f32 %v2309, %v2420
        %v2433 = vsub.f32 %v2395, %v2423
        %v2434 = vsub.f32 %v2400, %v2426
        %v2435 = vmul.f32 %v2427, 1.442695
        %v2436 = vpow.pop %v2435
        %v2437 = vmul.f32 %v2428, 1.442695
        %v2438 = vpow.pop %v2437
        %v2439 = vmul.f32 %v2429, 1.442695
        %v2440 = vpow.pop %v2439
        %v2441 = vmul.f32 %v2430, 1.442695
        %v2442 = vpow.pop %v2441
        %v2443 = vmul.f32 %v2431, 1.442695
        %v2444 = vpow.pop %v2443
        %v2445 = vmul.f32 %v2432, 1.442695
        %v2446 = vpow.pop %v2445
        %v2447 = vmul.f32 %v2433, 1.442695
        %v2448 = vpow.pop %v2447
        %v2449 = vmul.f32 %v2434, 1.442695
        %v2450 = vpow.pop %v2449
        %v2451 = vsel %vm784, %v2436, 0.0
        %2452 = vadd.xlane.f32.xlu0 %v2451
        %v2453 = vpop.xlane.xlu0 %2452
        %v2454 = vsel %vm784, %v2438, 0.0
        %2455 = vadd.xlane.f32.xlu0 %v2454
        %v2456 = vpop.xlane.xlu0 %2455
        %v2457 = vsel %vm784, %v2440, 0.0
        %2458 = vadd.xlane.f32.xlu0 %v2457
        %v2459 = vpop.xlane.xlu0 %2458
        %v2460 = vsel %vm784, %v2442, 0.0
        %2461 = vadd.xlane.f32.xlu0 %v2460
        %v2462 = vpop.xlane.xlu0 %2461
        %v2463 = vsel %vm784, %v2444, 0.0
        %2464 = vadd.xlane.f32.xlu0 %v2463
        %v2465 = vpop.xlane.xlu0 %2464
        %v2466 = vsel %vm784, %v2446, 0.0
        %2467 = vadd.xlane.f32.xlu0 %v2466
        %v2468 = vpop.xlane.xlu0 %2467
        %v2469 = vsel %vm784, %v2448, 0.0
        %2470 = vadd.xlane.f32.xlu0 %v2469
        %v2471 = vpop.xlane.xlu0 %2470
        %v2472 = vsel %vm784, %v2450, 0.0
        %2473 = vadd.xlane.f32.xlu0 %v2472
        %v2474 = vpop.xlane.xlu0 %2473
        %v2475 = vrcp.pop %v2453
        %v2476 = vmul.f32 %v2436, %v2475
        %v2477 = vrcp.pop %v2456
        %v2478 = vmul.f32 %v2438, %v2477
        %v2479 = vrcp.pop %v2459
        %v2480 = vmul.f32 %v2440, %v2479
        %v2481 = vrcp.pop %v2462
        %v2482 = vmul.f32 %v2442, %v2481
        %v2483 = vrcp.pop %v2465
        %v2484 = vmul.f32 %v2444, %v2483
        %v2485 = vrcp.pop %v2468
        %v2486 = vmul.f32 %v2446, %v2485
        %v2487 = vrcp.pop %v2471
        %v2488 = vmul.f32 %v2448, %v2487
        %v2489 = vrcp.pop %v2474
        %v2490 = vmul.f32 %v2450, %v2489
        %2491 = vrot.lane.b32.xlu0 %v381, 48
        %v2492 = vpop.permute.xlu0 %2491
        %2493 = vrot.lane.b32.xlu0 %v386, 48
        %v2494 = vpop.permute.xlu0 %2493
        %v2498 = vsel %vm784, %v2476, 0
        %v2501 = vsel %vm784, %v2478, 0
        %2503 = vmatprep.subr.mxu0 0.0
        %2504 = vmatpush1.msra.mxu0 0.0
        %2505 = vmatprep.subr.mxu0 0.0
        %2506 = vmatpush1.msra.mxu0 0.0
        %2507 = vmatprep.subr.mxu0 0.0
        %2508 = vmatpush1.msra.mxu0 0.0
        %2509 = vmatprep.subr.mxu0 0.0
        %2510 = vmatpush1.msra.mxu0 0.0
        %2511 = vmatprep.subr.mxu0 0.0
        %2512 = vmatpush1.msra.mxu0 0.0
        %2513 = vmatprep.subr.mxu0 0.0
        %2514 = vmatpush1.msra.mxu0 0.0
        %2515 = vmatprep.subr.mxu0 0.0
        %2516 = vmatpush1.msra.mxu0 0.0
        %2517 = vmatprep.subr.mxu0 0.0
        %2518 = vmatpush1.msra.mxu0 0.0
        %2519 = vmatprep.subr.mxu0 0.0
        %2520 = vmatpush1.msra.mxu0 0.0
        %2521 = vmatprep.subr.mxu0 0.0
        %2522 = vmatpush1.msra.mxu0 0.0
        %2523 = vmatprep.subr.mxu0 0.0
        %2524 = vmatpush1.msra.mxu0 0.0
        %2525 = vmatprep.subr.mxu0 0.0
        %2526 = vmatpush1.msra.mxu0 0.0
        %2527 = vmatprep.subr.mxu0 0.0
        %2528 = vmatpush1.msra.mxu0 0.0
        %2529 = vmatprep.subr.mxu0 0.0
        %2530 = vmatpush1.msra.mxu0 0.0
        %2531 = vmatprep.subr.mxu0 0.0
        %2532 = vmatpush1.msra.mxu0 %v2494
        %2533 = vmatprep.subr.mxu0 0.0
        %2534 = vmatpush1.msra.mxu0 %v2492
        %2535 = vmatprep.subr.mxu0 0.0
        %2536 = vmatpush2.msra.mxu0 0.0
        %2537 = vmatprep.subr.mxu0 0.0
        %2538 = vmatpush2.msra.mxu0 0.0
        %2539 = vmatprep.subr.mxu0 0.0
        %2540 = vmatpush2.msra.mxu0 0.0
        %2541 = vmatprep.subr.mxu0 0.0
        %2542 = vmatpush2.msra.mxu0 0.0
        %2543 = vmatprep.subr.mxu0 0.0
        %2544 = vmatpush2.msra.mxu0 0.0
        %2545 = vmatprep.subr.mxu0 0.0
        %2546 = vmatpush2.msra.mxu0 0.0
        %2547 = vmatprep.subr.mxu0 0.0
        %2548 = vmatpush2.msra.mxu0 0.0
        %2549 = vmatprep.subr.mxu0 0.0
        %2550 = vmatpush2.msra.mxu0 0.0
        %2551 = vmatprep.subr.mxu0 0.0
        %2552 = vmatpush2.msra.mxu0 0.0
        %2553 = vmatprep.subr.mxu0 0.0
        %2554 = vmatpush2.msra.mxu0 0.0
        %2555 = vmatprep.subr.mxu0 0.0
        %2556 = vmatpush2.msra.mxu0 0.0
        %2557 = vmatprep.subr.mxu0 0.0
        %2558 = vmatpush2.msra.mxu0 0.0
        %2559 = vmatprep.subr.mxu0 0.0
        %2560 = vmatpush2.msra.mxu0 0.0
        %2561 = vmatprep.subr.mxu0 0.0
        %2562 = vmatpush2.msra.mxu0 0.0
        %2563 = vmatprep.subr.mxu0 0.0
        %2564 = vmatpush2.msra.mxu0 0.0
        %2565 = vmatprep.subr.mxu0 0.0
        %2566 = vmatpush2.msra.mxu0 0.0
        %2567 = vmatprep.mubr.f32.mxu0 0.0
        %2568 = vmatmul.mubr.f32.gmra.mxu0 %v2498
        %v2569 = vpop.f32.mrf.mxu0
        %v2570 = vadd.f32 0.0, %v2569
        %v2571 = vpop.f32.mrf.mxu0
        %2572 = vmatprep.mubr.f32.mxu0 0.0
        %2573 = vmatmul.mubr.f32.gmra.mxu0 %v2501
        %v2574 = vpop.f32.mrf.mxu0
        %v2575 = vadd.f32 0.0, %v2574
        %v2576 = vpop.f32.mrf.mxu0
        %2577 = vdwg.mxu0
        %2578 = vrot.lane.b32.xlu0 %v391, 48
        %v2579 = vpop.permute.xlu0 %2578
        %2580 = vrot.lane.b32.xlu0 %v396, 48
        %v2581 = vpop.permute.xlu0 %2580
        %v2585 = vsel %vm784, %v2480, 0
        %v2588 = vsel %vm784, %v2482, 0
        %2590 = vmatprep.subr.mxu0 0.0
        %2591 = vmatpush1.msra.mxu0 0.0
        %2592 = vmatprep.subr.mxu0 0.0
        %2593 = vmatpush1.msra.mxu0 0.0
        %2594 = vmatprep.subr.mxu0 0.0
        %2595 = vmatpush1.msra.mxu0 0.0
        %2596 = vmatprep.subr.mxu0 0.0
        %2597 = vmatpush1.msra.mxu0 0.0
        %2598 = vmatprep.subr.mxu0 0.0
        %2599 = vmatpush1.msra.mxu0 0.0
        %2600 = vmatprep.subr.mxu0 0.0
        %2601 = vmatpush1.msra.mxu0 0.0
        %2602 = vmatprep.subr.mxu0 0.0
        %2603 = vmatpush1.msra.mxu0 0.0
        %2604 = vmatprep.subr.mxu0 0.0
        %2605 = vmatpush1.msra.mxu0 0.0
        %2606 = vmatprep.subr.mxu0 0.0
        %2607 = vmatpush1.msra.mxu0 0.0
        %2608 = vmatprep.subr.mxu0 0.0
        %2609 = vmatpush1.msra.mxu0 0.0
        %2610 = vmatprep.subr.mxu0 0.0
        %2611 = vmatpush1.msra.mxu0 0.0
        %2612 = vmatprep.subr.mxu0 0.0
        %2613 = vmatpush1.msra.mxu0 0.0
        %2614 = vmatprep.subr.mxu0 0.0
        %2615 = vmatpush1.msra.mxu0 0.0
        %2616 = vmatprep.subr.mxu0 0.0
        %2617 = vmatpush1.msra.mxu0 0.0
        %2618 = vmatprep.subr.mxu0 0.0
        %2619 = vmatpush1.msra.mxu0 %v2581
        %2620 = vmatprep.subr.mxu0 0.0
        %2621 = vmatpush1.msra.mxu0 %v2579
        %2622 = vmatprep.subr.mxu0 0.0
        %2623 = vmatpush2.msra.mxu0 0.0
        %2624 = vmatprep.subr.mxu0 0.0
        %2625 = vmatpush2.msra.mxu0 0.0
        %2626 = vmatprep.subr.mxu0 0.0
        %2627 = vmatpush2.msra.mxu0 0.0
        %2628 = vmatprep.subr.mxu0 0.0
        %2629 = vmatpush2.msra.mxu0 0.0
        %2630 = vmatprep.subr.mxu0 0.0
        %2631 = vmatpush2.msra.mxu0 0.0
        %2632 = vmatprep.subr.mxu0 0.0
        %2633 = vmatpush2.msra.mxu0 0.0
        %2634 = vmatprep.subr.mxu0 0.0
        %2635 = vmatpush2.msra.mxu0 0.0
        %2636 = vmatprep.subr.mxu0 0.0
        %2637 = vmatpush2.msra.mxu0 0.0
        %2638 = vmatprep.subr.mxu0 0.0
        %2639 = vmatpush2.msra.mxu0 0.0
        %2640 = vmatprep.subr.mxu0 0.0
        %2641 = vmatpush2.msra.mxu0 0.0
        %2642 = vmatprep.subr.mxu0 0.0
        %2643 = vmatpush2.msra.mxu0 0.0
        %2644 = vmatprep.subr.mxu0 0.0
        %2645 = vmatpush2.msra.mxu0 0.0
        %2646 = vmatprep.subr.mxu0 0.0
        %2647 = vmatpush2.msra.mxu0 0.0
        %2648 = vmatprep.subr.mxu0 0.0
        %2649 = vmatpush2.msra.mxu0 0.0
        %2650 = vmatprep.subr.mxu0 0.0
        %2651 = vmatpush2.msra.mxu0 0.0
        %2652 = vmatprep.subr.mxu0 0.0
        %2653 = vmatpush2.msra.mxu0 0.0
        %2654 = vmatprep.mubr.f32.mxu0 0.0
        %2655 = vmatmul.mubr.f32.gmra.mxu0 %v2585
        %v2656 = vpop.f32.mrf.mxu0
        %v2657 = vadd.f32 0.0, %v2656
        %v2658 = vpop.f32.mrf.mxu0
        %2659 = vmatprep.mubr.f32.mxu0 0.0
        %2660 = vmatmul.mubr.f32.gmra.mxu0 %v2588
        %v2661 = vpop.f32.mrf.mxu0
        %v2662 = vadd.f32 0.0, %v2661
        %v2663 = vpop.f32.mrf.mxu0
        %2664 = vdwg.mxu0
        %2665 = vrot.lane.b32.xlu0 %v401, 48
        %v2666 = vpop.permute.xlu0 %2665
        %2667 = vrot.lane.b32.xlu0 %v406, 48
        %v2668 = vpop.permute.xlu0 %2667
        %v2672 = vsel %vm784, %v2484, 0
        %v2675 = vsel %vm784, %v2486, 0
        %2677 = vmatprep.subr.mxu0 0.0
        %2678 = vmatpush1.msra.mxu0 0.0
        %2679 = vmatprep.subr.mxu0 0.0
        %2680 = vmatpush1.msra.mxu0 0.0
        %2681 = vmatprep.subr.mxu0 0.0
        %2682 = vmatpush1.msra.mxu0 0.0
        %2683 = vmatprep.subr.mxu0 0.0
        %2684 = vmatpush1.msra.mxu0 0.0
        %2685 = vmatprep.subr.mxu0 0.0
        %2686 = vmatpush1.msra.mxu0 0.0
        %2687 = vmatprep.subr.mxu0 0.0
        %2688 = vmatpush1.msra.mxu0 0.0
        %2689 = vmatprep.subr.mxu0 0.0
        %2690 = vmatpush1.msra.mxu0 0.0
        %2691 = vmatprep.subr.mxu0 0.0
        %2692 = vmatpush1.msra.mxu0 0.0
        %2693 = vmatprep.subr.mxu0 0.0
        %2694 = vmatpush1.msra.mxu0 0.0
        %2695 = vmatprep.subr.mxu0 0.0
        %2696 = vmatpush1.msra.mxu0 0.0
        %2697 = vmatprep.subr.mxu0 0.0
        %2698 = vmatpush1.msra.mxu0 0.0
        %2699 = vmatprep.subr.mxu0 0.0
        %2700 = vmatpush1.msra.mxu0 0.0
        %2701 = vmatprep.subr.mxu0 0.0
        %2702 = vmatpush1.msra.mxu0 0.0
        %2703 = vmatprep.subr.mxu0 0.0
        %2704 = vmatpush1.msra.mxu0 0.0
        %2705 = vmatprep.subr.mxu0 0.0
        %2706 = vmatpush1.msra.mxu0 %v2668
        %2707 = vmatprep.subr.mxu0 0.0
        %2708 = vmatpush1.msra.mxu0 %v2666
        %2709 = vmatprep.subr.mxu0 0.0
        %2710 = vmatpush2.msra.mxu0 0.0
        %2711 = vmatprep.subr.mxu0 0.0
        %2712 = vmatpush2.msra.mxu0 0.0
        %2713 = vmatprep.subr.mxu0 0.0
        %2714 = vmatpush2.msra.mxu0 0.0
        %2715 = vmatprep.subr.mxu0 0.0
        %2716 = vmatpush2.msra.mxu0 0.0
        %2717 = vmatprep.subr.mxu0 0.0
        %2718 = vmatpush2.msra.mxu0 0.0
        %2719 = vmatprep.subr.mxu0 0.0
        %2720 = vmatpush2.msra.mxu0 0.0
        %2721 = vmatprep.subr.mxu0 0.0
        %2722 = vmatpush2.msra.mxu0 0.0
        %2723 = vmatprep.subr.mxu0 0.0
        %2724 = vmatpush2.msra.mxu0 0.0
        %2725 = vmatprep.subr.mxu0 0.0
        %2726 = vmatpush2.msra.mxu0 0.0
        %2727 = vmatprep.subr.mxu0 0.0
        %2728 = vmatpush2.msra.mxu0 0.0
        %2729 = vmatprep.subr.mxu0 0.0
        %2730 = vmatpush2.msra.mxu0 0.0
        %2731 = vmatprep.subr.mxu0 0.0
        %2732 = vmatpush2.msra.mxu0 0.0
        %2733 = vmatprep.subr.mxu0 0.0
        %2734 = vmatpush2.msra.mxu0 0.0
        %2735 = vmatprep.subr.mxu0 0.0
        %2736 = vmatpush2.msra.mxu0 0.0
        %2737 = vmatprep.subr.mxu0 0.0
        %2738 = vmatpush2.msra.mxu0 0.0
        %2739 = vmatprep.subr.mxu0 0.0
        %2740 = vmatpush2.msra.mxu0 0.0
        %2741 = vmatprep.mubr.f32.mxu0 0.0
        %2742 = vmatmul.mubr.f32.gmra.mxu0 %v2672
        %v2743 = vpop.f32.mrf.mxu0
        %v2744 = vadd.f32 0.0, %v2743
        %v2745 = vpop.f32.mrf.mxu0
        %2746 = vmatprep.mubr.f32.mxu0 0.0
        %2747 = vmatmul.mubr.f32.gmra.mxu0 %v2675
        %v2748 = vpop.f32.mrf.mxu0
        %v2749 = vadd.f32 0.0, %v2748
        %v2750 = vpop.f32.mrf.mxu0
        %2751 = vdwg.mxu0
        %2752 = vrot.lane.b32.xlu0 %v411, 48
        %v2753 = vpop.permute.xlu0 %2752
        %2754 = vrot.lane.b32.xlu0 %v416, 48
        %v2755 = vpop.permute.xlu0 %2754
        %v2759 = vsel %vm784, %v2488, 0
        %v2762 = vsel %vm784, %v2490, 0
        %2764 = vmatprep.subr.mxu0 0.0
        %2765 = vmatpush1.msra.mxu0 0.0
        %2766 = vmatprep.subr.mxu0 0.0
        %2767 = vmatpush1.msra.mxu0 0.0
        %2768 = vmatprep.subr.mxu0 0.0
        %2769 = vmatpush1.msra.mxu0 0.0
        %2770 = vmatprep.subr.mxu0 0.0
        %2771 = vmatpush1.msra.mxu0 0.0
        %2772 = vmatprep.subr.mxu0 0.0
        %2773 = vmatpush1.msra.mxu0 0.0
        %2774 = vmatprep.subr.mxu0 0.0
        %2775 = vmatpush1.msra.mxu0 0.0
        %2776 = vmatprep.subr.mxu0 0.0
        %2777 = vmatpush1.msra.mxu0 0.0
        %2778 = vmatprep.subr.mxu0 0.0
        %2779 = vmatpush1.msra.mxu0 0.0
        %2780 = vmatprep.subr.mxu0 0.0
        %2781 = vmatpush1.msra.mxu0 0.0
        %2782 = vmatprep.subr.mxu0 0.0
        %2783 = vmatpush1.msra.mxu0 0.0
        %2784 = vmatprep.subr.mxu0 0.0
        %2785 = vmatpush1.msra.mxu0 0.0
        %2786 = vmatprep.subr.mxu0 0.0
        %2787 = vmatpush1.msra.mxu0 0.0
        %2788 = vmatprep.subr.mxu0 0.0
        %2789 = vmatpush1.msra.mxu0 0.0
        %2790 = vmatprep.subr.mxu0 0.0
        %2791 = vmatpush1.msra.mxu0 0.0
        %2792 = vmatprep.subr.mxu0 0.0
        %2793 = vmatpush1.msra.mxu0 %v2755
        %2794 = vmatprep.subr.mxu0 0.0
        %2795 = vmatpush1.msra.mxu0 %v2753
        %2796 = vmatprep.subr.mxu0 0.0
        %2797 = vmatpush2.msra.mxu0 0.0
        %2798 = vmatprep.subr.mxu0 0.0
        %2799 = vmatpush2.msra.mxu0 0.0
        %2800 = vmatprep.subr.mxu0 0.0
        %2801 = vmatpush2.msra.mxu0 0.0
        %2802 = vmatprep.subr.mxu0 0.0
        %2803 = vmatpush2.msra.mxu0 0.0
        %2804 = vmatprep.subr.mxu0 0.0
        %2805 = vmatpush2.msra.mxu0 0.0
        %2806 = vmatprep.subr.mxu0 0.0
        %2807 = vmatpush2.msra.mxu0 0.0
        %2808 = vmatprep.subr.mxu0 0.0
        %2809 = vmatpush2.msra.mxu0 0.0
        %2810 = vmatprep.subr.mxu0 0.0
        %2811 = vmatpush2.msra.mxu0 0.0
        %2812 = vmatprep.subr.mxu0 0.0
        %2813 = vmatpush2.msra.mxu0 0.0
        %2814 = vmatprep.subr.mxu0 0.0
        %2815 = vmatpush2.msra.mxu0 0.0
        %2816 = vmatprep.subr.mxu0 0.0
        %2817 = vmatpush2.msra.mxu0 0.0
        %2818 = vmatprep.subr.mxu0 0.0
        %2819 = vmatpush2.msra.mxu0 0.0
        %2820 = vmatprep.subr.mxu0 0.0
        %2821 = vmatpush2.msra.mxu0 0.0
        %2822 = vmatprep.subr.mxu0 0.0
        %2823 = vmatpush2.msra.mxu0 0.0
        %2824 = vmatprep.subr.mxu0 0.0
        %2825 = vmatpush2.msra.mxu0 0.0
        %2826 = vmatprep.subr.mxu0 0.0
        %2827 = vmatpush2.msra.mxu0 0.0
        %2828 = vmatprep.mubr.f32.mxu0 0.0
        %2829 = vmatmul.mubr.f32.gmra.mxu0 %v2759
        %v2830 = vpop.f32.mrf.mxu0
        %v2831 = vadd.f32 0.0, %v2830
        %v2832 = vpop.f32.mrf.mxu0
        %2833 = vmatprep.mubr.f32.mxu0 0.0
        %2834 = vmatmul.mubr.f32.gmra.mxu0 %v2762
        %v2835 = vpop.f32.mrf.mxu0
        %v2836 = vadd.f32 0.0, %v2835
        %v2837 = vpop.f32.mrf.mxu0
        %2838 = vdwg.mxu0
        %s2839 = scalar_lea.vmem [#allocation2], 192
        %v2840 = vld [vmem:[%s2839] sm:$0xff]
        %v2841 = vld [vmem:[%s2839 + $0x8] sm:$0xff]
        %v2842 = vld [vmem:[%s2839 + $0x10] sm:$0xff]
        %v2843 = vld [vmem:[%s2839 + $0x18] sm:$0xff]
        %v2844 = vld [vmem:[%s2839 + $0x20] sm:$0xff]
        %v2845 = vld [vmem:[%s2839 + $0x28] sm:$0xff]
        %v2846 = vld [vmem:[%s2839 + $0x30] sm:$0xff]
        %v2847 = vld [vmem:[%s2839 + $0x38] sm:$0xff]
        %2848 = vrot.lane.b32.xlu0 %v381, 104
        %v2849 = vpop.permute.xlu0 %2848
        %2850 = vrot.lane.b32.xlu0 %v386, 104
        %v2851 = vpop.permute.xlu0 %2850
        %2852 = vrot.lane.b32.xlu0 %v381, 72
        %v2853 = vpop.permute.xlu0 %2852
        %2854 = vrot.lane.b32.xlu0 %v386, 72
        %v2855 = vpop.permute.xlu0 %2854
        %v2856 = vsel %vm433, %v2849, 0
        %v2858 = vsel %vm433, %v2851, 0
        %v2860 = vsel %vm433, %v2853, 0
        %v2862 = vsel %vm433, %v2855, 0
        %2864 = vmatprep.subr.mxu0 0.0
        %2865 = vmatpush1.xpose.msra.mxu0 0.0
        %2866 = vmatprep.subr.mxu0 0.0
        %2867 = vmatpush1.xpose.msra.mxu0 0.0
        %2868 = vmatprep.subr.mxu0 0.0
        %2869 = vmatpush1.xpose.msra.mxu0 0.0
        %2870 = vmatprep.subr.mxu0 0.0
        %2871 = vmatpush1.xpose.msra.mxu0 0.0
        %2872 = vmatprep.subr.mxu0 0.0
        %2873 = vmatpush1.xpose.msra.mxu0 0.0
        %2874 = vmatprep.subr.mxu0 0.0
        %2875 = vmatpush1.xpose.msra.mxu0 0.0
        %2876 = vmatprep.subr.mxu0 0.0
        %2877 = vmatpush1.xpose.msra.mxu0 0.0
        %2878 = vmatprep.subr.mxu0 0.0
        %2879 = vmatpush1.xpose.msra.mxu0 0.0
        %2880 = vmatprep.subr.mxu0 0.0
        %2881 = vmatpush1.xpose.msra.mxu0 0.0
        %2882 = vmatprep.subr.mxu0 0.0
        %2883 = vmatpush1.xpose.msra.mxu0 0.0
        %2884 = vmatprep.subr.mxu0 0.0
        %2885 = vmatpush1.xpose.msra.mxu0 0.0
        %2886 = vmatprep.subr.mxu0 0.0
        %2887 = vmatpush1.xpose.msra.mxu0 0.0
        %2888 = vmatprep.subr.mxu0 0.0
        %2889 = vmatpush1.xpose.msra.mxu0 0.0
        %2890 = vmatprep.subr.mxu0 0.0
        %2891 = vmatpush1.xpose.msra.mxu0 0.0
        %2892 = vmatprep.subr.mxu0 0.0
        %2893 = vmatpush1.xpose.msra.mxu0 %v2862
        %2894 = vmatprep.subr.mxu0 0.0
        %2895 = vmatpush1.xpose.msra.mxu0 %v2860
        %2896 = vmatprep.subr.mxu0 0.0
        %2897 = vmatpush2.xpose.msra.mxu0 0.0
        %2898 = vmatprep.subr.mxu0 0.0
        %2899 = vmatpush2.xpose.msra.mxu0 0.0
        %2900 = vmatprep.subr.mxu0 0.0
        %2901 = vmatpush2.xpose.msra.mxu0 0.0
        %2902 = vmatprep.subr.mxu0 0.0
        %2903 = vmatpush2.xpose.msra.mxu0 0.0
        %2904 = vmatprep.subr.mxu0 0.0
        %2905 = vmatpush2.xpose.msra.mxu0 0.0
        %2906 = vmatprep.subr.mxu0 0.0
        %2907 = vmatpush2.xpose.msra.mxu0 0.0
        %2908 = vmatprep.subr.mxu0 0.0
        %2909 = vmatpush2.xpose.msra.mxu0 0.0
        %2910 = vmatprep.subr.mxu0 0.0
        %2911 = vmatpush2.xpose.msra.mxu0 0.0
        %2912 = vmatprep.subr.mxu0 0.0
        %2913 = vmatpush2.xpose.msra.mxu0 0.0
        %2914 = vmatprep.subr.mxu0 0.0
        %2915 = vmatpush2.xpose.msra.mxu0 0.0
        %2916 = vmatprep.subr.mxu0 0.0
        %2917 = vmatpush2.xpose.msra.mxu0 0.0
        %2918 = vmatprep.subr.mxu0 0.0
        %2919 = vmatpush2.xpose.msra.mxu0 0.0
        %2920 = vmatprep.subr.mxu0 0.0
        %2921 = vmatpush2.xpose.msra.mxu0 0.0
        %2922 = vmatprep.subr.mxu0 0.0
        %2923 = vmatpush2.xpose.msra.mxu0 0.0
        %2924 = vmatprep.subr.mxu0 0.0
        %2925 = vmatpush2.xpose.msra.mxu0 0.0
        %2926 = vmatprep.subr.mxu0 0.0
        %2927 = vmatpush2.xpose.msra.mxu0 0.0
        %2928 = vmatprep.mubr.f32.mxu0 0.0
        %2929 = vmatmul.mubr.f32.gmra.mxu0 %v2856
        %v2930 = vpop.f32.mrf.mxu0
        %v2931 = vadd.f32 %v2840, %v2930
        %v2932 = vpop.f32.mrf.mxu0
        %2933 = vmatprep.mubr.f32.mxu0 0.0
        %2934 = vmatmul.mubr.f32.gmra.mxu0 %v2858
        %v2935 = vpop.f32.mrf.mxu0
        %v2936 = vadd.f32 %v2841, %v2935
        %v2937 = vpop.f32.mrf.mxu0
        %2938 = vdwg.mxu0
        %2939 = vrot.lane.b32.xlu0 %v391, 104
        %v2940 = vpop.permute.xlu0 %2939
        %2941 = vrot.lane.b32.xlu0 %v396, 104
        %v2942 = vpop.permute.xlu0 %2941
        %2943 = vrot.lane.b32.xlu0 %v391, 72
        %v2944 = vpop.permute.xlu0 %2943
        %2945 = vrot.lane.b32.xlu0 %v396, 72
        %v2946 = vpop.permute.xlu0 %2945
        %v2947 = vsel %vm433, %v2940, 0
        %v2949 = vsel %vm433, %v2942, 0
        %v2951 = vsel %vm433, %v2944, 0
        %v2953 = vsel %vm433, %v2946, 0
        %2955 = vmatprep.subr.mxu0 0.0
        %2956 = vmatpush1.xpose.msra.mxu0 0.0
        %2957 = vmatprep.subr.mxu0 0.0
        %2958 = vmatpush1.xpose.msra.mxu0 0.0
        %2959 = vmatprep.subr.mxu0 0.0
        %2960 = vmatpush1.xpose.msra.mxu0 0.0
        %2961 = vmatprep.subr.mxu0 0.0
        %2962 = vmatpush1.xpose.msra.mxu0 0.0
        %2963 = vmatprep.subr.mxu0 0.0
        %2964 = vmatpush1.xpose.msra.mxu0 0.0
        %2965 = vmatprep.subr.mxu0 0.0
        %2966 = vmatpush1.xpose.msra.mxu0 0.0
        %2967 = vmatprep.subr.mxu0 0.0
        %2968 = vmatpush1.xpose.msra.mxu0 0.0
        %2969 = vmatprep.subr.mxu0 0.0
        %2970 = vmatpush1.xpose.msra.mxu0 0.0
        %2971 = vmatprep.subr.mxu0 0.0
        %2972 = vmatpush1.xpose.msra.mxu0 0.0
        %2973 = vmatprep.subr.mxu0 0.0
        %2974 = vmatpush1.xpose.msra.mxu0 0.0
        %2975 = vmatprep.subr.mxu0 0.0
        %2976 = vmatpush1.xpose.msra.mxu0 0.0
        %2977 = vmatprep.subr.mxu0 0.0
        %2978 = vmatpush1.xpose.msra.mxu0 0.0
        %2979 = vmatprep.subr.mxu0 0.0
        %2980 = vmatpush1.xpose.msra.mxu0 0.0
        %2981 = vmatprep.subr.mxu0 0.0
        %2982 = vmatpush1.xpose.msra.mxu0 0.0
        %2983 = vmatprep.subr.mxu0 0.0
        %2984 = vmatpush1.xpose.msra.mxu0 %v2953
        %2985 = vmatprep.subr.mxu0 0.0
        %2986 = vmatpush1.xpose.msra.mxu0 %v2951
        %2987 = vmatprep.subr.mxu0 0.0
        %2988 = vmatpush2.xpose.msra.mxu0 0.0
        %2989 = vmatprep.subr.mxu0 0.0
        %2990 = vmatpush2.xpose.msra.mxu0 0.0
        %2991 = vmatprep.subr.mxu0 0.0
        %2992 = vmatpush2.xpose.msra.mxu0 0.0
        %2993 = vmatprep.subr.mxu0 0.0
        %2994 = vmatpush2.xpose.msra.mxu0 0.0
        %2995 = vmatprep.subr.mxu0 0.0
        %2996 = vmatpush2.xpose.msra.mxu0 0.0
        %2997 = vmatprep.subr.mxu0 0.0
        %2998 = vmatpush2.xpose.msra.mxu0 0.0
        %2999 = vmatprep.subr.mxu0 0.0
        %3000 = vmatpush2.xpose.msra.mxu0 0.0
        %3001 = vmatprep.subr.mxu0 0.0
        %3002 = vmatpush2.xpose.msra.mxu0 0.0
        %3003 = vmatprep.subr.mxu0 0.0
        %3004 = vmatpush2.xpose.msra.mxu0 0.0
        %3005 = vmatprep.subr.mxu0 0.0
        %3006 = vmatpush2.xpose.msra.mxu0 0.0
        %3007 = vmatprep.subr.mxu0 0.0
        %3008 = vmatpush2.xpose.msra.mxu0 0.0
        %3009 = vmatprep.subr.mxu0 0.0
        %3010 = vmatpush2.xpose.msra.mxu0 0.0
        %3011 = vmatprep.subr.mxu0 0.0
        %3012 = vmatpush2.xpose.msra.mxu0 0.0
        %3013 = vmatprep.subr.mxu0 0.0
        %3014 = vmatpush2.xpose.msra.mxu0 0.0
        %3015 = vmatprep.subr.mxu0 0.0
        %3016 = vmatpush2.xpose.msra.mxu0 0.0
        %3017 = vmatprep.subr.mxu0 0.0
        %3018 = vmatpush2.xpose.msra.mxu0 0.0
        %3019 = vmatprep.mubr.f32.mxu0 0.0
        %3020 = vmatmul.mubr.f32.gmra.mxu0 %v2947
        %v3021 = vpop.f32.mrf.mxu0
        %v3022 = vadd.f32 %v2842, %v3021
        %v3023 = vpop.f32.mrf.mxu0
        %3024 = vmatprep.mubr.f32.mxu0 0.0
        %3025 = vmatmul.mubr.f32.gmra.mxu0 %v2949
        %v3026 = vpop.f32.mrf.mxu0
        %v3027 = vadd.f32 %v2843, %v3026
        %v3028 = vpop.f32.mrf.mxu0
        %3029 = vdwg.mxu0
        %3030 = vrot.lane.b32.xlu0 %v401, 104
        %v3031 = vpop.permute.xlu0 %3030
        %3032 = vrot.lane.b32.xlu0 %v406, 104
        %v3033 = vpop.permute.xlu0 %3032
        %3034 = vrot.lane.b32.xlu0 %v401, 72
        %v3035 = vpop.permute.xlu0 %3034
        %3036 = vrot.lane.b32.xlu0 %v406, 72
        %v3037 = vpop.permute.xlu0 %3036
        %v3038 = vsel %vm433, %v3031, 0
        %v3040 = vsel %vm433, %v3033, 0
        %v3042 = vsel %vm433, %v3035, 0
        %v3044 = vsel %vm433, %v3037, 0
        %3046 = vmatprep.subr.mxu0 0.0
        %3047 = vmatpush1.xpose.msra.mxu0 0.0
        %3048 = vmatprep.subr.mxu0 0.0
        %3049 = vmatpush1.xpose.msra.mxu0 0.0
        %3050 = vmatprep.subr.mxu0 0.0
        %3051 = vmatpush1.xpose.msra.mxu0 0.0
        %3052 = vmatprep.subr.mxu0 0.0
        %3053 = vmatpush1.xpose.msra.mxu0 0.0
        %3054 = vmatprep.subr.mxu0 0.0
        %3055 = vmatpush1.xpose.msra.mxu0 0.0
        %3056 = vmatprep.subr.mxu0 0.0
        %3057 = vmatpush1.xpose.msra.mxu0 0.0
        %3058 = vmatprep.subr.mxu0 0.0
        %3059 = vmatpush1.xpose.msra.mxu0 0.0
        %3060 = vmatprep.subr.mxu0 0.0
        %3061 = vmatpush1.xpose.msra.mxu0 0.0
        %3062 = vmatprep.subr.mxu0 0.0
        %3063 = vmatpush1.xpose.msra.mxu0 0.0
        %3064 = vmatprep.subr.mxu0 0.0
        %3065 = vmatpush1.xpose.msra.mxu0 0.0
        %3066 = vmatprep.subr.mxu0 0.0
        %3067 = vmatpush1.xpose.msra.mxu0 0.0
        %3068 = vmatprep.subr.mxu0 0.0
        %3069 = vmatpush1.xpose.msra.mxu0 0.0
        %3070 = vmatprep.subr.mxu0 0.0
        %3071 = vmatpush1.xpose.msra.mxu0 0.0
        %3072 = vmatprep.subr.mxu0 0.0
        %3073 = vmatpush1.xpose.msra.mxu0 0.0
        %3074 = vmatprep.subr.mxu0 0.0
        %3075 = vmatpush1.xpose.msra.mxu0 %v3044
        %3076 = vmatprep.subr.mxu0 0.0
        %3077 = vmatpush1.xpose.msra.mxu0 %v3042
        %3078 = vmatprep.subr.mxu0 0.0
        %3079 = vmatpush2.xpose.msra.mxu0 0.0
        %3080 = vmatprep.subr.mxu0 0.0
        %3081 = vmatpush2.xpose.msra.mxu0 0.0
        %3082 = vmatprep.subr.mxu0 0.0
        %3083 = vmatpush2.xpose.msra.mxu0 0.0
        %3084 = vmatprep.subr.mxu0 0.0
        %3085 = vmatpush2.xpose.msra.mxu0 0.0
        %3086 = vmatprep.subr.mxu0 0.0
        %3087 = vmatpush2.xpose.msra.mxu0 0.0
        %3088 = vmatprep.subr.mxu0 0.0
        %3089 = vmatpush2.xpose.msra.mxu0 0.0
        %3090 = vmatprep.subr.mxu0 0.0
        %3091 = vmatpush2.xpose.msra.mxu0 0.0
        %3092 = vmatprep.subr.mxu0 0.0
        %3093 = vmatpush2.xpose.msra.mxu0 0.0
        %3094 = vmatprep.subr.mxu0 0.0
        %3095 = vmatpush2.xpose.msra.mxu0 0.0
        %3096 = vmatprep.subr.mxu0 0.0
        %3097 = vmatpush2.xpose.msra.mxu0 0.0
        %3098 = vmatprep.subr.mxu0 0.0
        %3099 = vmatpush2.xpose.msra.mxu0 0.0
        %3100 = vmatprep.subr.mxu0 0.0
        %3101 = vmatpush2.xpose.msra.mxu0 0.0
        %3102 = vmatprep.subr.mxu0 0.0
        %3103 = vmatpush2.xpose.msra.mxu0 0.0
        %3104 = vmatprep.subr.mxu0 0.0
        %3105 = vmatpush2.xpose.msra.mxu0 0.0
        %3106 = vmatprep.subr.mxu0 0.0
        %3107 = vmatpush2.xpose.msra.mxu0 0.0
        %3108 = vmatprep.subr.mxu0 0.0
        %3109 = vmatpush2.xpose.msra.mxu0 0.0
        %3110 = vmatprep.mubr.f32.mxu0 0.0
        %3111 = vmatmul.mubr.f32.gmra.mxu0 %v3038
        %v3112 = vpop.f32.mrf.mxu0
        %v3113 = vadd.f32 %v2844, %v3112
        %v3114 = vpop.f32.mrf.mxu0
        %3115 = vmatprep.mubr.f32.mxu0 0.0
        %3116 = vmatmul.mubr.f32.gmra.mxu0 %v3040
        %v3117 = vpop.f32.mrf.mxu0
        %v3118 = vadd.f32 %v2845, %v3117
        %v3119 = vpop.f32.mrf.mxu0
        %3120 = vdwg.mxu0
        %3121 = vrot.lane.b32.xlu0 %v411, 104
        %v3122 = vpop.permute.xlu0 %3121
        %3123 = vrot.lane.b32.xlu0 %v416, 104
        %v3124 = vpop.permute.xlu0 %3123
        %3125 = vrot.lane.b32.xlu0 %v411, 72
        %v3126 = vpop.permute.xlu0 %3125
        %3127 = vrot.lane.b32.xlu0 %v416, 72
        %v3128 = vpop.permute.xlu0 %3127
        %v3129 = vsel %vm433, %v3122, 0
        %v3131 = vsel %vm433, %v3124, 0
        %v3133 = vsel %vm433, %v3126, 0
        %v3135 = vsel %vm433, %v3128, 0
        %3137 = vmatprep.subr.mxu0 0.0
        %3138 = vmatpush1.xpose.msra.mxu0 0.0
        %3139 = vmatprep.subr.mxu0 0.0
        %3140 = vmatpush1.xpose.msra.mxu0 0.0
        %3141 = vmatprep.subr.mxu0 0.0
        %3142 = vmatpush1.xpose.msra.mxu0 0.0
        %3143 = vmatprep.subr.mxu0 0.0
        %3144 = vmatpush1.xpose.msra.mxu0 0.0
        %3145 = vmatprep.subr.mxu0 0.0
        %3146 = vmatpush1.xpose.msra.mxu0 0.0
        %3147 = vmatprep.subr.mxu0 0.0
        %3148 = vmatpush1.xpose.msra.mxu0 0.0
        %3149 = vmatprep.subr.mxu0 0.0
        %3150 = vmatpush1.xpose.msra.mxu0 0.0
        %3151 = vmatprep.subr.mxu0 0.0
        %3152 = vmatpush1.xpose.msra.mxu0 0.0
        %3153 = vmatprep.subr.mxu0 0.0
        %3154 = vmatpush1.xpose.msra.mxu0 0.0
        %3155 = vmatprep.subr.mxu0 0.0
        %3156 = vmatpush1.xpose.msra.mxu0 0.0
        %3157 = vmatprep.subr.mxu0 0.0
        %3158 = vmatpush1.xpose.msra.mxu0 0.0
        %3159 = vmatprep.subr.mxu0 0.0
        %3160 = vmatpush1.xpose.msra.mxu0 0.0
        %3161 = vmatprep.subr.mxu0 0.0
        %3162 = vmatpush1.xpose.msra.mxu0 0.0
        %3163 = vmatprep.subr.mxu0 0.0
        %3164 = vmatpush1.xpose.msra.mxu0 0.0
        %3165 = vmatprep.subr.mxu0 0.0
        %3166 = vmatpush1.xpose.msra.mxu0 %v3135
        %3167 = vmatprep.subr.mxu0 0.0
        %3168 = vmatpush1.xpose.msra.mxu0 %v3133
        %3169 = vmatprep.subr.mxu0 0.0
        %3170 = vmatpush2.xpose.msra.mxu0 0.0
        %3171 = vmatprep.subr.mxu0 0.0
        %3172 = vmatpush2.xpose.msra.mxu0 0.0
        %3173 = vmatprep.subr.mxu0 0.0
        %3174 = vmatpush2.xpose.msra.mxu0 0.0
        %3175 = vmatprep.subr.mxu0 0.0
        %3176 = vmatpush2.xpose.msra.mxu0 0.0
        %3177 = vmatprep.subr.mxu0 0.0
        %3178 = vmatpush2.xpose.msra.mxu0 0.0
        %3179 = vmatprep.subr.mxu0 0.0
        %3180 = vmatpush2.xpose.msra.mxu0 0.0
        %3181 = vmatprep.subr.mxu0 0.0
        %3182 = vmatpush2.xpose.msra.mxu0 0.0
        %3183 = vmatprep.subr.mxu0 0.0
        %3184 = vmatpush2.xpose.msra.mxu0 0.0
        %3185 = vmatprep.subr.mxu0 0.0
        %3186 = vmatpush2.xpose.msra.mxu0 0.0
        %3187 = vmatprep.subr.mxu0 0.0
        %3188 = vmatpush2.xpose.msra.mxu0 0.0
        %3189 = vmatprep.subr.mxu0 0.0
        %3190 = vmatpush2.xpose.msra.mxu0 0.0
        %3191 = vmatprep.subr.mxu0 0.0
        %3192 = vmatpush2.xpose.msra.mxu0 0.0
        %3193 = vmatprep.subr.mxu0 0.0
        %3194 = vmatpush2.xpose.msra.mxu0 0.0
        %3195 = vmatprep.subr.mxu0 0.0
        %3196 = vmatpush2.xpose.msra.mxu0 0.0
        %3197 = vmatprep.subr.mxu0 0.0
        %3198 = vmatpush2.xpose.msra.mxu0 0.0
        %3199 = vmatprep.subr.mxu0 0.0
        %3200 = vmatpush2.xpose.msra.mxu0 0.0
        %3201 = vmatprep.mubr.f32.mxu0 0.0
        %3202 = vmatmul.mubr.f32.gmra.mxu0 %v3129
        %v3203 = vpop.f32.mrf.mxu0
        %v3204 = vadd.f32 %v2846, %v3203
        %v3205 = vpop.f32.mrf.mxu0
        %3206 = vmatprep.mubr.f32.mxu0 0.0
        %3207 = vmatmul.mubr.f32.gmra.mxu0 %v3131
        %v3208 = vpop.f32.mrf.mxu0
        %v3209 = vadd.f32 %v2847, %v3208
        %v3210 = vpop.f32.mrf.mxu0
        %3211 = vdwg.mxu0
        %v3212 = vsel %vm784, %v2931, -inf
        %3213 = vmax.xlane.f32.xlu0 %v3212
        %v3214 = vpop.xlane.xlu0 %3213
        %v3215 = vsel %vm784, %v2936, -inf
        %3216 = vmax.xlane.f32.xlu0 %v3215
        %v3217 = vpop.xlane.xlu0 %3216
        %v3218 = vsel %vm784, %v3022, -inf
        %3219 = vmax.xlane.f32.xlu0 %v3218
        %v3220 = vpop.xlane.xlu0 %3219
        %v3221 = vsel %vm784, %v3027, -inf
        %3222 = vmax.xlane.f32.xlu0 %v3221
        %v3223 = vpop.xlane.xlu0 %3222
        %v3224 = vsel %vm784, %v3113, -inf
        %3225 = vmax.xlane.f32.xlu0 %v3224
        %v3226 = vpop.xlane.xlu0 %3225
        %v3227 = vsel %vm784, %v3118, -inf
        %3228 = vmax.xlane.f32.xlu0 %v3227
        %v3229 = vpop.xlane.xlu0 %3228
        %v3230 = vsel %vm784, %v3204, -inf
        %3231 = vmax.xlane.f32.xlu0 %v3230
        %v3232 = vpop.xlane.xlu0 %3231
        %v3233 = vsel %vm784, %v3209, -inf
        %3234 = vmax.xlane.f32.xlu0 %v3233
        %v3235 = vpop.xlane.xlu0 %3234
        %v3236 = vsub.f32 %v2931, %v3214
        %v3237 = vsub.f32 %v2936, %v3217
        %v3238 = vsub.f32 %v3022, %v3220
        %v3239 = vsub.f32 %v3027, %v3223
        %v3240 = vsub.f32 %v3113, %v3226
        %v3241 = vsub.f32 %v3118, %v3229
        %v3242 = vsub.f32 %v3204, %v3232
        %v3243 = vsub.f32 %v3209, %v3235
        %v3244 = vmul.f32 %v3236, 1.442695
        %v3245 = vpow.pop %v3244
        %v3246 = vmul.f32 %v3237, 1.442695
        %v3247 = vpow.pop %v3246
        %v3248 = vmul.f32 %v3238, 1.442695
        %v3249 = vpow.pop %v3248
        %v3250 = vmul.f32 %v3239, 1.442695
        %v3251 = vpow.pop %v3250
        %v3252 = vmul.f32 %v3240, 1.442695
        %v3253 = vpow.pop %v3252
        %v3254 = vmul.f32 %v3241, 1.442695
        %v3255 = vpow.pop %v3254
        %v3256 = vmul.f32 %v3242, 1.442695
        %v3257 = vpow.pop %v3256
        %v3258 = vmul.f32 %v3243, 1.442695
        %v3259 = vpow.pop %v3258
        %v3260 = vsel %vm784, %v3245, 0.0
        %3261 = vadd.xlane.f32.xlu0 %v3260
        %v3262 = vpop.xlane.xlu0 %3261
        %v3263 = vsel %vm784, %v3247, 0.0
        %3264 = vadd.xlane.f32.xlu0 %v3263
        %v3265 = vpop.xlane.xlu0 %3264
        %v3266 = vsel %vm784, %v3249, 0.0
        %3267 = vadd.xlane.f32.xlu0 %v3266
        %v3268 = vpop.xlane.xlu0 %3267
        %v3269 = vsel %vm784, %v3251, 0.0
        %3270 = vadd.xlane.f32.xlu0 %v3269
        %v3271 = vpop.xlane.xlu0 %3270
        %v3272 = vsel %vm784, %v3253, 0.0
        %3273 = vadd.xlane.f32.xlu0 %v3272
        %v3274 = vpop.xlane.xlu0 %3273
        %v3275 = vsel %vm784, %v3255, 0.0
        %3276 = vadd.xlane.f32.xlu0 %v3275
        %v3277 = vpop.xlane.xlu0 %3276
        %v3278 = vsel %vm784, %v3257, 0.0
        %3279 = vadd.xlane.f32.xlu0 %v3278
        %v3280 = vpop.xlane.xlu0 %3279
        %v3281 = vsel %vm784, %v3259, 0.0
        %3282 = vadd.xlane.f32.xlu0 %v3281
        %v3283 = vpop.xlane.xlu0 %3282
        %v3284 = vrcp.pop %v3262
        %v3285 = vmul.f32 %v3245, %v3284
        %v3286 = vrcp.pop %v3265
        %v3287 = vmul.f32 %v3247, %v3286
        %v3288 = vrcp.pop %v3268
        %v3289 = vmul.f32 %v3249, %v3288
        %v3290 = vrcp.pop %v3271
        %v3291 = vmul.f32 %v3251, %v3290
        %v3292 = vrcp.pop %v3274
        %v3293 = vmul.f32 %v3253, %v3292
        %v3294 = vrcp.pop %v3277
        %v3295 = vmul.f32 %v3255, %v3294
        %v3296 = vrcp.pop %v3280
        %v3297 = vmul.f32 %v3257, %v3296
        %v3298 = vrcp.pop %v3283
        %v3299 = vmul.f32 %v3259, %v3298
        %3300 = vrot.lane.b32.xlu0 %v381, 40
        %v3301 = vpop.permute.xlu0 %3300
        %3302 = vrot.lane.b32.xlu0 %v386, 40
        %v3303 = vpop.permute.xlu0 %3302
        %v3307 = vsel %vm784, %v3285, 0
        %v3310 = vsel %vm784, %v3287, 0
        %3312 = vmatprep.subr.mxu0 0.0
        %3313 = vmatpush1.msra.mxu0 0.0
        %3314 = vmatprep.subr.mxu0 0.0
        %3315 = vmatpush1.msra.mxu0 0.0
        %3316 = vmatprep.subr.mxu0 0.0
        %3317 = vmatpush1.msra.mxu0 0.0
        %3318 = vmatprep.subr.mxu0 0.0
        %3319 = vmatpush1.msra.mxu0 0.0
        %3320 = vmatprep.subr.mxu0 0.0
        %3321 = vmatpush1.msra.mxu0 0.0
        %3322 = vmatprep.subr.mxu0 0.0
        %3323 = vmatpush1.msra.mxu0 0.0
        %3324 = vmatprep.subr.mxu0 0.0
        %3325 = vmatpush1.msra.mxu0 0.0
        %3326 = vmatprep.subr.mxu0 0.0
        %3327 = vmatpush1.msra.mxu0 0.0
        %3328 = vmatprep.subr.mxu0 0.0
        %3329 = vmatpush1.msra.mxu0 0.0
        %3330 = vmatprep.subr.mxu0 0.0
        %3331 = vmatpush1.msra.mxu0 0.0
        %3332 = vmatprep.subr.mxu0 0.0
        %3333 = vmatpush1.msra.mxu0 0.0
        %3334 = vmatprep.subr.mxu0 0.0
        %3335 = vmatpush1.msra.mxu0 0.0
        %3336 = vmatprep.subr.mxu0 0.0
        %3337 = vmatpush1.msra.mxu0 0.0
        %3338 = vmatprep.subr.mxu0 0.0
        %3339 = vmatpush1.msra.mxu0 0.0
        %3340 = vmatprep.subr.mxu0 0.0
        %3341 = vmatpush1.msra.mxu0 %v3303
        %3342 = vmatprep.subr.mxu0 0.0
        %3343 = vmatpush1.msra.mxu0 %v3301
        %3344 = vmatprep.subr.mxu0 0.0
        %3345 = vmatpush2.msra.mxu0 0.0
        %3346 = vmatprep.subr.mxu0 0.0
        %3347 = vmatpush2.msra.mxu0 0.0
        %3348 = vmatprep.subr.mxu0 0.0
        %3349 = vmatpush2.msra.mxu0 0.0
        %3350 = vmatprep.subr.mxu0 0.0
        %3351 = vmatpush2.msra.mxu0 0.0
        %3352 = vmatprep.subr.mxu0 0.0
        %3353 = vmatpush2.msra.mxu0 0.0
        %3354 = vmatprep.subr.mxu0 0.0
        %3355 = vmatpush2.msra.mxu0 0.0
        %3356 = vmatprep.subr.mxu0 0.0
        %3357 = vmatpush2.msra.mxu0 0.0
        %3358 = vmatprep.subr.mxu0 0.0
        %3359 = vmatpush2.msra.mxu0 0.0
        %3360 = vmatprep.subr.mxu0 0.0
        %3361 = vmatpush2.msra.mxu0 0.0
        %3362 = vmatprep.subr.mxu0 0.0
        %3363 = vmatpush2.msra.mxu0 0.0
        %3364 = vmatprep.subr.mxu0 0.0
        %3365 = vmatpush2.msra.mxu0 0.0
        %3366 = vmatprep.subr.mxu0 0.0
        %3367 = vmatpush2.msra.mxu0 0.0
        %3368 = vmatprep.subr.mxu0 0.0
        %3369 = vmatpush2.msra.mxu0 0.0
        %3370 = vmatprep.subr.mxu0 0.0
        %3371 = vmatpush2.msra.mxu0 0.0
        %3372 = vmatprep.subr.mxu0 0.0
        %3373 = vmatpush2.msra.mxu0 0.0
        %3374 = vmatprep.subr.mxu0 0.0
        %3375 = vmatpush2.msra.mxu0 0.0
        %3376 = vmatprep.mubr.f32.mxu0 0.0
        %3377 = vmatmul.mubr.f32.gmra.mxu0 %v3307
        %v3378 = vpop.f32.mrf.mxu0
        %v3379 = vadd.f32 0.0, %v3378
        %v3380 = vpop.f32.mrf.mxu0
        %3381 = vmatprep.mubr.f32.mxu0 0.0
        %3382 = vmatmul.mubr.f32.gmra.mxu0 %v3310
        %v3383 = vpop.f32.mrf.mxu0
        %v3384 = vadd.f32 0.0, %v3383
        %v3385 = vpop.f32.mrf.mxu0
        %3386 = vdwg.mxu0
        %3387 = vrot.lane.b32.xlu0 %v391, 40
        %v3388 = vpop.permute.xlu0 %3387
        %3389 = vrot.lane.b32.xlu0 %v396, 40
        %v3390 = vpop.permute.xlu0 %3389
        %v3394 = vsel %vm784, %v3289, 0
        %v3397 = vsel %vm784, %v3291, 0
        %3399 = vmatprep.subr.mxu0 0.0
        %3400 = vmatpush1.msra.mxu0 0.0
        %3401 = vmatprep.subr.mxu0 0.0
        %3402 = vmatpush1.msra.mxu0 0.0
        %3403 = vmatprep.subr.mxu0 0.0
        %3404 = vmatpush1.msra.mxu0 0.0
        %3405 = vmatprep.subr.mxu0 0.0
        %3406 = vmatpush1.msra.mxu0 0.0
        %3407 = vmatprep.subr.mxu0 0.0
        %3408 = vmatpush1.msra.mxu0 0.0
        %3409 = vmatprep.subr.mxu0 0.0
        %3410 = vmatpush1.msra.mxu0 0.0
        %3411 = vmatprep.subr.mxu0 0.0
        %3412 = vmatpush1.msra.mxu0 0.0
        %3413 = vmatprep.subr.mxu0 0.0
        %3414 = vmatpush1.msra.mxu0 0.0
        %3415 = vmatprep.subr.mxu0 0.0
        %3416 = vmatpush1.msra.mxu0 0.0
        %3417 = vmatprep.subr.mxu0 0.0
        %3418 = vmatpush1.msra.mxu0 0.0
        %3419 = vmatprep.subr.mxu0 0.0
        %3420 = vmatpush1.msra.mxu0 0.0
        %3421 = vmatprep.subr.mxu0 0.0
        %3422 = vmatpush1.msra.mxu0 0.0
        %3423 = vmatprep.subr.mxu0 0.0
        %3424 = vmatpush1.msra.mxu0 0.0
        %3425 = vmatprep.subr.mxu0 0.0
        %3426 = vmatpush1.msra.mxu0 0.0
        %3427 = vmatprep.subr.mxu0 0.0
        %3428 = vmatpush1.msra.mxu0 %v3390
        %3429 = vmatprep.subr.mxu0 0.0
        %3430 = vmatpush1.msra.mxu0 %v3388
        %3431 = vmatprep.subr.mxu0 0.0
        %3432 = vmatpush2.msra.mxu0 0.0
        %3433 = vmatprep.subr.mxu0 0.0
        %3434 = vmatpush2.msra.mxu0 0.0
        %3435 = vmatprep.subr.mxu0 0.0
        %3436 = vmatpush2.msra.mxu0 0.0
        %3437 = vmatprep.subr.mxu0 0.0
        %3438 = vmatpush2.msra.mxu0 0.0
        %3439 = vmatprep.subr.mxu0 0.0
        %3440 = vmatpush2.msra.mxu0 0.0
        %3441 = vmatprep.subr.mxu0 0.0
        %3442 = vmatpush2.msra.mxu0 0.0
        %3443 = vmatprep.subr.mxu0 0.0
        %3444 = vmatpush2.msra.mxu0 0.0
        %3445 = vmatprep.subr.mxu0 0.0
        %3446 = vmatpush2.msra.mxu0 0.0
        %3447 = vmatprep.subr.mxu0 0.0
        %3448 = vmatpush2.msra.mxu0 0.0
        %3449 = vmatprep.subr.mxu0 0.0
        %3450 = vmatpush2.msra.mxu0 0.0
        %3451 = vmatprep.subr.mxu0 0.0
        %3452 = vmatpush2.msra.mxu0 0.0
        %3453 = vmatprep.subr.mxu0 0.0
        %3454 = vmatpush2.msra.mxu0 0.0
        %3455 = vmatprep.subr.mxu0 0.0
        %3456 = vmatpush2.msra.mxu0 0.0
        %3457 = vmatprep.subr.mxu0 0.0
        %3458 = vmatpush2.msra.mxu0 0.0
        %3459 = vmatprep.subr.mxu0 0.0
        %3460 = vmatpush2.msra.mxu0 0.0
        %3461 = vmatprep.subr.mxu0 0.0
        %3462 = vmatpush2.msra.mxu0 0.0
        %3463 = vmatprep.mubr.f32.mxu0 0.0
        %3464 = vmatmul.mubr.f32.gmra.mxu0 %v3394
        %v3465 = vpop.f32.mrf.mxu0
        %v3466 = vadd.f32 0.0, %v3465
        %v3467 = vpop.f32.mrf.mxu0
        %3468 = vmatprep.mubr.f32.mxu0 0.0
        %3469 = vmatmul.mubr.f32.gmra.mxu0 %v3397
        %v3470 = vpop.f32.mrf.mxu0
        %v3471 = vadd.f32 0.0, %v3470
        %v3472 = vpop.f32.mrf.mxu0
        %3473 = vdwg.mxu0
        %3474 = vrot.lane.b32.xlu0 %v401, 40
        %v3475 = vpop.permute.xlu0 %3474
        %3476 = vrot.lane.b32.xlu0 %v406, 40
        %v3477 = vpop.permute.xlu0 %3476
        %v3481 = vsel %vm784, %v3293, 0
        %v3484 = vsel %vm784, %v3295, 0
        %3486 = vmatprep.subr.mxu0 0.0
        %3487 = vmatpush1.msra.mxu0 0.0
        %3488 = vmatprep.subr.mxu0 0.0
        %3489 = vmatpush1.msra.mxu0 0.0
        %3490 = vmatprep.subr.mxu0 0.0
        %3491 = vmatpush1.msra.mxu0 0.0
        %3492 = vmatprep.subr.mxu0 0.0
        %3493 = vmatpush1.msra.mxu0 0.0
        %3494 = vmatprep.subr.mxu0 0.0
        %3495 = vmatpush1.msra.mxu0 0.0
        %3496 = vmatprep.subr.mxu0 0.0
        %3497 = vmatpush1.msra.mxu0 0.0
        %3498 = vmatprep.subr.mxu0 0.0
        %3499 = vmatpush1.msra.mxu0 0.0
        %3500 = vmatprep.subr.mxu0 0.0
        %3501 = vmatpush1.msra.mxu0 0.0
        %3502 = vmatprep.subr.mxu0 0.0
        %3503 = vmatpush1.msra.mxu0 0.0
        %3504 = vmatprep.subr.mxu0 0.0
        %3505 = vmatpush1.msra.mxu0 0.0
        %3506 = vmatprep.subr.mxu0 0.0
        %3507 = vmatpush1.msra.mxu0 0.0
        %3508 = vmatprep.subr.mxu0 0.0
        %3509 = vmatpush1.msra.mxu0 0.0
        %3510 = vmatprep.subr.mxu0 0.0
        %3511 = vmatpush1.msra.mxu0 0.0
        %3512 = vmatprep.subr.mxu0 0.0
        %3513 = vmatpush1.msra.mxu0 0.0
        %3514 = vmatprep.subr.mxu0 0.0
        %3515 = vmatpush1.msra.mxu0 %v3477
        %3516 = vmatprep.subr.mxu0 0.0
        %3517 = vmatpush1.msra.mxu0 %v3475
        %3518 = vmatprep.subr.mxu0 0.0
        %3519 = vmatpush2.msra.mxu0 0.0
        %3520 = vmatprep.subr.mxu0 0.0
        %3521 = vmatpush2.msra.mxu0 0.0
        %3522 = vmatprep.subr.mxu0 0.0
        %3523 = vmatpush2.msra.mxu0 0.0
        %3524 = vmatprep.subr.mxu0 0.0
        %3525 = vmatpush2.msra.mxu0 0.0
        %3526 = vmatprep.subr.mxu0 0.0
        %3527 = vmatpush2.msra.mxu0 0.0
        %3528 = vmatprep.subr.mxu0 0.0
        %3529 = vmatpush2.msra.mxu0 0.0
        %3530 = vmatprep.subr.mxu0 0.0
        %3531 = vmatpush2.msra.mxu0 0.0
        %3532 = vmatprep.subr.mxu0 0.0
        %3533 = vmatpush2.msra.mxu0 0.0
        %3534 = vmatprep.subr.mxu0 0.0
        %3535 = vmatpush2.msra.mxu0 0.0
        %3536 = vmatprep.subr.mxu0 0.0
        %3537 = vmatpush2.msra.mxu0 0.0
        %3538 = vmatprep.subr.mxu0 0.0
        %3539 = vmatpush2.msra.mxu0 0.0
        %3540 = vmatprep.subr.mxu0 0.0
        %3541 = vmatpush2.msra.mxu0 0.0
        %3542 = vmatprep.subr.mxu0 0.0
        %3543 = vmatpush2.msra.mxu0 0.0
        %3544 = vmatprep.subr.mxu0 0.0
        %3545 = vmatpush2.msra.mxu0 0.0
        %3546 = vmatprep.subr.mxu0 0.0
        %3547 = vmatpush2.msra.mxu0 0.0
        %3548 = vmatprep.subr.mxu0 0.0
        %3549 = vmatpush2.msra.mxu0 0.0
        %3550 = vmatprep.mubr.f32.mxu0 0.0
        %3551 = vmatmul.mubr.f32.gmra.mxu0 %v3481
        %v3552 = vpop.f32.mrf.mxu0
        %v3553 = vadd.f32 0.0, %v3552
        %v3554 = vpop.f32.mrf.mxu0
        %3555 = vmatprep.mubr.f32.mxu0 0.0
        %3556 = vmatmul.mubr.f32.gmra.mxu0 %v3484
        %v3557 = vpop.f32.mrf.mxu0
        %v3558 = vadd.f32 0.0, %v3557
        %v3559 = vpop.f32.mrf.mxu0
        %3560 = vdwg.mxu0
        %3561 = vrot.lane.b32.xlu0 %v411, 40
        %v3562 = vpop.permute.xlu0 %3561
        %3563 = vrot.lane.b32.xlu0 %v416, 40
        %v3564 = vpop.permute.xlu0 %3563
        %v3568 = vsel %vm784, %v3297, 0
        %v3571 = vsel %vm784, %v3299, 0
        %3573 = vmatprep.subr.mxu0 0.0
        %3574 = vmatpush1.msra.mxu0 0.0
        %3575 = vmatprep.subr.mxu0 0.0
        %3576 = vmatpush1.msra.mxu0 0.0
        %3577 = vmatprep.subr.mxu0 0.0
        %3578 = vmatpush1.msra.mxu0 0.0
        %3579 = vmatprep.subr.mxu0 0.0
        %3580 = vmatpush1.msra.mxu0 0.0
        %3581 = vmatprep.subr.mxu0 0.0
        %3582 = vmatpush1.msra.mxu0 0.0
        %3583 = vmatprep.subr.mxu0 0.0
        %3584 = vmatpush1.msra.mxu0 0.0
        %3585 = vmatprep.subr.mxu0 0.0
        %3586 = vmatpush1.msra.mxu0 0.0
        %3587 = vmatprep.subr.mxu0 0.0
        %3588 = vmatpush1.msra.mxu0 0.0
        %3589 = vmatprep.subr.mxu0 0.0
        %3590 = vmatpush1.msra.mxu0 0.0
        %3591 = vmatprep.subr.mxu0 0.0
        %3592 = vmatpush1.msra.mxu0 0.0
        %3593 = vmatprep.subr.mxu0 0.0
        %3594 = vmatpush1.msra.mxu0 0.0
        %3595 = vmatprep.subr.mxu0 0.0
        %3596 = vmatpush1.msra.mxu0 0.0
        %3597 = vmatprep.subr.mxu0 0.0
        %3598 = vmatpush1.msra.mxu0 0.0
        %3599 = vmatprep.subr.mxu0 0.0
        %3600 = vmatpush1.msra.mxu0 0.0
        %3601 = vmatprep.subr.mxu0 0.0
        %3602 = vmatpush1.msra.mxu0 %v3564
        %3603 = vmatprep.subr.mxu0 0.0
        %3604 = vmatpush1.msra.mxu0 %v3562
        %3605 = vmatprep.subr.mxu0 0.0
        %3606 = vmatpush2.msra.mxu0 0.0
        %3607 = vmatprep.subr.mxu0 0.0
        %3608 = vmatpush2.msra.mxu0 0.0
        %3609 = vmatprep.subr.mxu0 0.0
        %3610 = vmatpush2.msra.mxu0 0.0
        %3611 = vmatprep.subr.mxu0 0.0
        %3612 = vmatpush2.msra.mxu0 0.0
        %3613 = vmatprep.subr.mxu0 0.0
        %3614 = vmatpush2.msra.mxu0 0.0
        %3615 = vmatprep.subr.mxu0 0.0
        %3616 = vmatpush2.msra.mxu0 0.0
        %3617 = vmatprep.subr.mxu0 0.0
        %3618 = vmatpush2.msra.mxu0 0.0
        %3619 = vmatprep.subr.mxu0 0.0
        %3620 = vmatpush2.msra.mxu0 0.0
        %3621 = vmatprep.subr.mxu0 0.0
        %3622 = vmatpush2.msra.mxu0 0.0
        %3623 = vmatprep.subr.mxu0 0.0
        %3624 = vmatpush2.msra.mxu0 0.0
        %3625 = vmatprep.subr.mxu0 0.0
        %3626 = vmatpush2.msra.mxu0 0.0
        %3627 = vmatprep.subr.mxu0 0.0
        %3628 = vmatpush2.msra.mxu0 0.0
        %3629 = vmatprep.subr.mxu0 0.0
        %3630 = vmatpush2.msra.mxu0 0.0
        %3631 = vmatprep.subr.mxu0 0.0
        %3632 = vmatpush2.msra.mxu0 0.0
        %3633 = vmatprep.subr.mxu0 0.0
        %3634 = vmatpush2.msra.mxu0 0.0
        %3635 = vmatprep.subr.mxu0 0.0
        %3636 = vmatpush2.msra.mxu0 0.0
        %3637 = vmatprep.mubr.f32.mxu0 0.0
        %3638 = vmatmul.mubr.f32.gmra.mxu0 %v3568
        %v3639 = vpop.f32.mrf.mxu0
        %v3640 = vadd.f32 0.0, %v3639
        %v3641 = vpop.f32.mrf.mxu0
        %3642 = vmatprep.mubr.f32.mxu0 0.0
        %3643 = vmatmul.mubr.f32.gmra.mxu0 %v3571
        %v3644 = vpop.f32.mrf.mxu0
        %v3645 = vadd.f32 0.0, %v3644
        %v3646 = vpop.f32.mrf.mxu0
        %3647 = vdwg.mxu0
        %3656 = vrot.lane.b32.xlu0 %v1761, 8
        %v3657 = vpop.permute.xlu0 %3656
        %3658 = vrot.lane.b32.xlu0 %v1766, 8
        %v3659 = vpop.permute.xlu0 %3658
        %3660 = vrot.lane.b32.xlu0 %v1848, 8
        %v3661 = vpop.permute.xlu0 %3660
        %3662 = vrot.lane.b32.xlu0 %v1853, 8
        %v3663 = vpop.permute.xlu0 %3662
        %3664 = vrot.lane.b32.xlu0 %v1935, 8
        %v3665 = vpop.permute.xlu0 %3664
        %3666 = vrot.lane.b32.xlu0 %v1940, 8
        %v3667 = vpop.permute.xlu0 %3666
        %3668 = vrot.lane.b32.xlu0 %v2022, 8
        %v3669 = vpop.permute.xlu0 %3668
        %3670 = vrot.lane.b32.xlu0 %v2027, 8
        %v3671 = vpop.permute.xlu0 %3670
        %3688 = vrot.lane.b32.xlu0 %v2570, 16
        %v3689 = vpop.permute.xlu0 %3688
        %3690 = vrot.lane.b32.xlu0 %v2575, 16
        %v3691 = vpop.permute.xlu0 %3690
        %3692 = vrot.lane.b32.xlu0 %v2657, 16
        %v3693 = vpop.permute.xlu0 %3692
        %3694 = vrot.lane.b32.xlu0 %v2662, 16
        %v3695 = vpop.permute.xlu0 %3694
        %3696 = vrot.lane.b32.xlu0 %v2744, 16
        %v3697 = vpop.permute.xlu0 %3696
        %3698 = vrot.lane.b32.xlu0 %v2749, 16
        %v3699 = vpop.permute.xlu0 %3698
        %3700 = vrot.lane.b32.xlu0 %v2831, 16
        %v3701 = vpop.permute.xlu0 %3700
        %3702 = vrot.lane.b32.xlu0 %v2836, 16
        %v3703 = vpop.permute.xlu0 %3702
        %3720 = vrot.lane.b32.xlu0 %v3379, 24
        %v3721 = vpop.permute.xlu0 %3720
        %3722 = vrot.lane.b32.xlu0 %v3384, 24
        %v3723 = vpop.permute.xlu0 %3722
        %3724 = vrot.lane.b32.xlu0 %v3466, 24
        %v3725 = vpop.permute.xlu0 %3724
        %3726 = vrot.lane.b32.xlu0 %v3471, 24
        %v3727 = vpop.permute.xlu0 %3726
        %3728 = vrot.lane.b32.xlu0 %v3553, 24
        %v3729 = vpop.permute.xlu0 %3728
        %3730 = vrot.lane.b32.xlu0 %v3558, 24
        %v3731 = vpop.permute.xlu0 %3730
        %3732 = vrot.lane.b32.xlu0 %v3640, 24
        %v3733 = vpop.permute.xlu0 %3732
        %3734 = vrot.lane.b32.xlu0 %v3645, 24
        %v3735 = vpop.permute.xlu0 %3734
        %v3744 = vsel %vm433, %v952, %v3657
        %v3745 = vsel %vm433, %v957, %v3659
        %v3746 = vsel %vm433, %v1039, %v3661
        %v3747 = vsel %vm433, %v1044, %v3663
        %v3748 = vsel %vm433, %v1126, %v3665
        %v3749 = vsel %vm433, %v1131, %v3667
        %v3750 = vsel %vm433, %v1213, %v3669
        %v3751 = vsel %vm433, %v1218, %v3671
        %v3752 = vsel %vm784, %v3744, %v3689
        %v3753 = vsel %vm784, %v3745, %v3691
        %v3754 = vsel %vm784, %v3746, %v3693
        %v3755 = vsel %vm784, %v3747, %v3695
        %v3756 = vsel %vm784, %v3748, %v3697
        %v3757 = vsel %vm784, %v3749, %v3699
        %v3758 = vsel %vm784, %v3750, %v3701
        %v3759 = vsel %vm784, %v3751, %v3703
        %vm3760 = vcmask 195584
        %v3761 = vsel %vm3760, %v3752, %v3721
        %v3762 = vsel %vm3760, %v3753, %v3723
        %v3763 = vsel %vm3760, %v3754, %v3725
        %v3764 = vsel %vm3760, %v3755, %v3727
        %v3765 = vsel %vm3760, %v3756, %v3729
        %v3766 = vsel %vm3760, %v3757, %v3731
        %v3767 = vsel %vm3760, %v3758, %v3733
        %v3768 = vsel %vm3760, %v3759, %v3735
        %v3769 = vld [vmem:[%s4] sm:$0xff]
        %v3770 = vld [vmem:[%s4 + $0x8] sm:$0xff]
        %v3771 = vld [vmem:[%s4 + $0x10] sm:$0xff]
        %v3772 = vld [vmem:[%s4 + $0x18] sm:$0xff]
        %v3773 = vld [vmem:[%s5] sm:$0x1]
        %v3775 = vlaneseq
        %v3776 = vshrl.u32 %v3775, 7
        %v3777 = vsub.s32 0, %v3776
        %v3778 = vrot.slane %v3773, %v3777
        %v3781 = vsel %vm289, %v3761, 0
        %v3784 = vsel %vm289, %v3762, 0
        %v3787 = vsel %vm289, %v3763, 0
        %v3790 = vsel %vm289, %v3764, 0
        %v3793 = vsel %vm289, %v3765, 0
        %v3796 = vsel %vm289, %v3766, 0
        %v3799 = vsel %vm289, %v3767, 0
        %v3802 = vsel %vm289, %v3768, 0
        %3804 = vmatprep.subr.mxu0 0.0
        %3805 = vmatpush1.msra.mxu0 0.0
        %3806 = vmatprep.subr.mxu0 0.0
        %3807 = vmatpush1.msra.mxu0 0.0
        %3808 = vmatprep.subr.mxu0 0.0
        %3809 = vmatpush1.msra.mxu0 0.0
        %3810 = vmatprep.subr.mxu0 0.0
        %3811 = vmatpush1.msra.mxu0 0.0
        %3812 = vmatprep.subr.mxu0 0.0
        %3813 = vmatpush1.msra.mxu0 0.0
        %3814 = vmatprep.subr.mxu0 0.0
        %3815 = vmatpush1.msra.mxu0 0.0
        %3816 = vmatprep.subr.mxu0 0.0
        %3817 = vmatpush1.msra.mxu0 0.0
        %3818 = vmatprep.subr.mxu0 0.0
        %3819 = vmatpush1.msra.mxu0 0.0
        %3820 = vmatprep.subr.mxu0 0.0
        %3821 = vmatpush1.msra.mxu0 0.0
        %3822 = vmatprep.subr.mxu0 0.0
        %3823 = vmatpush1.msra.mxu0 0.0
        %3824 = vmatprep.subr.mxu0 0.0
        %3825 = vmatpush1.msra.mxu0 0.0
        %3826 = vmatprep.subr.mxu0 0.0
        %3827 = vmatpush1.msra.mxu0 0.0
        %3828 = vmatprep.subr.mxu0 0.0
        %3829 = vmatpush1.msra.mxu0 %v3772
        %3830 = vmatprep.subr.mxu0 0.0
        %3831 = vmatpush1.msra.mxu0 %v3771
        %3832 = vmatprep.subr.mxu0 0.0
        %3833 = vmatpush1.msra.mxu0 %v3770
        %3834 = vmatprep.subr.mxu0 0.0
        %3835 = vmatpush1.msra.mxu0 %v3769
        %3836 = vmatprep.subr.mxu0 0.0
        %3837 = vmatpush2.msra.mxu0 0.0
        %3838 = vmatprep.subr.mxu0 0.0
        %3839 = vmatpush2.msra.mxu0 0.0
        %3840 = vmatprep.subr.mxu0 0.0
        %3841 = vmatpush2.msra.mxu0 0.0
        %3842 = vmatprep.subr.mxu0 0.0
        %3843 = vmatpush2.msra.mxu0 0.0
        %3844 = vmatprep.subr.mxu0 0.0
        %3845 = vmatpush2.msra.mxu0 0.0
        %3846 = vmatprep.subr.mxu0 0.0
        %3847 = vmatpush2.msra.mxu0 0.0
        %3848 = vmatprep.subr.mxu0 0.0
        %3849 = vmatpush2.msra.mxu0 0.0
        %3850 = vmatprep.subr.mxu0 0.0
        %3851 = vmatpush2.msra.mxu0 0.0
        %3852 = vmatprep.subr.mxu0 0.0
        %3853 = vmatpush2.msra.mxu0 0.0
        %3854 = vmatprep.subr.mxu0 0.0
        %3855 = vmatpush2.msra.mxu0 0.0
        %3856 = vmatprep.subr.mxu0 0.0
        %3857 = vmatpush2.msra.mxu0 0.0
        %3858 = vmatprep.subr.mxu0 0.0
        %3859 = vmatpush2.msra.mxu0 0.0
        %3860 = vmatprep.subr.mxu0 0.0
        %3861 = vmatpush2.msra.mxu0 0.0
        %3862 = vmatprep.subr.mxu0 0.0
        %3863 = vmatpush2.msra.mxu0 0.0
        %3864 = vmatprep.subr.mxu0 0.0
        %3865 = vmatpush2.msra.mxu0 0.0
        %3866 = vmatprep.subr.mxu0 0.0
        %3867 = vmatpush2.msra.mxu0 0.0
        %3868 = vmatprep.mubr.f32.mxu0 0.0
        %3869 = vmatmul.mubr.f32.gmra.mxu0 %v3781
        %v3870 = vpop.f32.mrf.mxu0
        %v3871 = vadd.f32 %v3778, %v3870
        %v3872 = vpop.f32.mrf.mxu0
        %3873 = vmatprep.mubr.f32.mxu0 0.0
        %3874 = vmatmul.mubr.f32.gmra.mxu0 %v3784
        %v3875 = vpop.f32.mrf.mxu0
        %v3876 = vadd.f32 %v3778, %v3875
        %v3877 = vpop.f32.mrf.mxu0
        %3878 = vmatprep.mubr.f32.mxu0 0.0
        %3879 = vmatmul.mubr.f32.gmra.mxu0 %v3787
        %v3880 = vpop.f32.mrf.mxu0
        %v3881 = vadd.f32 %v3778, %v3880
        %v3882 = vpop.f32.mrf.mxu0
        %3883 = vmatprep.mubr.f32.mxu0 0.0
        %3884 = vmatmul.mubr.f32.gmra.mxu0 %v3790
        %v3885 = vpop.f32.mrf.mxu0
        %v3886 = vadd.f32 %v3778, %v3885
        %v3887 = vpop.f32.mrf.mxu0
        %3888 = vmatprep.mubr.f32.mxu0 0.0
        %3889 = vmatmul.mubr.f32.gmra.mxu0 %v3793
        %v3890 = vpop.f32.mrf.mxu0
        %v3891 = vadd.f32 %v3778, %v3890
        %v3892 = vpop.f32.mrf.mxu0
        %3893 = vmatprep.mubr.f32.mxu0 0.0
        %3894 = vmatmul.mubr.f32.gmra.mxu0 %v3796
        %v3895 = vpop.f32.mrf.mxu0
        %v3896 = vadd.f32 %v3778, %v3895
        %v3897 = vpop.f32.mrf.mxu0
        %3898 = vmatprep.mubr.f32.mxu0 0.0
        %3899 = vmatmul.mubr.f32.gmra.mxu0 %v3799
        %v3900 = vpop.f32.mrf.mxu0
        %v3901 = vadd.f32 %v3778, %v3900
        %v3902 = vpop.f32.mrf.mxu0
        %3903 = vmatprep.mubr.f32.mxu0 0.0
        %3904 = vmatmul.mubr.f32.gmra.mxu0 %v3802
        %v3905 = vpop.f32.mrf.mxu0
        %v3906 = vadd.f32 %v3778, %v3905
        %v3907 = vpop.f32.mrf.mxu0
        %3908 = vdwg.mxu0
        %3909 = vst.msk [vmem:[%s268] sm:$0xff] %vm289, %v3871
        %3910 = vst.msk [vmem:[%s268 + $0x8] sm:$0xff] %vm289, %v3876
        %3911 = vst.msk [vmem:[%s268 + $0x10] sm:$0xff] %vm289, %v3881
        %3912 = vst.msk [vmem:[%s268 + $0x18] sm:$0xff] %vm289, %v3886
        %3913 = vst.msk [vmem:[%s268 + $0x20] sm:$0xff] %vm289, %v3891
        %3914 = vst.msk [vmem:[%s268 + $0x28] sm:$0xff] %vm289, %v3896
        %3915 = vst.msk [vmem:[%s268 + $0x30] sm:$0xff] %vm289, %v3901
        %3916 = vst.msk [vmem:[%s268 + $0x38] sm:$0xff] %vm289, %v3906
        %s3917 = smul.u32 8, %s18
        %p3918 = scmp.lt.s32.totalorder %s3917, 15
        %s3919 = scalar_select %p3918, %s3917, 15
        %s3920 = smul.addr %s3919, 8
        %s3921 = scalar_lea.vmem %s6, %s3920
        // Predicated region
        $region49: #{tpu_custom_call.1} parent=43 // pred_check
          %p3922 = pneg %p167
        $region50: #{tpu_custom_call.1} parent=43 // pred_check_branch
          %3924 = sbr.rel (%p3922) target = $region52
        $region51: #{tpu_custom_call.1} parent=43 // pred_region
          %s3925 = smul.u32 8, %s18
        $region52: #{tpu_custom_call.1} parent=43 // pred_fallthru
          _
      $region44: #{tpu_custom_call.1} parent=5 // pred_fallthru
        _
      %p3926 = scmp.le.s32.totalorder 2, %s13
      // Predicated region
      $region53: #{tpu_custom_call.1} parent=5 // pred_check
        %p3927 = pneg %p3926
      $region54: #{tpu_custom_call.1} parent=5 // pred_check_branch
        %3929 = sbr.rel (%p3927) target = $region56
      $region55: #{tpu_custom_call.1} parent=5 // pred_region
        %s3930 = ssub.s32 %s13, 2
        // Predicated region
        $region57: #{tpu_custom_call.1} parent=55 // pred_check
          %p3931 = pneg %p173
        $region58: #{tpu_custom_call.1} parent=55 // pred_check_branch
          %3933 = sbr.rel (%p3931) target = $region60
        $region59: #{tpu_custom_call.1} parent=55 // pred_region
          %s3934 = smul.u32 8, %s19
          %p3935 = scmp.lt.s32.totalorder %s3934, 15
          %s3936 = scalar_select %p3935, %s3934, 15
          %s3937 = smul.addr %s3936, 8
          %s3938 = scalar_lea.vmem %s6, %s3937
        $region60: #{tpu_custom_call.1} parent=55 // pred_fallthru
          _
      $region56: #{tpu_custom_call.1} parent=5 // pred_fallthru
        _
    $region6: #{tpu_custom_call.1} parent=1 // loop_footer
      %s17 = sadd.s32 1, %s13
    $region7: #{tpu_custom_call.1} parent=1 // loop_footer_branch
      %12 = sbr.rel target = $region3
    $region8: #{tpu_custom_call.1} parent=1 // loop_exit
      _
    %3939 = vsyncpa [#allocation3], 1
    %s3940 = scalar_lea.sflag [#allocation3], 1
    %3941 = vsyncpa %s3940, 1

</llo_original>
